<compile_context>
chip_gen: v7x
topology: tpu7x:2x2x1
jax: 0.10.0
libtpu: 0.0.40
codegen_flags: <defaults>
</compile_context>

<pallas_src>
import jax
import jax.numpy as jnp
from jax.experimental import pallas as pl
from jax.experimental.pallas import tpu as pltpu


def _residual_unit_kernel(x_ref, w1_ref, b1_ref, w2_ref, b2_ref,
                          w3_ref, b3_ref, sew1_ref, sew2_ref,
                          wd_ref, bd_ref, out_ref):
    # Block shapes: x_ref (1, H, W, Cin), out_ref (1, H, W, C3).
    # Conv weights arrive with the BN scale already folded in; only bias adds
    # remain here. w2_ref is pre-flattened to (9*C1, C2), tap-major.
    _, H, W, Cin = x_ref.shape
    C1 = w1_ref.shape[1]
    C2 = w2_ref.shape[1]
    C3 = w3_ref.shape[1]

    x2d = x_ref[...].reshape(H * W, Cin)

    # ---- conv1 (1x1) + bn1 (folded) + relu ----------------------------------
    h1 = jnp.dot(x2d, w1_ref[...], preferred_element_type=jnp.float32)
    h1 = jnp.maximum(h1 + b1_ref[...], 0.0)

    # ---- conv2 (3x3, pad=1, stride=1) + bn2 (folded) + relu -----------------
    # Single im2col matmul: build (H*W, 9*C1) patches.  Vertical shifts come
    # from cheap outer-axis slices of an H-padded value; horizontal shifts use
    # pltpu.roll on the (otherwise idle) XLU plus an edge mask.
    h1_img = h1.reshape(H, W, C1)
    zrow = jnp.zeros((1, W, C1), jnp.float32)
    pad_v = jnp.concatenate([zrow, h1_img, zrow], axis=0)          # (H+2, W, C1)
    col = jax.lax.broadcasted_iota(jnp.int32, (H, W, C1), 1)

    taps = []
    for ky in range(3):                       # static unroll over vertical taps
        v = pad_v[ky:ky + H]                  # (H, W, C1): v[y,x] = in[y+ky-1, x]
        left = jnp.where(col == 0, 0.0, pltpu.roll(v, shift=1, axis=1))
        right = jnp.where(col == W - 1, 0.0, pltpu.roll(v, shift=W - 1, axis=1))
        taps += [left, v, right]              # kx = 0, 1, 2
    patch = jnp.concatenate(taps, axis=-1).reshape(H * W, 9 * C1)

    h2 = jnp.dot(patch, w2_ref[...], preferred_element_type=jnp.float32)
    h2 = jnp.maximum(h2 + b2_ref[...], 0.0)

    # ---- conv3 (1x1) + bn3 (folded) -----------------------------------------
    h3 = jnp.dot(h2, w3_ref[...], preferred_element_type=jnp.float32) + b3_ref[...]

    # ---- SE layer (global avg pool -> fc -> relu -> fc -> sigmoid -> scale) -
    y = jnp.mean(h3, axis=0, keepdims=True)                        # (1, C3)
    y = jnp.maximum(jnp.dot(y, sew1_ref[...],
                            preferred_element_type=jnp.float32), 0.0)
    y = jax.nn.sigmoid(jnp.dot(y, sew2_ref[...],
                               preferred_element_type=jnp.float32))
    h3 = h3 * y                                                    # broadcast over rows

    # ---- down-sample branch (1x1 conv + bn folded) and residual add ---------
    # Re-read x from its VMEM ref so x2d did not have to stay live above.
    ds = jnp.dot(x_ref[...].reshape(H * W, Cin), wd_ref[...],
                 preferred_element_type=jnp.float32) + bd_ref[...]

    out_ref[...] = jnp.maximum(h3 + ds, 0.0).reshape(1, H, W, C3)


def residual_unit_forward(x, params):
    """x: (B, H, W, Cin) float32 -> (B, H, W, C3) float32."""
    (w1, s1, b1, w2, s2, b2, w3, s3, b3, sew1, sew2, wd, sd, bd) = params
    B, H, W, Cin = x.shape
    C1 = w1.shape[1]
    C2 = w2.shape[2]
    C3 = w3.shape[1]

    # Host-side preprocessing: fold BN scales into the conv weights and flatten
    # the 3x3 kernel to a single (9*C1, C2) im2col weight slab.
    w1f = w1 * s1                                   # (Cin, C1)
    w2f = w2.reshape(9 * C1, C2) * s2               # (9*C1, C2)
    w3f = w3 * s3                                   # (C2, C3)
    wdf = wd * sd                                   # (Cin, C3)
    kparams = (w1f, b1, w2f, b2, w3f, b3, sew1, sew2, wdf, bd)

    def full_spec(shape):
        return pl.BlockSpec(shape, lambda b, _n=len(shape): (0,) * _n)

    grid_spec = pltpu.PrefetchScalarGridSpec(
        num_scalar_prefetch=0,
        grid=(B,),
        in_specs=[pl.BlockSpec((1, H, W, Cin), lambda b: (b, 0, 0, 0))]
                 + [full_spec(p.shape) for p in kparams],
        out_specs=pl.BlockSpec((1, H, W, C3), lambda b: (b, 0, 0, 0)),
    )

    return pl.pallas_call(
        _residual_unit_kernel,
        out_shape=jax.ShapeDtypeStruct((B, H, W, C3), jnp.float32),
        grid_spec=grid_spec,
        compiler_params=pltpu.CompilerParams(
            dimension_semantics=("parallel",)),
    )(x, *kparams)


def make_params(key, cfg, reduction=16, eps=1e-5):
    """Deterministic synthetic parameters. BN is represented as (scale, shift)."""
    cin, c1, c2, c3 = cfg
    ks = jax.random.split(key, 10)

    def bn_params(k, c):
        kk = jax.random.split(k, 4)
        gamma = 1.0 + 0.1 * jax.random.normal(kk[0], (c,), jnp.float32)
        beta = 0.1 * jax.random.normal(kk[1], (c,), jnp.float32)
        mean = 0.1 * jax.random.normal(kk[2], (c,), jnp.float32)
        var = 1.0 + 0.1 * jax.random.uniform(kk[3], (c,), jnp.float32)
        scale = gamma / jnp.sqrt(var + eps)
        shift = beta - mean * scale
        return scale.reshape(1, c), shift.reshape(1, c)

    w1 = 0.1 * jax.random.normal(ks[0], (cin, c1), jnp.float32)
    w2 = 0.1 * jax.random.normal(ks[1], (9, c1, c2), jnp.float32)   # taps (ky*3+kx, Cin, Cout)
    w3 = 0.1 * jax.random.normal(ks[2], (c2, c3), jnp.float32)
    wd = 0.1 * jax.random.normal(ks[3], (cin, c3), jnp.float32)
    sew1 = 0.1 * jax.random.normal(ks[4], (c3, c3 // reduction), jnp.float32)
    sew2 = 0.1 * jax.random.normal(ks[5], (c3 // reduction, c3), jnp.float32)
    s1, b1 = bn_params(ks[6], c1)
    s2, b2 = bn_params(ks[7], c2)
    s3, b3 = bn_params(ks[8], c3)
    sd, bd = bn_params(ks[9], c3)
    return (w1, s1, b1, w2, s2, b2, w3, s3, b3, sew1, sew2, wd, sd, bd)


def reference_forward(x, params):
    """Pure-JAX reference (NHWC) mirroring the PyTorch forward."""
    (w1, s1, b1, w2, s2, b2, w3, s3, b3, sew1, sew2, wd, sd, bd) = params

    def conv1x1(h, w):
        return jnp.einsum('bhwc,cd->bhwd', h, w)

    h = jnp.maximum(conv1x1(x, w1) * s1[0] + b1[0], 0.0)
    w2_hwio = w2.reshape(3, 3, w2.shape[1], w2.shape[2])
    h = jax.lax.conv_general_dilated(
        h, w2_hwio, window_strides=(1, 1), padding=((1, 1), (1, 1)),
        dimension_numbers=('NHWC', 'HWIO', 'NHWC'))
    h = jnp.maximum(h * s2[0] + b2[0], 0.0)
    h = conv1x1(h, w3) * s3[0] + b3[0]
    y = jnp.mean(h, axis=(1, 2))
    y = jnp.maximum(y @ sew1, 0.0)
    y = jax.nn.sigmoid(y @ sew2)
    h = h * y[:, None, None, :]
    ds = conv1x1(x, wd) * sd[0] + bd[0]
    return jnp.maximum(h + ds, 0.0)


if __name__ == "__main__":
    cfg = (16, 8, 8, 32)        # [Cin, C1, C2, C3]; Cin != C3 -> down_sample branch active
    B, H, W = 2, 16, 16

    key = jax.random.PRNGKey(0)
    kx, kp = jax.random.split(key)
    x = jax.random.normal(kx, (B, H, W, cfg[0]), jnp.float32)
    params = make_params(kp, cfg)

    out = jax.block_until_ready(residual_unit_forward(x, params))
    ref = jax.block_until_ready(reference_forward(x, params))

    assert out.shape == (B, H, W, cfg[3]), out.shape
    assert bool(jnp.allclose(out, ref, atol=1e-3, rtol=1e-3)), (
        f"max abs diff {float(jnp.max(jnp.abs(out - ref)))}")

    print("KERNEL_OK")
</pallas_src>

<mosaic_0001>
module attributes {stable_mosaic.version = 11 : i64} {
  func.func @_residual_unit_kernel(%arg0: i32, %arg1: memref<1x16x16x16xf32, #tpu.memory_space<vmem>>, %arg2: memref<16x8xf32, #tpu.memory_space<vmem>>, %arg3: memref<1x8xf32, #tpu.memory_space<vmem>>, %arg4: memref<72x8xf32, #tpu.memory_space<vmem>>, %arg5: memref<1x8xf32, #tpu.memory_space<vmem>>, %arg6: memref<8x32xf32, #tpu.memory_space<vmem>>, %arg7: memref<1x32xf32, #tpu.memory_space<vmem>>, %arg8: memref<32x2xf32, #tpu.memory_space<vmem>>, %arg9: memref<2x32xf32, #tpu.memory_space<vmem>>, %arg10: memref<16x32xf32, #tpu.memory_space<vmem>>, %arg11: memref<1x32xf32, #tpu.memory_space<vmem>>, %arg12: memref<1x16x16x32xf32, #tpu.memory_space<vmem>>) attributes {dimension_semantics = [#tpu.dimension_semantics<parallel>], iteration_bounds = array<i64: 2>, scalar_prefetch = 0 : i64, scratch_operands = 0 : i64, tpu.core_type = #tpu.core_type<tc>, window_params = [{transform_indices = @transform_0, window_bounds = array<i64: 1, 16, 16, 16>}, {pipeline_mode = #tpu.pipeline_mode<synchronous>, transform_indices = @transform_1, window_bounds = array<i64: 16, 8>}, {pipeline_mode = #tpu.pipeline_mode<synchronous>, transform_indices = @transform_2, window_bounds = array<i64: 1, 8>}, {pipeline_mode = #tpu.pipeline_mode<synchronous>, transform_indices = @transform_3, window_bounds = array<i64: 72, 8>}, {pipeline_mode = #tpu.pipeline_mode<synchronous>, transform_indices = @transform_4, window_bounds = array<i64: 1, 8>}, {pipeline_mode = #tpu.pipeline_mode<synchronous>, transform_indices = @transform_5, window_bounds = array<i64: 8, 32>}, {pipeline_mode = #tpu.pipeline_mode<synchronous>, transform_indices = @transform_6, window_bounds = array<i64: 1, 32>}, {pipeline_mode = #tpu.pipeline_mode<synchronous>, transform_indices = @transform_7, window_bounds = array<i64: 32, 2>}, {pipeline_mode = #tpu.pipeline_mode<synchronous>, transform_indices = @transform_8, window_bounds = array<i64: 2, 32>}, {pipeline_mode = #tpu.pipeline_mode<synchronous>, transform_indices = @transform_9, window_bounds = array<i64: 16, 32>}, {pipeline_mode = #tpu.pipeline_mode<synchronous>, transform_indices = @transform_10, window_bounds = array<i64: 1, 32>}, {transform_indices = @transform_11, window_bounds = array<i64: 1, 16, 16, 32>}]} {
    %c0 = arith.constant 0 : index
    %c0_0 = arith.constant 0 : index
    %c0_1 = arith.constant 0 : index
    %c0_2 = arith.constant 0 : index
    %0 = vector.load %arg1[%c0, %c0_0, %c0_1, %c0_2] : memref<1x16x16x16xf32, #tpu.memory_space<vmem>>, vector<1x16x16x16xf32>
    %1 = vector.shape_cast %0 : vector<1x16x16x16xf32> to vector<256x16xf32>
    %c0_3 = arith.constant 0 : index
    %c0_4 = arith.constant 0 : index
    %2 = vector.load %arg2[%c0_3, %c0_4] : memref<16x8xf32, #tpu.memory_space<vmem>>, vector<16x8xf32>
    %cst = arith.constant dense<0.000000e+00> : vector<256x8xf32>
    %3 = tpu.matmul %1, %2, %cst {dimension_numbers = #tpu.dot_dimension_numbers<[1], [0], [0], [1], [0, 0, 1, 1], [], []>} : vector<256x16xf32>, vector<16x8xf32>, vector<256x8xf32> -> vector<256x8xf32>
    %c0_5 = arith.constant 0 : index
    %c0_6 = arith.constant 0 : index
    %4 = vector.load %arg3[%c0_5, %c0_6] : memref<1x8xf32, #tpu.memory_space<vmem>>, vector<1x8xf32>
    %5 = vector.broadcast %4 : vector<1x8xf32> to vector<256x8xf32>
    %6 = arith.addf %3, %5 : vector<256x8xf32>
    %cst_7 = arith.constant 0.000000e+00 : f32
    %7 = vector.broadcast %cst_7 : f32 to vector<256x8xf32>
    %8 = arith.maximumf %6, %7 : vector<256x8xf32>
    %9 = vector.shape_cast %8 : vector<256x8xf32> to vector<16x16x8xf32>
    %cst_8 = arith.constant 0.000000e+00 : f32
    %10 = vector.broadcast %cst_8 : f32 to vector<1x16x8xf32>
    %11 = tpu.concatenate %10, %9, %10 in 0 : vector<1x16x8xf32>, vector<16x16x8xf32>, vector<1x16x8xf32> -> vector<18x16x8xf32>
    %12 = tpu.iota {dimensions = array<i32: 1>} : vector<16x16x8xi32>
    %13 = vector.extract_strided_slice %11 {offsets = [0, 0, 0], sizes = [16, 16, 8], strides = [1, 1, 1]} : vector<18x16x8xf32> to vector<16x16x8xf32>
    %c0_i32 = arith.constant 0 : i32
    %14 = vector.broadcast %c0_i32 : i32 to vector<16x16x8xi32>
    %15 = arith.cmpi eq, %12, %14 : vector<16x16x8xi32>
    %c1_i32 = arith.constant 1 : i32
    %16 = tpu.dynamic_rotate %13 by %c1_i32 dim 1 : vector<16x16x8xf32>, i32 -> vector<16x16x8xf32>
    %cst_9 = arith.constant 0.000000e+00 : f32
    %17 = vector.broadcast %cst_9 : f32 to vector<16x16x8xf32>
    %18 = arith.select %15, %17, %16 : vector<16x16x8xi1>, vector<16x16x8xf32>
    %c15_i32 = arith.constant 15 : i32
    %19 = vector.broadcast %c15_i32 : i32 to vector<16x16x8xi32>
    %20 = arith.cmpi eq, %12, %19 : vector<16x16x8xi32>
    %c15_i32_10 = arith.constant 15 : i32
    %21 = tpu.dynamic_rotate %13 by %c15_i32_10 dim 1 : vector<16x16x8xf32>, i32 -> vector<16x16x8xf32>
    %cst_11 = arith.constant 0.000000e+00 : f32
    %22 = vector.broadcast %cst_11 : f32 to vector<16x16x8xf32>
    %23 = arith.select %20, %22, %21 : vector<16x16x8xi1>, vector<16x16x8xf32>
    %24 = vector.extract_strided_slice %11 {offsets = [1, 0, 0], sizes = [16, 16, 8], strides = [1, 1, 1]} : vector<18x16x8xf32> to vector<16x16x8xf32>
    %c0_i32_12 = arith.constant 0 : i32
    %25 = vector.broadcast %c0_i32_12 : i32 to vector<16x16x8xi32>
    %26 = arith.cmpi eq, %12, %25 : vector<16x16x8xi32>
    %c1_i32_13 = arith.constant 1 : i32
    %27 = tpu.dynamic_rotate %24 by %c1_i32_13 dim 1 : vector<16x16x8xf32>, i32 -> vector<16x16x8xf32>
    %cst_14 = arith.constant 0.000000e+00 : f32
    %28 = vector.broadcast %cst_14 : f32 to vector<16x16x8xf32>
    %29 = arith.select %26, %28, %27 : vector<16x16x8xi1>, vector<16x16x8xf32>
    %c15_i32_15 = arith.constant 15 : i32
    %30 = vector.broadcast %c15_i32_15 : i32 to vector<16x16x8xi32>
    %31 = arith.cmpi eq, %12, %30 : vector<16x16x8xi32>
    %c15_i32_16 = arith.constant 15 : i32
    %32 = tpu.dynamic_rotate %24 by %c15_i32_16 dim 1 : vector<16x16x8xf32>, i32 -> vector<16x16x8xf32>
    %cst_17 = arith.constant 0.000000e+00 : f32
    %33 = vector.broadcast %cst_17 : f32 to vector<16x16x8xf32>
    %34 = arith.select %31, %33, %32 : vector<16x16x8xi1>, vector<16x16x8xf32>
    %35 = vector.extract_strided_slice %11 {offsets = [2, 0, 0], sizes = [16, 16, 8], strides = [1, 1, 1]} : vector<18x16x8xf32> to vector<16x16x8xf32>
    %c0_i32_18 = arith.constant 0 : i32
    %36 = vector.broadcast %c0_i32_18 : i32 to vector<16x16x8xi32>
    %37 = arith.cmpi eq, %12, %36 : vector<16x16x8xi32>
    %c1_i32_19 = arith.constant 1 : i32
    %38 = tpu.dynamic_rotate %35 by %c1_i32_19 dim 1 : vector<16x16x8xf32>, i32 -> vector<16x16x8xf32>
    %cst_20 = arith.constant 0.000000e+00 : f32
    %39 = vector.broadcast %cst_20 : f32 to vector<16x16x8xf32>
    %40 = arith.select %37, %39, %38 : vector<16x16x8xi1>, vector<16x16x8xf32>
    %c15_i32_21 = arith.constant 15 : i32
    %41 = vector.broadcast %c15_i32_21 : i32 to vector<16x16x8xi32>
    %42 = arith.cmpi eq, %12, %41 : vector<16x16x8xi32>
    %c15_i32_22 = arith.constant 15 : i32
    %43 = tpu.dynamic_rotate %35 by %c15_i32_22 dim 1 : vector<16x16x8xf32>, i32 -> vector<16x16x8xf32>
    %cst_23 = arith.constant 0.000000e+00 : f32
    %44 = vector.broadcast %cst_23 : f32 to vector<16x16x8xf32>
    %45 = arith.select %42, %44, %43 : vector<16x16x8xi1>, vector<16x16x8xf32>
    %46 = tpu.concatenate %18, %13, %23, %29, %24, %34, %40, %35, %45 in 2 : vector<16x16x8xf32>, vector<16x16x8xf32>, vector<16x16x8xf32>, vector<16x16x8xf32>, vector<16x16x8xf32>, vector<16x16x8xf32>, vector<16x16x8xf32>, vector<16x16x8xf32>, vector<16x16x8xf32> -> vector<16x16x72xf32>
    %47 = vector.shape_cast %46 : vector<16x16x72xf32> to vector<256x72xf32>
    %c0_24 = arith.constant 0 : index
    %c0_25 = arith.constant 0 : index
    %48 = vector.load %arg4[%c0_24, %c0_25] : memref<72x8xf32, #tpu.memory_space<vmem>>, vector<72x8xf32>
    %cst_26 = arith.constant dense<0.000000e+00> : vector<256x8xf32>
    %49 = tpu.matmul %47, %48, %cst_26 {dimension_numbers = #tpu.dot_dimension_numbers<[1], [0], [0], [1], [0, 0, 1, 1], [], []>} : vector<256x72xf32>, vector<72x8xf32>, vector<256x8xf32> -> vector<256x8xf32>
    %c0_27 = arith.constant 0 : index
    %c0_28 = arith.constant 0 : index
    %50 = vector.load %arg5[%c0_27, %c0_28] : memref<1x8xf32, #tpu.memory_space<vmem>>, vector<1x8xf32>
    %51 = vector.broadcast %50 : vector<1x8xf32> to vector<256x8xf32>
    %52 = arith.addf %49, %51 : vector<256x8xf32>
    %cst_29 = arith.constant 0.000000e+00 : f32
    %53 = vector.broadcast %cst_29 : f32 to vector<256x8xf32>
    %54 = arith.maximumf %52, %53 : vector<256x8xf32>
    %c0_30 = arith.constant 0 : index
    %c0_31 = arith.constant 0 : index
    %55 = vector.load %arg6[%c0_30, %c0_31] : memref<8x32xf32, #tpu.memory_space<vmem>>, vector<8x32xf32>
    %cst_32 = arith.constant dense<0.000000e+00> : vector<256x32xf32>
    %56 = tpu.matmul %54, %55, %cst_32 {dimension_numbers = #tpu.dot_dimension_numbers<[1], [0], [0], [1], [0, 0, 1, 1], [], []>} : vector<256x8xf32>, vector<8x32xf32>, vector<256x32xf32> -> vector<256x32xf32>
    %c0_33 = arith.constant 0 : index
    %c0_34 = arith.constant 0 : index
    %57 = vector.load %arg7[%c0_33, %c0_34] : memref<1x32xf32, #tpu.memory_space<vmem>>, vector<1x32xf32>
    %58 = vector.broadcast %57 : vector<1x32xf32> to vector<256x32xf32>
    %59 = arith.addf %56, %58 : vector<256x32xf32>
    %cst_35 = arith.constant dense<0.000000e+00> : vector<32xf32>
    %60 = vector.multi_reduction <add>, %59, %cst_35 [0] : vector<256x32xf32> to vector<32xf32>
    %61 = vector.shape_cast %60 : vector<32xf32> to vector<1x32xf32>
    %cst_36 = arith.constant 2.560000e+02 : f32
    %62 = vector.broadcast %cst_36 : f32 to vector<1x32xf32>
    %63 = arith.divf %61, %62 : vector<1x32xf32>
    %c0_37 = arith.constant 0 : index
    %c0_38 = arith.constant 0 : index
    %64 = vector.load %arg8[%c0_37, %c0_38] : memref<32x2xf32, #tpu.memory_space<vmem>>, vector<32x2xf32>
    %cst_39 = arith.constant dense<0.000000e+00> : vector<1x2xf32>
    %65 = tpu.matmul %63, %64, %cst_39 {dimension_numbers = #tpu.dot_dimension_numbers<[1], [0], [0], [1], [0, 0, 1, 1], [], []>} : vector<1x32xf32>, vector<32x2xf32>, vector<1x2xf32> -> vector<1x2xf32>
    %cst_40 = arith.constant 0.000000e+00 : f32
    %66 = vector.broadcast %cst_40 : f32 to vector<1x2xf32>
    %67 = arith.maximumf %65, %66 : vector<1x2xf32>
    %c0_41 = arith.constant 0 : index
    %c0_42 = arith.constant 0 : index
    %68 = vector.load %arg9[%c0_41, %c0_42] : memref<2x32xf32, #tpu.memory_space<vmem>>, vector<2x32xf32>
    %cst_43 = arith.constant dense<0.000000e+00> : vector<1x32xf32>
    %69 = tpu.matmul %67, %68, %cst_43 {dimension_numbers = #tpu.dot_dimension_numbers<[1], [0], [0], [1], [0, 0, 1, 1], [], []>} : vector<1x2xf32>, vector<2x32xf32>, vector<1x32xf32> -> vector<1x32xf32>
    %70 = arith.negf %69 : vector<1x32xf32>
    %71 = math.exp %70 : vector<1x32xf32>
    %cst_44 = arith.constant 1.000000e+00 : f32
    %72 = vector.broadcast %cst_44 : f32 to vector<1x32xf32>
    %73 = arith.addf %72, %71 : vector<1x32xf32>
    %74 = arith.divf %72, %73 : vector<1x32xf32>
    %75 = vector.broadcast %74 : vector<1x32xf32> to vector<256x32xf32>
    %76 = arith.mulf %59, %75 : vector<256x32xf32>
    %c0_45 = arith.constant 0 : index
    %c0_46 = arith.constant 0 : index
    %c0_47 = arith.constant 0 : index
    %c0_48 = arith.constant 0 : index
    %77 = vector.load %arg1[%c0_45, %c0_46, %c0_47, %c0_48] : memref<1x16x16x16xf32, #tpu.memory_space<vmem>>, vector<1x16x16x16xf32>
    %78 = vector.shape_cast %77 : vector<1x16x16x16xf32> to vector<256x16xf32>
    %c0_49 = arith.constant 0 : index
    %c0_50 = arith.constant 0 : index
    %79 = vector.load %arg10[%c0_49, %c0_50] : memref<16x32xf32, #tpu.memory_space<vmem>>, vector<16x32xf32>
    %cst_51 = arith.constant dense<0.000000e+00> : vector<256x32xf32>
    %80 = tpu.matmul %78, %79, %cst_51 {dimension_numbers = #tpu.dot_dimension_numbers<[1], [0], [0], [1], [0, 0, 1, 1], [], []>} : vector<256x16xf32>, vector<16x32xf32>, vector<256x32xf32> -> vector<256x32xf32>
    %c0_52 = arith.constant 0 : index
    %c0_53 = arith.constant 0 : index
    %81 = vector.load %arg11[%c0_52, %c0_53] : memref<1x32xf32, #tpu.memory_space<vmem>>, vector<1x32xf32>
    %82 = vector.broadcast %81 : vector<1x32xf32> to vector<256x32xf32>
    %83 = arith.addf %80, %82 : vector<256x32xf32>
    %84 = arith.addf %76, %83 : vector<256x32xf32>
    %cst_54 = arith.constant 0.000000e+00 : f32
    %85 = vector.broadcast %cst_54 : f32 to vector<256x32xf32>
    %86 = arith.maximumf %84, %85 : vector<256x32xf32>
    %87 = vector.shape_cast %86 : vector<256x32xf32> to vector<1x16x16x32xf32>
    %c0_55 = arith.constant 0 : index
    %c0_56 = arith.constant 0 : index
    %c0_57 = arith.constant 0 : index
    %c0_58 = arith.constant 0 : index
    %88 = vector.load %arg12[%c0_55, %c0_56, %c0_57, %c0_58] : memref<1x16x16x32xf32, #tpu.memory_space<vmem>>, vector<1x16x16x32xf32>
    tpu.vector_store %arg12[%c0_55, %c0_56, %c0_57, %c0_58], %87 {strides = array<i32>} : memref<1x16x16x32xf32, #tpu.memory_space<vmem>>, vector<1x16x16x32xf32>,
    return
  }
  func.func @transform_0(%arg0: i32) -> (i32, i32, i32, i32) {
    %c0_i32 = arith.constant 0 : i32
    %c0_i32_0 = arith.constant 0 : i32
    %c0_i32_1 = arith.constant 0 : i32
    %c0_i32_2 = arith.constant 0 : i32
    return %arg0, %c0_i32, %c0_i32_0, %c0_i32_1 : i32, i32, i32, i32
  }
  func.func @transform_1(%arg0: i32) -> (i32, i32) {
    %c0_i32 = arith.constant 0 : i32
    %c0_i32_0 = arith.constant 0 : i32
    %c0_i32_1 = arith.constant 0 : i32
    return %c0_i32, %c0_i32_0 : i32, i32
  }
  func.func @transform_2(%arg0: i32) -> (i32, i32) {
    %c0_i32 = arith.constant 0 : i32
    %c0_i32_0 = arith.constant 0 : i32
    %c0_i32_1 = arith.constant 0 : i32
    return %c0_i32, %c0_i32_0 : i32, i32
  }
  func.func @transform_3(%arg0: i32) -> (i32, i32) {
    %c0_i32 = arith.constant 0 : i32
    %c0_i32_0 = arith.constant 0 : i32
    %c0_i32_1 = arith.constant 0 : i32
    return %c0_i32, %c0_i32_0 : i32, i32
  }
  func.func @transform_4(%arg0: i32) -> (i32, i32) {
    %c0_i32 = arith.constant 0 : i32
    %c0_i32_0 = arith.constant 0 : i32
    %c0_i32_1 = arith.constant 0 : i32
    return %c0_i32, %c0_i32_0 : i32, i32
  }
  func.func @transform_5(%arg0: i32) -> (i32, i32) {
    %c0_i32 = arith.constant 0 : i32
    %c0_i32_0 = arith.constant 0 : i32
    %c0_i32_1 = arith.constant 0 : i32
    return %c0_i32, %c0_i32_0 : i32, i32
  }
  func.func @transform_6(%arg0: i32) -> (i32, i32) {
    %c0_i32 = arith.constant 0 : i32
    %c0_i32_0 = arith.constant 0 : i32
    %c0_i32_1 = arith.constant 0 : i32
    return %c0_i32, %c0_i32_0 : i32, i32
  }
  func.func @transform_7(%arg0: i32) -> (i32, i32) {
    %c0_i32 = arith.constant 0 : i32
    %c0_i32_0 = arith.constant 0 : i32
    %c0_i32_1 = arith.constant 0 : i32
    return %c0_i32, %c0_i32_0 : i32, i32
  }
  func.func @transform_8(%arg0: i32) -> (i32, i32) {
    %c0_i32 = arith.constant 0 : i32
    %c0_i32_0 = arith.constant 0 : i32
    %c0_i32_1 = arith.constant 0 : i32
    return %c0_i32, %c0_i32_0 : i32, i32
  }
  func.func @transform_9(%arg0: i32) -> (i32, i32) {
    %c0_i32 = arith.constant 0 : i32
    %c0_i32_0 = arith.constant 0 : i32
    %c0_i32_1 = arith.constant 0 : i32
    return %c0_i32, %c0_i32_0 : i32, i32
  }
  func.func @transform_10(%arg0: i32) -> (i32, i32) {
    %c0_i32 = arith.constant 0 : i32
    %c0_i32_0 = arith.constant 0 : i32
    %c0_i32_1 = arith.constant 0 : i32
    return %c0_i32, %c0_i32_0 : i32, i32
  }
  func.func @transform_11(%arg0: i32) -> (i32, i32, i32, i32) {
    %c0_i32 = arith.constant 0 : i32
    %c0_i32_0 = arith.constant 0 : i32
    %c0_i32_1 = arith.constant 0 : i32
    %c0_i32_2 = arith.constant 0 : i32
    return %arg0, %c0_i32, %c0_i32_0, %c0_i32_1 : i32, i32, i32, i32
  }
}

</mosaic_0001>

<llo_original>
// kernel: tpu_custom_call.1
$region0: #{tpu_custom_call.1}
  #allocation0 [shape = 'u32[]', space=smem, size = 0x4, offset = 0x4, fixed_abs, tag = 'smem constant byte address 0x4 - core index']
  #allocation1 [shape = 'u32[144,128]{1,0:T(1,128)}', space=vmem, size = 0x12000, scoped, tag = 'internal scratch']
  %s0 = inlined_call_operand.hbm [shape: f32[2,16,16,16], index: 0, kind: input, shape index: {}]
  %s1 = inlined_call_operand.vmem [shape: f32[16,8], index: 1, kind: input, shape index: {}]
  %s2 = inlined_call_operand.vmem [shape: f32[1,8], index: 2, kind: input, shape index: {}]
  %s3 = inlined_call_operand.vmem [shape: f32[72,8], index: 3, kind: input, shape index: {}]
  %s4 = inlined_call_operand.vmem [shape: f32[1,8], index: 4, kind: input, shape index: {}]
  %s5 = inlined_call_operand.vmem [shape: f32[8,32], index: 5, kind: input, shape index: {}]
  %s6 = inlined_call_operand.vmem [shape: f32[1,32], index: 6, kind: input, shape index: {}]
  %s7 = inlined_call_operand.vmem [shape: f32[32,2], index: 7, kind: input, shape index: {}]
  %s8 = inlined_call_operand.vmem [shape: f32[2,32], index: 8, kind: input, shape index: {}]
  %s9 = inlined_call_operand.vmem [shape: f32[16,32], index: 9, kind: input, shape index: {}]
  %s10 = inlined_call_operand.vmem [shape: f32[1,32], index: 10, kind: input, shape index: {}]
  %s11 = inlined_call_operand.hbm [shape: f32[2,16,16,32], index: 11, kind: output, shape index: {}]
  %s12 = sld [smem:[#allocation0]]
  $region81: #{tpu_custom_call.1} parent=0
    _
  %s14 = ssub.s32 1, %s12
  %s15 = scalar_select 0, %s14, %s12
  $region1: #{tpu_custom_call.1} parent=0
    #allocation2 [shape = 'u8[262144]{0}', space=vmem, size = 0x40000, scoped, tag = 'input window, operand 0']
    #allocation3 [shape = 's32[2]{0}', space=sflag, size = 0x8, scoped, tag = 'scoped memory for tpu_custom_call.1']
    #allocation4 [shape = 's32[2]{0}', space=sflag, size = 0x8, scoped, tag = 'scoped memory for tpu_custom_call.1']
    #allocation5 [shape = 'u8[262144]{0}', space=vmem, size = 0x40000, scoped, tag = 'output window, operand 0']
    %16 = vsyncpa [#allocation3], 0
    %s17 = scalar_lea.sflag [#allocation3], 1
    %18 = vsyncpa %s17, 0
    %19 = vsyncpa [#allocation4], 0
    %s20 = scalar_lea.sflag [#allocation4], 1
    %21 = vsyncpa %s20, 0
    loop: start=0, step=1, limit=4
    $region2: #{tpu_custom_call.1} parent=1 // loop_pre_header
      _
    $region3: #{tpu_custom_call.1} parent=1 // loop_header
      %s23 = sphi 0, %s27
      %p24 = scmp.ge.s32.totalorder %s23, 4
      %s33 = sphi 0, %s35
      %s36 = sphi 0, %s33
      %s37 = sphi 0, %s36
      %s53 = sphi 0, %s37
      %s57 = sphi 0, %s57
      %s59 = sphi 0, %s57
      %s60 = sphi 0, %s59
      %s74 = sphi 0, %s60
      %s78 = sphi 0, %s78
      %s80 = sphi 0, %s78
      %s81 = sphi 0, %s80
      %s95 = sphi 0, %s81
      %s99 = sphi 0, %s99
      %s101 = sphi 0, %s99
      %s102 = sphi 0, %s101
      %s116 = sphi 0, %s102
      %s120 = sphi 0, %s120
      %s122 = sphi 0, %s120
      %s123 = sphi 0, %s122
      %s137 = sphi 0, %s123
      %s141 = sphi 0, %s141
      %s143 = sphi 0, %s141
      %s144 = sphi 0, %s143
      %s158 = sphi 0, %s144
      %s162 = sphi 0, %s162
      %s164 = sphi 0, %s162
      %s165 = sphi 0, %s164
      %s179 = sphi 0, %s165
      %s183 = sphi 0, %s183
      %s185 = sphi 0, %s183
      %s186 = sphi 0, %s185
      %s200 = sphi 0, %s186
      %s204 = sphi 0, %s204
      %s206 = sphi 0, %s204
      %s207 = sphi 0, %s206
      %s221 = sphi 0, %s207
      %s225 = sphi 0, %s225
      %s227 = sphi 0, %s225
      %s228 = sphi 0, %s227
      %s242 = sphi 0, %s228
      %s246 = sphi 0, %s246
      %s248 = sphi 0, %s246
      %s249 = sphi 0, %s248
      %s263 = sphi 0, %s249
      %s269 = sphi 0, %s271
      %s272 = sphi 0, %s269
      %s273 = sphi 0, %s272
      %s289 = sphi 0, %s273
    $region4: #{tpu_custom_call.1} parent=1 // loop_header_branch
      %26 = sbr.rel (%p24) target = $region8
    $region5: #{tpu_custom_call.1} parent=1 // loop_body
      %s28 = ssub.s32 %s23, 1
      %s29 = ssub.s32 %s23, 2
      %s30 = sadd.s32 %s23, 1
      %s31 = ssub.s32 %s23, %s30
      %p32 = scmp.eq.s32.totalorder %s31, 0
      %s34 = sadd.s32 %s33, 1
      %s35 = scalar_select %p32, %s33, %s34
      %p38 = pneg %p32
      %p39 = scmp.eq.s32.totalorder %s23, 1
      %p40 = por %p38, %p39
      %p41 = scmp.ne.s32.totalorder %s33, %s36
      %p42 = scmp.eq.s32.totalorder %s23, 0
      %p43 = por %p41, %p42
      %p44 = scmp.ne.s32.totalorder %s33, %s36
      %p45 = scmp.eq.s32.totalorder %s28, 1
      %p46 = por %p44, %p45
      %p47 = scmp.ne.s32.totalorder %s36, %s37
      %p48 = scmp.eq.s32.totalorder %s28, 0
      %p49 = por %p47, %p48
      %p50 = scmp.ne.s32.totalorder %s36, %s37
      %p51 = scmp.eq.s32.totalorder %s29, 1
      %p52 = por %p50, %p51
      %p54 = scmp.ne.s32.totalorder %s37, %s53
      %p55 = scmp.eq.s32.totalorder %s29, 0
      %p56 = por %p54, %p55
      %s58 = sadd.s32 %s57, 1
      %p61 = scmp.eq.s32.totalorder %s23, 1
      %p62 = scmp.ne.s32.totalorder %s57, %s59
      %p63 = scmp.eq.s32.totalorder %s23, 0
      %p64 = por %p62, %p63
      %p65 = scmp.ne.s32.totalorder %s57, %s59
      %p66 = scmp.eq.s32.totalorder %s28, 1
      %p67 = por %p65, %p66
      %p68 = scmp.ne.s32.totalorder %s59, %s60
      %p69 = scmp.eq.s32.totalorder %s28, 0
      %p70 = por %p68, %p69
      %p71 = scmp.ne.s32.totalorder %s59, %s60
      %p72 = scmp.eq.s32.totalorder %s29, 1
      %p73 = por %p71, %p72
      %p75 = scmp.ne.s32.totalorder %s60, %s74
      %p76 = scmp.eq.s32.totalorder %s29, 0
      %p77 = por %p75, %p76
      %s79 = sadd.s32 %s78, 1
      %p82 = scmp.eq.s32.totalorder %s23, 1
      %p83 = scmp.ne.s32.totalorder %s78, %s80
      %p84 = scmp.eq.s32.totalorder %s23, 0
      %p85 = por %p83, %p84
      %p86 = scmp.ne.s32.totalorder %s78, %s80
      %p87 = scmp.eq.s32.totalorder %s28, 1
      %p88 = por %p86, %p87
      %p89 = scmp.ne.s32.totalorder %s80, %s81
      %p90 = scmp.eq.s32.totalorder %s28, 0
      %p91 = por %p89, %p90
      %p92 = scmp.ne.s32.totalorder %s80, %s81
      %p93 = scmp.eq.s32.totalorder %s29, 1
      %p94 = por %p92, %p93
      %p96 = scmp.ne.s32.totalorder %s81, %s95
      %p97 = scmp.eq.s32.totalorder %s29, 0
      %p98 = por %p96, %p97
      %s100 = sadd.s32 %s99, 1
      %p103 = scmp.eq.s32.totalorder %s23, 1
      %p104 = scmp.ne.s32.totalorder %s99, %s101
      %p105 = scmp.eq.s32.totalorder %s23, 0
      %p106 = por %p104, %p105
      %p107 = scmp.ne.s32.totalorder %s99, %s101
      %p108 = scmp.eq.s32.totalorder %s28, 1
      %p109 = por %p107, %p108
      %p110 = scmp.ne.s32.totalorder %s101, %s102
      %p111 = scmp.eq.s32.totalorder %s28, 0
      %p112 = por %p110, %p111
      %p113 = scmp.ne.s32.totalorder %s101, %s102
      %p114 = scmp.eq.s32.totalorder %s29, 1
      %p115 = por %p113, %p114
      %p117 = scmp.ne.s32.totalorder %s102, %s116
      %p118 = scmp.eq.s32.totalorder %s29, 0
      %p119 = por %p117, %p118
      %s121 = sadd.s32 %s120, 1
      %p124 = scmp.eq.s32.totalorder %s23, 1
      %p125 = scmp.ne.s32.totalorder %s120, %s122
      %p126 = scmp.eq.s32.totalorder %s23, 0
      %p127 = por %p125, %p126
      %p128 = scmp.ne.s32.totalorder %s120, %s122
      %p129 = scmp.eq.s32.totalorder %s28, 1
      %p130 = por %p128, %p129
      %p131 = scmp.ne.s32.totalorder %s122, %s123
      %p132 = scmp.eq.s32.totalorder %s28, 0
      %p133 = por %p131, %p132
      %p134 = scmp.ne.s32.totalorder %s122, %s123
      %p135 = scmp.eq.s32.totalorder %s29, 1
      %p136 = por %p134, %p135
      %p138 = scmp.ne.s32.totalorder %s123, %s137
      %p139 = scmp.eq.s32.totalorder %s29, 0
      %p140 = por %p138, %p139
      %s142 = sadd.s32 %s141, 1
      %p145 = scmp.eq.s32.totalorder %s23, 1
      %p146 = scmp.ne.s32.totalorder %s141, %s143
      %p147 = scmp.eq.s32.totalorder %s23, 0
      %p148 = por %p146, %p147
      %p149 = scmp.ne.s32.totalorder %s141, %s143
      %p150 = scmp.eq.s32.totalorder %s28, 1
      %p151 = por %p149, %p150
      %p152 = scmp.ne.s32.totalorder %s143, %s144
      %p153 = scmp.eq.s32.totalorder %s28, 0
      %p154 = por %p152, %p153
      %p155 = scmp.ne.s32.totalorder %s143, %s144
      %p156 = scmp.eq.s32.totalorder %s29, 1
      %p157 = por %p155, %p156
      %p159 = scmp.ne.s32.totalorder %s144, %s158
      %p160 = scmp.eq.s32.totalorder %s29, 0
      %p161 = por %p159, %p160
      %s163 = sadd.s32 %s162, 1
      %p166 = scmp.eq.s32.totalorder %s23, 1
      %p167 = scmp.ne.s32.totalorder %s162, %s164
      %p168 = scmp.eq.s32.totalorder %s23, 0
      %p169 = por %p167, %p168
      %p170 = scmp.ne.s32.totalorder %s162, %s164
      %p171 = scmp.eq.s32.totalorder %s28, 1
      %p172 = por %p170, %p171
      %p173 = scmp.ne.s32.totalorder %s164, %s165
      %p174 = scmp.eq.s32.totalorder %s28, 0
      %p175 = por %p173, %p174
      %p176 = scmp.ne.s32.totalorder %s164, %s165
      %p177 = scmp.eq.s32.totalorder %s29, 1
      %p178 = por %p176, %p177
      %p180 = scmp.ne.s32.totalorder %s165, %s179
      %p181 = scmp.eq.s32.totalorder %s29, 0
      %p182 = por %p180, %p181
      %s184 = sadd.s32 %s183, 1
      %p187 = scmp.eq.s32.totalorder %s23, 1
      %p188 = scmp.ne.s32.totalorder %s183, %s185
      %p189 = scmp.eq.s32.totalorder %s23, 0
      %p190 = por %p188, %p189
      %p191 = scmp.ne.s32.totalorder %s183, %s185
      %p192 = scmp.eq.s32.totalorder %s28, 1
      %p193 = por %p191, %p192
      %p194 = scmp.ne.s32.totalorder %s185, %s186
      %p195 = scmp.eq.s32.totalorder %s28, 0
      %p196 = por %p194, %p195
      %p197 = scmp.ne.s32.totalorder %s185, %s186
      %p198 = scmp.eq.s32.totalorder %s29, 1
      %p199 = por %p197, %p198
      %p201 = scmp.ne.s32.totalorder %s186, %s200
      %p202 = scmp.eq.s32.totalorder %s29, 0
      %p203 = por %p201, %p202
      %s205 = sadd.s32 %s204, 1
      %p208 = scmp.eq.s32.totalorder %s23, 1
      %p209 = scmp.ne.s32.totalorder %s204, %s206
      %p210 = scmp.eq.s32.totalorder %s23, 0
      %p211 = por %p209, %p210
      %p212 = scmp.ne.s32.totalorder %s204, %s206
      %p213 = scmp.eq.s32.totalorder %s28, 1
      %p214 = por %p212, %p213
      %p215 = scmp.ne.s32.totalorder %s206, %s207
      %p216 = scmp.eq.s32.totalorder %s28, 0
      %p217 = por %p215, %p216
      %p218 = scmp.ne.s32.totalorder %s206, %s207
      %p219 = scmp.eq.s32.totalorder %s29, 1
      %p220 = por %p218, %p219
      %p222 = scmp.ne.s32.totalorder %s207, %s221
      %p223 = scmp.eq.s32.totalorder %s29, 0
      %p224 = por %p222, %p223
      %s226 = sadd.s32 %s225, 1
      %p229 = scmp.eq.s32.totalorder %s23, 1
      %p230 = scmp.ne.s32.totalorder %s225, %s227
      %p231 = scmp.eq.s32.totalorder %s23, 0
      %p232 = por %p230, %p231
      %p233 = scmp.ne.s32.totalorder %s225, %s227
      %p234 = scmp.eq.s32.totalorder %s28, 1
      %p235 = por %p233, %p234
      %p236 = scmp.ne.s32.totalorder %s227, %s228
      %p237 = scmp.eq.s32.totalorder %s28, 0
      %p238 = por %p236, %p237
      %p239 = scmp.ne.s32.totalorder %s227, %s228
      %p240 = scmp.eq.s32.totalorder %s29, 1
      %p241 = por %p239, %p240
      %p243 = scmp.ne.s32.totalorder %s228, %s242
      %p244 = scmp.eq.s32.totalorder %s29, 0
      %p245 = por %p243, %p244
      %s247 = sadd.s32 %s246, 1
      %p250 = scmp.eq.s32.totalorder %s23, 1
      %p251 = scmp.ne.s32.totalorder %s246, %s248
      %p252 = scmp.eq.s32.totalorder %s23, 0
      %p253 = por %p251, %p252
      %p254 = scmp.ne.s32.totalorder %s246, %s248
      %p255 = scmp.eq.s32.totalorder %s28, 1
      %p256 = por %p254, %p255
      %p257 = scmp.ne.s32.totalorder %s248, %s249
      %p258 = scmp.eq.s32.totalorder %s28, 0
      %p259 = por %p257, %p258
      %p260 = scmp.ne.s32.totalorder %s248, %s249
      %p261 = scmp.eq.s32.totalorder %s29, 1
      %p262 = por %p260, %p261
      %p264 = scmp.ne.s32.totalorder %s249, %s263
      %p265 = scmp.eq.s32.totalorder %s29, 0
      %p266 = por %p264, %p265
      %s267 = ssub.s32 %s23, %s30
      %p268 = scmp.eq.s32.totalorder %s267, 0
      %s270 = sadd.s32 %s269, 1
      %s271 = scalar_select %p268, %s269, %s270
      %p274 = pneg %p268
      %p275 = scmp.eq.s32.totalorder %s23, 1
      %p276 = por %p274, %p275
      %p277 = scmp.ne.s32.totalorder %s269, %s272
      %p278 = scmp.eq.s32.totalorder %s23, 0
      %p279 = por %p277, %p278
      %p280 = scmp.ne.s32.totalorder %s269, %s272
      %p281 = scmp.eq.s32.totalorder %s28, 1
      %p282 = por %p280, %p281
      %p283 = scmp.ne.s32.totalorder %s272, %s273
      %p284 = scmp.eq.s32.totalorder %s28, 0
      %p285 = por %p283, %p284
      %p286 = scmp.ne.s32.totalorder %s272, %s273
      %p287 = scmp.eq.s32.totalorder %s29, 1
      %p288 = por %p286, %p287
      %p290 = scmp.ne.s32.totalorder %s273, %s289
      %p291 = scmp.eq.s32.totalorder %s29, 0
      %p292 = por %p290, %p291
      %p293 = scmp.le.s32.totalorder 1, %s23
      %p294 = scmp.lt.s32.totalorder %s23, 3
      %p295 = pnand %p293, %p294
      %p296 = pneg %p295
      // Predicated region
      $region9: #{tpu_custom_call.1} parent=5 // pred_check
        _
      $region10: #{tpu_custom_call.1} parent=5 // pred_check_branch
        %298 = sbr.rel (%p295) target = $region12
      $region11: #{tpu_custom_call.1} parent=5 // pred_region
        %s299 = ssub.s32 %s23, 1
        // Predicated region
        $region13: #{tpu_custom_call.1} parent=11 // pred_check
          %p300 = pneg %p70
        $region14: #{tpu_custom_call.1} parent=11 // pred_check_branch
          %302 = sbr.rel (%p300) target = $region16
        $region15: #{tpu_custom_call.1} parent=11 // pred_region
          _
        $region16: #{tpu_custom_call.1} parent=11 // pred_fallthru
          _
        // Predicated region
        $region17: #{tpu_custom_call.1} parent=11 // pred_check
          %p303 = pneg %p91
        $region18: #{tpu_custom_call.1} parent=11 // pred_check_branch
          %305 = sbr.rel (%p303) target = $region20
        $region19: #{tpu_custom_call.1} parent=11 // pred_region
          _
        $region20: #{tpu_custom_call.1} parent=11 // pred_fallthru
          _
        // Predicated region
        $region21: #{tpu_custom_call.1} parent=11 // pred_check
          %p306 = pneg %p112
        $region22: #{tpu_custom_call.1} parent=11 // pred_check_branch
          %308 = sbr.rel (%p306) target = $region24
        $region23: #{tpu_custom_call.1} parent=11 // pred_region
          _
        $region24: #{tpu_custom_call.1} parent=11 // pred_fallthru
          _
        // Predicated region
        $region25: #{tpu_custom_call.1} parent=11 // pred_check
          %p309 = pneg %p133
        $region26: #{tpu_custom_call.1} parent=11 // pred_check_branch
          %311 = sbr.rel (%p309) target = $region28
        $region27: #{tpu_custom_call.1} parent=11 // pred_region
          _
        $region28: #{tpu_custom_call.1} parent=11 // pred_fallthru
          _
        // Predicated region
        $region29: #{tpu_custom_call.1} parent=11 // pred_check
          %p312 = pneg %p154
        $region30: #{tpu_custom_call.1} parent=11 // pred_check_branch
          %314 = sbr.rel (%p312) target = $region32
        $region31: #{tpu_custom_call.1} parent=11 // pred_region
          _
        $region32: #{tpu_custom_call.1} parent=11 // pred_fallthru
          _
        // Predicated region
        $region33: #{tpu_custom_call.1} parent=11 // pred_check
          %p315 = pneg %p175
        $region34: #{tpu_custom_call.1} parent=11 // pred_check_branch
          %317 = sbr.rel (%p315) target = $region36
        $region35: #{tpu_custom_call.1} parent=11 // pred_region
          _
        $region36: #{tpu_custom_call.1} parent=11 // pred_fallthru
          _
        // Predicated region
        $region37: #{tpu_custom_call.1} parent=11 // pred_check
          %p318 = pneg %p196
        $region38: #{tpu_custom_call.1} parent=11 // pred_check_branch
          %320 = sbr.rel (%p318) target = $region40
        $region39: #{tpu_custom_call.1} parent=11 // pred_region
          _
        $region40: #{tpu_custom_call.1} parent=11 // pred_fallthru
          _
        // Predicated region
        $region41: #{tpu_custom_call.1} parent=11 // pred_check
          %p321 = pneg %p217
        $region42: #{tpu_custom_call.1} parent=11 // pred_check_branch
          %323 = sbr.rel (%p321) target = $region44
        $region43: #{tpu_custom_call.1} parent=11 // pred_region
          _
        $region44: #{tpu_custom_call.1} parent=11 // pred_fallthru
          _
        // Predicated region
        $region45: #{tpu_custom_call.1} parent=11 // pred_check
          %p324 = pneg %p238
        $region46: #{tpu_custom_call.1} parent=11 // pred_check_branch
          %326 = sbr.rel (%p324) target = $region48
        $region47: #{tpu_custom_call.1} parent=11 // pred_region
          _
        $region48: #{tpu_custom_call.1} parent=11 // pred_fallthru
          _
        // Predicated region
        $region49: #{tpu_custom_call.1} parent=11 // pred_check
          %p327 = pneg %p259
        $region50: #{tpu_custom_call.1} parent=11 // pred_check_branch
          %329 = sbr.rel (%p327) target = $region52
        $region51: #{tpu_custom_call.1} parent=11 // pred_region
          _
        $region52: #{tpu_custom_call.1} parent=11 // pred_fallthru
          _
      $region12: #{tpu_custom_call.1} parent=5 // pred_fallthru
        _
      %p330 = scmp.lt.s32.totalorder %s23, 2
      // Predicated region
      $region53: #{tpu_custom_call.1} parent=5 // pred_check
        %p331 = pneg %p330
      $region54: #{tpu_custom_call.1} parent=5 // pred_check_branch
        %333 = sbr.rel (%p331) target = $region56
      $region55: #{tpu_custom_call.1} parent=5 // pred_region
        // Predicated region
        $region57: #{tpu_custom_call.1} parent=55 // pred_check
          %p334 = pneg %p43
        $region58: #{tpu_custom_call.1} parent=55 // pred_check_branch
          %336 = sbr.rel (%p334) target = $region60
        $region59: #{tpu_custom_call.1} parent=55 // pred_region
          %s337 = sand.u32 %s33, 1
          %s338 = scalar_lea.sflag [#allocation3], %s337
          %s339 = sand.u32 %s33, 1
          %s340 = smul.addr %s339, 256
          %s341 = scalar_lea.vmem [#allocation2], %s340
          %s343 = ssub.s32 4096, 4096
          %344 = vsyncadd %s338, %s343
          %s345 = smul.addr %s23, 32
          %s346 = smul.addr %s345, 128
          %s347 = scalar_lea.hbm %s0, %s346
          %s348 = sshll.u32 %s341, 4
          %s349 = int_to_ptr.vmem [resolvable:$true] %s348
          %354 = dma.hbm_to_vmem [thread:$0]  %s347, 4096, %s349, %s338, 128, 128, 8
        $region60: #{tpu_custom_call.1} parent=55 // pred_fallthru
          _
      $region56: #{tpu_custom_call.1} parent=5 // pred_fallthru
        _
      %p355 = scmp.le.s32.totalorder 1, %s23
      %p356 = scmp.lt.s32.totalorder %s23, 3
      %p357 = pnand %p355, %p356
      %p358 = pneg %p357
      // Predicated region
      $region61: #{tpu_custom_call.1} parent=5 // pred_check
        _
      $region62: #{tpu_custom_call.1} parent=5 // pred_check_branch
        %360 = sbr.rel (%p357) target = $region64
      $region63: #{tpu_custom_call.1} parent=5 // pred_region
        %s361 = ssub.s32 %s23, 1
        %s362 = sand.u32 %s36, 1
        %s363 = scalar_lea.sflag [#allocation3], %s362
        %s364 = sand.u32 %s36, 1
        %s365 = smul.addr %s364, 256
        %s366 = scalar_lea.vmem [#allocation2], %s365
        // Predicated region
        $region65: #{tpu_custom_call.1} parent=63 // pred_check
          %p367 = pneg %p49
        $region66: #{tpu_custom_call.1} parent=63 // pred_check_branch
          %369 = sbr.rel (%p367) target = $region68
        $region67: #{tpu_custom_call.1} parent=63 // pred_region
          %370 = dma.done %s363, 4096
        $region68: #{tpu_custom_call.1} parent=63 // pred_fallthru
          _
        %s371 = sand.u32 %s36, 1
        %s372 = scalar_lea.sflag [#allocation3], %s371
        %s373 = sand.u32 %s36, 1
        %s374 = smul.addr %s373, 256
        %s375 = scalar_lea.vmem [#allocation2], %s374
        %p376 = pneg %p49
        %p377 = pneg %p46
        %p378 = pneg %p70
        %p379 = pneg %p67
        %p380 = pneg %p91
        %p381 = pneg %p88
        %p382 = pneg %p112
        %p383 = pneg %p109
        %p384 = pneg %p133
        %p385 = pneg %p130
        %p386 = pneg %p154
        %p387 = pneg %p151
        %p388 = pneg %p175
        %p389 = pneg %p172
        %p390 = pneg %p196
        %p391 = pneg %p193
        %p392 = pneg %p217
        %p393 = pneg %p214
        %p394 = pneg %p238
        %p395 = pneg %p235
        %p396 = pneg %p259
        %p397 = pneg %p256
        %p398 = pneg %p285
        %p399 = pneg %p282
        %s400 = sand.u32 %s272, 1
        %s401 = scalar_lea.sflag [#allocation4], %s400
        %s402 = sand.u32 %s272, 1
        %s403 = smul.addr %s402, 256
        %s404 = scalar_lea.vmem [#allocation5], %s403
        %v405 = vld [vmem:[%s366] sm:$0xff]
        %v406 = vld [vmem:[%s366 + $0x8] sm:$0xff]
        %v407 = vld [vmem:[%s366 + $0x10] sm:$0xff]
        %v408 = vld [vmem:[%s366 + $0x18] sm:$0xff]
        %v409 = vld [vmem:[%s366 + $0x20] sm:$0xff]
        %v410 = vld [vmem:[%s366 + $0x28] sm:$0xff]
        %v411 = vld [vmem:[%s366 + $0x30] sm:$0xff]
        %v412 = vld [vmem:[%s366 + $0x38] sm:$0xff]
        %v413 = vld [vmem:[%s366 + $0x40] sm:$0xff]
        %v414 = vld [vmem:[%s366 + $0x48] sm:$0xff]
        %v415 = vld [vmem:[%s366 + $0x50] sm:$0xff]
        %v416 = vld [vmem:[%s366 + $0x58] sm:$0xff]
        %v417 = vld [vmem:[%s366 + $0x60] sm:$0xff]
        %v418 = vld [vmem:[%s366 + $0x68] sm:$0xff]
        %v419 = vld [vmem:[%s366 + $0x70] sm:$0xff]
        %v420 = vld [vmem:[%s366 + $0x78] sm:$0xff]
        %v421 = vld [vmem:[%s366 + $0x80] sm:$0xff]
        %v422 = vld [vmem:[%s366 + $0x88] sm:$0xff]
        %v423 = vld [vmem:[%s366 + $0x90] sm:$0xff]
        %v424 = vld [vmem:[%s366 + $0x98] sm:$0xff]
        %v425 = vld [vmem:[%s366 + $0xa0] sm:$0xff]
        %v426 = vld [vmem:[%s366 + $0xa8] sm:$0xff]
        %v427 = vld [vmem:[%s366 + $0xb0] sm:$0xff]
        %v428 = vld [vmem:[%s366 + $0xb8] sm:$0xff]
        %v429 = vld [vmem:[%s366 + $0xc0] sm:$0xff]
        %v430 = vld [vmem:[%s366 + $0xc8] sm:$0xff]
        %v431 = vld [vmem:[%s366 + $0xd0] sm:$0xff]
        %v432 = vld [vmem:[%s366 + $0xd8] sm:$0xff]
        %v433 = vld [vmem:[%s366 + $0xe0] sm:$0xff]
        %v434 = vld [vmem:[%s366 + $0xe8] sm:$0xff]
        %v435 = vld [vmem:[%s366 + $0xf0] sm:$0xff]
        %v436 = vld [vmem:[%s366 + $0xf8] sm:$0xff]
        %v437 = vld [vmem:[%s1] sm:$0xff]
        %v438 = vld [vmem:[%s1 + $0x8] sm:$0xff]
        %v439 = vld [vmem:[%s2] sm:$0x1]
        %v441 = vlaneseq
        %v442 = vshrl.u32 %v441, 7
        %v443 = vsub.s32 0, %v442
        %v444 = vrot.slane %v439, %v443
        %vm446 = vcmask 130048
        %v448 = vsel %vm446, %v405, 0
        %v451 = vsel %vm446, %v406, 0
        %v454 = vsel %vm446, %v407, 0
        %v457 = vsel %vm446, %v408, 0
        %v460 = vsel %vm446, %v409, 0
        %v463 = vsel %vm446, %v410, 0
        %v466 = vsel %vm446, %v411, 0
        %v469 = vsel %vm446, %v412, 0
        %v472 = vsel %vm446, %v413, 0
        %v475 = vsel %vm446, %v414, 0
        %v478 = vsel %vm446, %v415, 0
        %v481 = vsel %vm446, %v416, 0
        %v484 = vsel %vm446, %v417, 0
        %v487 = vsel %vm446, %v418, 0
        %v490 = vsel %vm446, %v419, 0
        %v493 = vsel %vm446, %v420, 0
        %v496 = vsel %vm446, %v421, 0
        %v499 = vsel %vm446, %v422, 0
        %v502 = vsel %vm446, %v423, 0
        %v505 = vsel %vm446, %v424, 0
        %v508 = vsel %vm446, %v425, 0
        %v511 = vsel %vm446, %v426, 0
        %v514 = vsel %vm446, %v427, 0
        %v517 = vsel %vm446, %v428, 0
        %v520 = vsel %vm446, %v429, 0
        %v523 = vsel %vm446, %v430, 0
        %v526 = vsel %vm446, %v431, 0
        %v529 = vsel %vm446, %v432, 0
        %v532 = vsel %vm446, %v433, 0
        %v535 = vsel %vm446, %v434, 0
        %v538 = vsel %vm446, %v435, 0
        %v541 = vsel %vm446, %v436, 0
        %543 = vmatprep.subr.mxu0 0.0
        %544 = vmatpush1.msra.mxu0 %v437
        %545 = vmatprep.subr.mxu0 0.0
        %546 = vmatpush1.msra.mxu0 %v438
        %547 = vmatprep.subr.mxu0 0.0
        %548 = vmatpush1.msra.mxu0 0.0
        %549 = vmatprep.subr.mxu0 0.0
        %550 = vmatpush1.msra.mxu0 0.0
        %551 = vmatprep.subr.mxu0 0.0
        %552 = vmatpush1.msra.mxu0 0.0
        %553 = vmatprep.subr.mxu0 0.0
        %554 = vmatpush1.msra.mxu0 0.0
        %555 = vmatprep.subr.mxu0 0.0
        %556 = vmatpush1.msra.mxu0 0.0
        %557 = vmatprep.subr.mxu0 0.0
        %558 = vmatpush1.msra.mxu0 0.0
        %559 = vmatprep.subr.mxu0 0.0
        %560 = vmatpush1.msra.mxu0 0.0
        %561 = vmatprep.subr.mxu0 0.0
        %562 = vmatpush1.msra.mxu0 0.0
        %563 = vmatprep.subr.mxu0 0.0
        %564 = vmatpush1.msra.mxu0 0.0
        %565 = vmatprep.subr.mxu0 0.0
        %566 = vmatpush1.msra.mxu0 0.0
        %567 = vmatprep.subr.mxu0 0.0
        %568 = vmatpush1.msra.mxu0 0.0
        %569 = vmatprep.subr.mxu0 0.0
        %570 = vmatpush1.msra.mxu0 0.0
        %571 = vmatprep.subr.mxu0 0.0
        %572 = vmatpush1.msra.mxu0 0.0
        %573 = vmatprep.subr.mxu0 0.0
        %574 = vmatpush1.msra.mxu0 0.0
        %575 = vmatprep.subr.mxu0 0.0
        %576 = vmatpush1.msra.mxu0 0.0
        %577 = vmatprep.subr.mxu0 0.0
        %578 = vmatpush1.msra.mxu0 0.0
        %579 = vmatprep.subr.mxu0 0.0
        %580 = vmatpush1.msra.mxu0 0.0
        %581 = vmatprep.subr.mxu0 0.0
        %582 = vmatpush1.msra.mxu0 0.0
        %583 = vmatprep.subr.mxu0 0.0
        %584 = vmatpush1.msra.mxu0 0.0
        %585 = vmatprep.subr.mxu0 0.0
        %586 = vmatpush1.msra.mxu0 0.0
        %587 = vmatprep.subr.mxu0 0.0
        %588 = vmatpush1.msra.mxu0 0.0
        %589 = vmatprep.subr.mxu0 0.0
        %590 = vmatpush1.msra.mxu0 0.0
        %591 = vmatprep.subr.mxu0 0.0
        %592 = vmatpush1.msra.mxu0 0.0
        %593 = vmatprep.subr.mxu0 0.0
        %594 = vmatpush1.msra.mxu0 0.0
        %595 = vmatprep.subr.mxu0 0.0
        %596 = vmatpush1.msra.mxu0 0.0
        %597 = vmatprep.subr.mxu0 0.0
        %598 = vmatpush1.msra.mxu0 0.0
        %599 = vmatprep.subr.mxu0 0.0
        %600 = vmatpush1.msra.mxu0 0.0
        %601 = vmatprep.subr.mxu0 0.0
        %602 = vmatpush1.msra.mxu0 0.0
        %603 = vmatprep.subr.mxu0 0.0
        %604 = vmatpush1.msra.mxu0 0.0
        %605 = vmatprep.subr.mxu0 0.0
        %606 = vmatpush1.msra.mxu0 0.0
        %607 = vmatprep.mubr.f32.mxu0 0.0
        %608 = vmatmul.mubr.f32.gmra.mrb[0].mxu0 %v448
        %v609 = vpop.f32.mrb[0].mxu0
        %v610 = vadd.f32 %v444, %v609
        %v611 = vpop.f32.mrb[0].mxu0
        %612 = vmatprep.mubr.f32.mxu0 0.0
        %613 = vmatmul.mubr.f32.gmra.mrb[0].mxu0 %v451
        %v614 = vpop.f32.mrb[0].mxu0
        %v615 = vadd.f32 %v444, %v614
        %v616 = vpop.f32.mrb[0].mxu0
        %617 = vmatprep.mubr.f32.mxu0 0.0
        %618 = vmatmul.mubr.f32.gmra.mrb[0].mxu0 %v454
        %v619 = vpop.f32.mrb[0].mxu0
        %v620 = vadd.f32 %v444, %v619
        %v621 = vpop.f32.mrb[0].mxu0
        %622 = vmatprep.mubr.f32.mxu0 0.0
        %623 = vmatmul.mubr.f32.gmra.mrb[0].mxu0 %v457
        %v624 = vpop.f32.mrb[0].mxu0
        %v625 = vadd.f32 %v444, %v624
        %v626 = vpop.f32.mrb[0].mxu0
        %627 = vmatprep.mubr.f32.mxu0 0.0
        %628 = vmatmul.mubr.f32.gmra.mrb[0].mxu0 %v460
        %v629 = vpop.f32.mrb[0].mxu0
        %v630 = vadd.f32 %v444, %v629
        %v631 = vpop.f32.mrb[0].mxu0
        %632 = vmatprep.mubr.f32.mxu0 0.0
        %633 = vmatmul.mubr.f32.gmra.mrb[0].mxu0 %v463
        %v634 = vpop.f32.mrb[0].mxu0
        %v635 = vadd.f32 %v444, %v634
        %v636 = vpop.f32.mrb[0].mxu0
        %637 = vmatprep.mubr.f32.mxu0 0.0
        %638 = vmatmul.mubr.f32.gmra.mrb[0].mxu0 %v466
        %v639 = vpop.f32.mrb[0].mxu0
        %v640 = vadd.f32 %v444, %v639
        %v641 = vpop.f32.mrb[0].mxu0
        %642 = vmatprep.mubr.f32.mxu0 0.0
        %643 = vmatmul.mubr.f32.gmra.mrb[0].mxu0 %v469
        %v644 = vpop.f32.mrb[0].mxu0
        %v645 = vadd.f32 %v444, %v644
        %v646 = vpop.f32.mrb[0].mxu0
        %647 = vmatprep.mubr.f32.mxu0 0.0
        %648 = vmatmul.mubr.f32.gmra.mrb[0].mxu0 %v472
        %v649 = vpop.f32.mrb[0].mxu0
        %v650 = vadd.f32 %v444, %v649
        %v651 = vpop.f32.mrb[0].mxu0
        %652 = vmatprep.mubr.f32.mxu0 0.0
        %653 = vmatmul.mubr.f32.gmra.mrb[0].mxu0 %v475
        %v654 = vpop.f32.mrb[0].mxu0
        %v655 = vadd.f32 %v444, %v654
        %v656 = vpop.f32.mrb[0].mxu0
        %657 = vmatprep.mubr.f32.mxu0 0.0
        %658 = vmatmul.mubr.f32.gmra.mrb[0].mxu0 %v478
        %v659 = vpop.f32.mrb[0].mxu0
        %v660 = vadd.f32 %v444, %v659
        %v661 = vpop.f32.mrb[0].mxu0
        %662 = vmatprep.mubr.f32.mxu0 0.0
        %663 = vmatmul.mubr.f32.gmra.mrb[0].mxu0 %v481
        %v664 = vpop.f32.mrb[0].mxu0
        %v665 = vadd.f32 %v444, %v664
        %v666 = vpop.f32.mrb[0].mxu0
        %667 = vmatprep.mubr.f32.mxu0 0.0
        %668 = vmatmul.mubr.f32.gmra.mrb[0].mxu0 %v484
        %v669 = vpop.f32.mrb[0].mxu0
        %v670 = vadd.f32 %v444, %v669
        %v671 = vpop.f32.mrb[0].mxu0
        %672 = vmatprep.mubr.f32.mxu0 0.0
        %673 = vmatmul.mubr.f32.gmra.mrb[0].mxu0 %v487
        %v674 = vpop.f32.mrb[0].mxu0
        %v675 = vadd.f32 %v444, %v674
        %v676 = vpop.f32.mrb[0].mxu0
        %677 = vmatprep.mubr.f32.mxu0 0.0
        %678 = vmatmul.mubr.f32.gmra.mrb[0].mxu0 %v490
        %v679 = vpop.f32.mrb[0].mxu0
        %v680 = vadd.f32 %v444, %v679
        %v681 = vpop.f32.mrb[0].mxu0
        %682 = vmatprep.mubr.f32.mxu0 0.0
        %683 = vmatmul.mubr.f32.gmra.mrb[0].mxu0 %v493
        %v684 = vpop.f32.mrb[0].mxu0
        %v685 = vadd.f32 %v444, %v684
        %v686 = vpop.f32.mrb[0].mxu0
        %687 = vmatprep.mubr.f32.mxu0 0.0
        %688 = vmatmul.mubr.f32.gmra.mrb[0].mxu0 %v496
        %v689 = vpop.f32.mrb[0].mxu0
        %v690 = vadd.f32 %v444, %v689
        %v691 = vpop.f32.mrb[0].mxu0
        %692 = vmatprep.mubr.f32.mxu0 0.0
        %693 = vmatmul.mubr.f32.gmra.mrb[0].mxu0 %v499
        %v694 = vpop.f32.mrb[0].mxu0
        %v695 = vadd.f32 %v444, %v694
        %v696 = vpop.f32.mrb[0].mxu0
        %697 = vmatprep.mubr.f32.mxu0 0.0
        %698 = vmatmul.mubr.f32.gmra.mrb[0].mxu0 %v502
        %v699 = vpop.f32.mrb[0].mxu0
        %v700 = vadd.f32 %v444, %v699
        %v701 = vpop.f32.mrb[0].mxu0
        %702 = vmatprep.mubr.f32.mxu0 0.0
        %703 = vmatmul.mubr.f32.gmra.mrb[0].mxu0 %v505
        %v704 = vpop.f32.mrb[0].mxu0
        %v705 = vadd.f32 %v444, %v704
        %v706 = vpop.f32.mrb[0].mxu0
        %707 = vmatprep.mubr.f32.mxu0 0.0
        %708 = vmatmul.mubr.f32.gmra.mrb[0].mxu0 %v508
        %v709 = vpop.f32.mrb[0].mxu0
        %v710 = vadd.f32 %v444, %v709
        %v711 = vpop.f32.mrb[0].mxu0
        %712 = vmatprep.mubr.f32.mxu0 0.0
        %713 = vmatmul.mubr.f32.gmra.mrb[0].mxu0 %v511
        %v714 = vpop.f32.mrb[0].mxu0
        %v715 = vadd.f32 %v444, %v714
        %v716 = vpop.f32.mrb[0].mxu0
        %717 = vmatprep.mubr.f32.mxu0 0.0
        %718 = vmatmul.mubr.f32.gmra.mrb[0].mxu0 %v514
        %v719 = vpop.f32.mrb[0].mxu0
        %v720 = vadd.f32 %v444, %v719
        %v721 = vpop.f32.mrb[0].mxu0
        %722 = vmatprep.mubr.f32.mxu0 0.0
        %723 = vmatmul.mubr.f32.gmra.mrb[0].mxu0 %v517
        %v724 = vpop.f32.mrb[0].mxu0
        %v725 = vadd.f32 %v444, %v724
        %v726 = vpop.f32.mrb[0].mxu0
        %727 = vmatprep.mubr.f32.mxu0 0.0
        %728 = vmatmul.mubr.f32.gmra.mrb[0].mxu0 %v520
        %v729 = vpop.f32.mrb[0].mxu0
        %v730 = vadd.f32 %v444, %v729
        %v731 = vpop.f32.mrb[0].mxu0
        %732 = vmatprep.mubr.f32.mxu0 0.0
        %733 = vmatmul.mubr.f32.gmra.mrb[0].mxu0 %v523
        %v734 = vpop.f32.mrb[0].mxu0
        %v735 = vadd.f32 %v444, %v734
        %v736 = vpop.f32.mrb[0].mxu0
        %737 = vmatprep.mubr.f32.mxu0 0.0
        %738 = vmatmul.mubr.f32.gmra.mrb[0].mxu0 %v526
        %v739 = vpop.f32.mrb[0].mxu0
        %v740 = vadd.f32 %v444, %v739
        %v741 = vpop.f32.mrb[0].mxu0
        %742 = vmatprep.mubr.f32.mxu0 0.0
        %743 = vmatmul.mubr.f32.gmra.mrb[0].mxu0 %v529
        %v744 = vpop.f32.mrb[0].mxu0
        %v745 = vadd.f32 %v444, %v744
        %v746 = vpop.f32.mrb[0].mxu0
        %747 = vmatprep.mubr.f32.mxu0 0.0
        %748 = vmatmul.mubr.f32.gmra.mrb[0].mxu0 %v532
        %v749 = vpop.f32.mrb[0].mxu0
        %v750 = vadd.f32 %v444, %v749
        %v751 = vpop.f32.mrb[0].mxu0
        %752 = vmatprep.mubr.f32.mxu0 0.0
        %753 = vmatmul.mubr.f32.gmra.mrb[0].mxu0 %v535
        %v754 = vpop.f32.mrb[0].mxu0
        %v755 = vadd.f32 %v444, %v754
        %v756 = vpop.f32.mrb[0].mxu0
        %757 = vmatprep.mubr.f32.mxu0 0.0
        %758 = vmatmul.mubr.f32.gmra.mrb[0].mxu0 %v538
        %v759 = vpop.f32.mrb[0].mxu0
        %v760 = vadd.f32 %v444, %v759
        %v761 = vpop.f32.mrb[0].mxu0
        %762 = vmatprep.mubr.f32.mxu0 0.0
        %763 = vmatmul.mubr.f32.gmra.mrb[0].mxu0 %v541
        %v764 = vpop.f32.mrb[0].mxu0
        %v765 = vadd.f32 %v444, %v764
        %v766 = vpop.f32.mrb[0].mxu0
        %767 = vdwg.mxu0
        %v768 = vmax.f32 %v610, 0.0
        %v769 = vmax.f32 %v615, 0.0
        %v770 = vmax.f32 %v620, 0.0
        %v771 = vmax.f32 %v625, 0.0
        %v772 = vmax.f32 %v630, 0.0
        %v773 = vmax.f32 %v635, 0.0
        %v774 = vmax.f32 %v640, 0.0
        %v775 = vmax.f32 %v645, 0.0
        %v776 = vmax.f32 %v650, 0.0
        %v777 = vmax.f32 %v655, 0.0
        %v778 = vmax.f32 %v660, 0.0
        %v779 = vmax.f32 %v665, 0.0
        %v780 = vmax.f32 %v670, 0.0
        %v781 = vmax.f32 %v675, 0.0
        %v782 = vmax.f32 %v680, 0.0
        %v783 = vmax.f32 %v685, 0.0
        %v784 = vmax.f32 %v690, 0.0
        %v785 = vmax.f32 %v695, 0.0
        %v786 = vmax.f32 %v700, 0.0
        %v787 = vmax.f32 %v705, 0.0
        %v788 = vmax.f32 %v710, 0.0
        %v789 = vmax.f32 %v715, 0.0
        %v790 = vmax.f32 %v720, 0.0
        %v791 = vmax.f32 %v725, 0.0
        %v792 = vmax.f32 %v730, 0.0
        %v793 = vmax.f32 %v735, 0.0
        %v794 = vmax.f32 %v740, 0.0
        %v795 = vmax.f32 %v745, 0.0
        %v796 = vmax.f32 %v750, 0.0
        %v797 = vmax.f32 %v755, 0.0
        %v798 = vmax.f32 %v760, 0.0
        %v799 = vmax.f32 %v765, 0.0
        %v800 = vlaneseq
        %v801 = vshrl.u32 %v800, 7
        %v802 = vadd.s32 %v801, 8
        %vm803 = vcmp.eq.s32.totalorder %v801, 0
        %vm804 = vcmp.eq.s32.totalorder %v802, 0
        %v805 = vrot.slane %v768, 7
        %v806 = vrot.slane %v770, 7
        %v807 = vrot.slane %v772, 7
        %v808 = vrot.slane %v774, 7
        %v809 = vrot.slane %v776, 7
        %v810 = vrot.slane %v778, 7
        %v811 = vrot.slane %v780, 7
        %v812 = vrot.slane %v782, 7
        %v813 = vrot.slane %v784, 7
        %v814 = vrot.slane %v786, 7
        %v815 = vrot.slane %v788, 7
        %v816 = vrot.slane %v790, 7
        %v817 = vrot.slane %v792, 7
        %v818 = vrot.slane %v794, 7
        %v819 = vrot.slane %v796, 7
        %v820 = vrot.slane %v769, 7
        %v821 = vrot.slane %v771, 7
        %v822 = vrot.slane %v773, 7
        %v823 = vrot.slane %v775, 7
        %v824 = vrot.slane %v777, 7
        %v825 = vrot.slane %v779, 7
        %v826 = vrot.slane %v781, 7
        %v827 = vrot.slane %v783, 7
        %v828 = vrot.slane %v785, 7
        %v829 = vrot.slane %v787, 7
        %v830 = vrot.slane %v789, 7
        %v831 = vrot.slane %v791, 7
        %v832 = vrot.slane %v793, 7
        %v833 = vrot.slane %v795, 7
        %v834 = vrot.slane %v797, 7
        %vm835 = vcmp.lt.s32.totalorder %v801, 1
        %v836 = vsel %vm835, %v805, %v820
        %v837 = vsel %vm835, %v806, %v821
        %v838 = vsel %vm835, %v807, %v822
        %v839 = vsel %vm835, %v808, %v823
        %v840 = vsel %vm835, %v809, %v824
        %v841 = vsel %vm835, %v810, %v825
        %v842 = vsel %vm835, %v811, %v826
        %v843 = vsel %vm835, %v812, %v827
        %v844 = vsel %vm835, %v813, %v828
        %v845 = vsel %vm835, %v814, %v829
        %v846 = vsel %vm835, %v815, %v830
        %v847 = vsel %vm835, %v816, %v831
        %v848 = vsel %vm835, %v817, %v832
        %v849 = vsel %vm835, %v818, %v833
        %v850 = vsel %vm835, %v819, %v834
        %v851 = vsel %vm835, %v820, %v805
        %v852 = vsel %vm835, %v821, %v806
        %v853 = vsel %vm835, %v822, %v807
        %v854 = vsel %vm835, %v823, %v808
        %v855 = vsel %vm835, %v824, %v809
        %v856 = vsel %vm835, %v825, %v810
        %v857 = vsel %vm835, %v826, %v811
        %v858 = vsel %vm835, %v827, %v812
        %v859 = vsel %vm835, %v828, %v813
        %v860 = vsel %vm835, %v829, %v814
        %v861 = vsel %vm835, %v830, %v815
        %v862 = vsel %vm835, %v831, %v816
        %v863 = vsel %vm835, %v832, %v817
        %v864 = vsel %vm835, %v833, %v818
        %v865 = vsel %vm835, %v834, %v819
        %v866 = vsel %vm803, 0.0, 0.0
        %v867 = vsel %vm804, 0.0, 0.0
        %v868 = vsel %vm803, 0.0, %v851
        %v869 = vsel %vm804, 0.0, %v836
        %v870 = vsel %vm803, 0.0, %v852
        %v871 = vsel %vm804, 0.0, %v837
        %v872 = vsel %vm803, 0.0, %v853
        %v873 = vsel %vm804, 0.0, %v838
        %v874 = vsel %vm803, 0.0, %v854
        %v875 = vsel %vm804, 0.0, %v839
        %v876 = vsel %vm803, 0.0, %v855
        %v877 = vsel %vm804, 0.0, %v840
        %v878 = vsel %vm803, 0.0, %v856
        %v879 = vsel %vm804, 0.0, %v841
        %v880 = vsel %vm803, 0.0, %v857
        %v881 = vsel %vm804, 0.0, %v842
        %v882 = vsel %vm803, 0.0, %v858
        %v883 = vsel %vm804, 0.0, %v843
        %v884 = vsel %vm803, 0.0, %v859
        %v885 = vsel %vm804, 0.0, %v844
        %v886 = vsel %vm803, 0.0, %v860
        %v887 = vsel %vm804, 0.0, %v845
        %v888 = vsel %vm803, 0.0, %v861
        %v889 = vsel %vm804, 0.0, %v846
        %v890 = vsel %vm803, 0.0, %v862
        %v891 = vsel %vm804, 0.0, %v847
        %v892 = vsel %vm803, 0.0, %v863
        %v893 = vsel %vm804, 0.0, %v848
        %v894 = vsel %vm803, 0.0, %v864
        %v895 = vsel %vm804, 0.0, %v849
        %v896 = vsel %vm803, 0.0, %v865
        %v897 = vsel %vm804, 0.0, %v850
        %vm898 = vcmp.eq.s32.totalorder %v801, 15
        %vm899 = vcmp.eq.s32.totalorder %v802, 15
        %v900 = vrot.slane %v768, 1
        %v901 = vrot.slane %v770, 1
        %v902 = vrot.slane %v772, 1
        %v903 = vrot.slane %v774, 1
        %v904 = vrot.slane %v776, 1
        %v905 = vrot.slane %v778, 1
        %v906 = vrot.slane %v780, 1
        %v907 = vrot.slane %v782, 1
        %v908 = vrot.slane %v784, 1
        %v909 = vrot.slane %v786, 1
        %v910 = vrot.slane %v788, 1
        %v911 = vrot.slane %v790, 1
        %v912 = vrot.slane %v792, 1
        %v913 = vrot.slane %v794, 1
        %v914 = vrot.slane %v796, 1
        %v915 = vrot.slane %v769, 1
        %v916 = vrot.slane %v771, 1
        %v917 = vrot.slane %v773, 1
        %v918 = vrot.slane %v775, 1
        %v919 = vrot.slane %v777, 1
        %v920 = vrot.slane %v779, 1
        %v921 = vrot.slane %v781, 1
        %v922 = vrot.slane %v783, 1
        %v923 = vrot.slane %v785, 1
        %v924 = vrot.slane %v787, 1
        %v925 = vrot.slane %v789, 1
        %v926 = vrot.slane %v791, 1
        %v927 = vrot.slane %v793, 1
        %v928 = vrot.slane %v795, 1
        %v929 = vrot.slane %v797, 1
        %vm930 = vcmp.lt.s32.totalorder %v801, 7
        %v931 = vsel %vm930, %v900, %v915
        %v932 = vsel %vm930, %v901, %v916
        %v933 = vsel %vm930, %v902, %v917
        %v934 = vsel %vm930, %v903, %v918
        %v935 = vsel %vm930, %v904, %v919
        %v936 = vsel %vm930, %v905, %v920
        %v937 = vsel %vm930, %v906, %v921
        %v938 = vsel %vm930, %v907, %v922
        %v939 = vsel %vm930, %v908, %v923
        %v940 = vsel %vm930, %v909, %v924
        %v941 = vsel %vm930, %v910, %v925
        %v942 = vsel %vm930, %v911, %v926
        %v943 = vsel %vm930, %v912, %v927
        %v944 = vsel %vm930, %v913, %v928
        %v945 = vsel %vm930, %v914, %v929
        %v946 = vsel %vm930, %v915, %v900
        %v947 = vsel %vm930, %v916, %v901
        %v948 = vsel %vm930, %v917, %v902
        %v949 = vsel %vm930, %v918, %v903
        %v950 = vsel %vm930, %v919, %v904
        %v951 = vsel %vm930, %v920, %v905
        %v952 = vsel %vm930, %v921, %v906
        %v953 = vsel %vm930, %v922, %v907
        %v954 = vsel %vm930, %v923, %v908
        %v955 = vsel %vm930, %v924, %v909
        %v956 = vsel %vm930, %v925, %v910
        %v957 = vsel %vm930, %v926, %v911
        %v958 = vsel %vm930, %v927, %v912
        %v959 = vsel %vm930, %v928, %v913
        %v960 = vsel %vm930, %v929, %v914
        %v961 = vsel %vm898, 0.0, 0.0
        %v962 = vsel %vm899, 0.0, 0.0
        %v963 = vsel %vm898, 0.0, %v931
        %v964 = vsel %vm899, 0.0, %v946
        %v965 = vsel %vm898, 0.0, %v932
        %v966 = vsel %vm899, 0.0, %v947
        %v967 = vsel %vm898, 0.0, %v933
        %v968 = vsel %vm899, 0.0, %v948
        %v969 = vsel %vm898, 0.0, %v934
        %v970 = vsel %vm899, 0.0, %v949
        %v971 = vsel %vm898, 0.0, %v935
        %v972 = vsel %vm899, 0.0, %v950
        %v973 = vsel %vm898, 0.0, %v936
        %v974 = vsel %vm899, 0.0, %v951
        %v975 = vsel %vm898, 0.0, %v937
        %v976 = vsel %vm899, 0.0, %v952
        %v977 = vsel %vm898, 0.0, %v938
        %v978 = vsel %vm899, 0.0, %v953
        %v979 = vsel %vm898, 0.0, %v939
        %v980 = vsel %vm899, 0.0, %v954
        %v981 = vsel %vm898, 0.0, %v940
        %v982 = vsel %vm899, 0.0, %v955
        %v983 = vsel %vm898, 0.0, %v941
        %v984 = vsel %vm899, 0.0, %v956
        %v985 = vsel %vm898, 0.0, %v942
        %v986 = vsel %vm899, 0.0, %v957
        %v987 = vsel %vm898, 0.0, %v943
        %v988 = vsel %vm899, 0.0, %v958
        %v989 = vsel %vm898, 0.0, %v944
        %v990 = vsel %vm899, 0.0, %v959
        %v991 = vsel %vm898, 0.0, %v945
        %v992 = vsel %vm899, 0.0, %v960
        %v993 = vrot.slane %v798, 7
        %v994 = vrot.slane %v799, 7
        %v995 = vsel %vm835, %v993, %v994
        %v996 = vsel %vm835, %v994, %v993
        %v997 = vsel %vm803, 0.0, %v996
        %v998 = vsel %vm804, 0.0, %v995
        %v999 = vrot.slane %v798, 1
        %v1000 = vrot.slane %v799, 1
        %v1001 = vsel %vm930, %v999, %v1000
        %v1002 = vsel %vm930, %v1000, %v999
        %v1003 = vsel %vm898, 0.0, %v1001
        %v1004 = vsel %vm899, 0.0, %v1002
        %1036 = vrot.lane.b32.xlu0 0.0, 8
        %v1037 = vpop.permute.xlu0 %1036
        %1038 = vrot.lane.b32.xlu0 %v768, 8
        %v1039 = vpop.permute.xlu0 %1038
        %1040 = vrot.lane.b32.xlu0 %v769, 8
        %v1041 = vpop.permute.xlu0 %1040
        %1042 = vrot.lane.b32.xlu0 %v770, 8
        %v1043 = vpop.permute.xlu0 %1042
        %1044 = vrot.lane.b32.xlu0 %v771, 8
        %v1045 = vpop.permute.xlu0 %1044
        %1046 = vrot.lane.b32.xlu0 %v772, 8
        %v1047 = vpop.permute.xlu0 %1046
        %1048 = vrot.lane.b32.xlu0 %v773, 8
        %v1049 = vpop.permute.xlu0 %1048
        %1050 = vrot.lane.b32.xlu0 %v774, 8
        %v1051 = vpop.permute.xlu0 %1050
        %1052 = vrot.lane.b32.xlu0 %v775, 8
        %v1053 = vpop.permute.xlu0 %1052
        %1054 = vrot.lane.b32.xlu0 %v776, 8
        %v1055 = vpop.permute.xlu0 %1054
        %1056 = vrot.lane.b32.xlu0 %v777, 8
        %v1057 = vpop.permute.xlu0 %1056
        %1058 = vrot.lane.b32.xlu0 %v778, 8
        %v1059 = vpop.permute.xlu0 %1058
        %1060 = vrot.lane.b32.xlu0 %v779, 8
        %v1061 = vpop.permute.xlu0 %1060
        %1062 = vrot.lane.b32.xlu0 %v780, 8
        %v1063 = vpop.permute.xlu0 %1062
        %1064 = vrot.lane.b32.xlu0 %v781, 8
        %v1065 = vpop.permute.xlu0 %1064
        %1066 = vrot.lane.b32.xlu0 %v782, 8
        %v1067 = vpop.permute.xlu0 %1066
        %1068 = vrot.lane.b32.xlu0 %v783, 8
        %v1069 = vpop.permute.xlu0 %1068
        %1070 = vrot.lane.b32.xlu0 %v784, 8
        %v1071 = vpop.permute.xlu0 %1070
        %1072 = vrot.lane.b32.xlu0 %v785, 8
        %v1073 = vpop.permute.xlu0 %1072
        %1074 = vrot.lane.b32.xlu0 %v786, 8
        %v1075 = vpop.permute.xlu0 %1074
        %1076 = vrot.lane.b32.xlu0 %v787, 8
        %v1077 = vpop.permute.xlu0 %1076
        %1078 = vrot.lane.b32.xlu0 %v788, 8
        %v1079 = vpop.permute.xlu0 %1078
        %1080 = vrot.lane.b32.xlu0 %v789, 8
        %v1081 = vpop.permute.xlu0 %1080
        %1082 = vrot.lane.b32.xlu0 %v790, 8
        %v1083 = vpop.permute.xlu0 %1082
        %1084 = vrot.lane.b32.xlu0 %v791, 8
        %v1085 = vpop.permute.xlu0 %1084
        %1086 = vrot.lane.b32.xlu0 %v792, 8
        %v1087 = vpop.permute.xlu0 %1086
        %1088 = vrot.lane.b32.xlu0 %v793, 8
        %v1089 = vpop.permute.xlu0 %1088
        %1090 = vrot.lane.b32.xlu0 %v794, 8
        %v1091 = vpop.permute.xlu0 %1090
        %1092 = vrot.lane.b32.xlu0 %v795, 8
        %v1093 = vpop.permute.xlu0 %1092
        %1094 = vrot.lane.b32.xlu0 %v796, 8
        %v1095 = vpop.permute.xlu0 %1094
        %1096 = vrot.lane.b32.xlu0 %v797, 8
        %v1097 = vpop.permute.xlu0 %1096
        %1161 = vrot.lane.b32.xlu0 %v961, 16
        %v1162 = vpop.permute.xlu0 %1161
        %1163 = vrot.lane.b32.xlu0 %v962, 16
        %v1164 = vpop.permute.xlu0 %1163
        %1165 = vrot.lane.b32.xlu0 %v963, 16
        %v1166 = vpop.permute.xlu0 %1165
        %1167 = vrot.lane.b32.xlu0 %v964, 16
        %v1168 = vpop.permute.xlu0 %1167
        %1169 = vrot.lane.b32.xlu0 %v965, 16
        %v1170 = vpop.permute.xlu0 %1169
        %1171 = vrot.lane.b32.xlu0 %v966, 16
        %v1172 = vpop.permute.xlu0 %1171
        %1173 = vrot.lane.b32.xlu0 %v967, 16
        %v1174 = vpop.permute.xlu0 %1173
        %1175 = vrot.lane.b32.xlu0 %v968, 16
        %v1176 = vpop.permute.xlu0 %1175
        %1177 = vrot.lane.b32.xlu0 %v969, 16
        %v1178 = vpop.permute.xlu0 %1177
        %1179 = vrot.lane.b32.xlu0 %v970, 16
        %v1180 = vpop.permute.xlu0 %1179
        %1181 = vrot.lane.b32.xlu0 %v971, 16
        %v1182 = vpop.permute.xlu0 %1181
        %1183 = vrot.lane.b32.xlu0 %v972, 16
        %v1184 = vpop.permute.xlu0 %1183
        %1185 = vrot.lane.b32.xlu0 %v973, 16
        %v1186 = vpop.permute.xlu0 %1185
        %1187 = vrot.lane.b32.xlu0 %v974, 16
        %v1188 = vpop.permute.xlu0 %1187
        %1189 = vrot.lane.b32.xlu0 %v975, 16
        %v1190 = vpop.permute.xlu0 %1189
        %1191 = vrot.lane.b32.xlu0 %v976, 16
        %v1192 = vpop.permute.xlu0 %1191
        %1193 = vrot.lane.b32.xlu0 %v977, 16
        %v1194 = vpop.permute.xlu0 %1193
        %1195 = vrot.lane.b32.xlu0 %v978, 16
        %v1196 = vpop.permute.xlu0 %1195
        %1197 = vrot.lane.b32.xlu0 %v979, 16
        %v1198 = vpop.permute.xlu0 %1197
        %1199 = vrot.lane.b32.xlu0 %v980, 16
        %v1200 = vpop.permute.xlu0 %1199
        %1201 = vrot.lane.b32.xlu0 %v981, 16
        %v1202 = vpop.permute.xlu0 %1201
        %1203 = vrot.lane.b32.xlu0 %v982, 16
        %v1204 = vpop.permute.xlu0 %1203
        %1205 = vrot.lane.b32.xlu0 %v983, 16
        %v1206 = vpop.permute.xlu0 %1205
        %1207 = vrot.lane.b32.xlu0 %v984, 16
        %v1208 = vpop.permute.xlu0 %1207
        %1209 = vrot.lane.b32.xlu0 %v985, 16
        %v1210 = vpop.permute.xlu0 %1209
        %1211 = vrot.lane.b32.xlu0 %v986, 16
        %v1212 = vpop.permute.xlu0 %1211
        %1213 = vrot.lane.b32.xlu0 %v987, 16
        %v1214 = vpop.permute.xlu0 %1213
        %1215 = vrot.lane.b32.xlu0 %v988, 16
        %v1216 = vpop.permute.xlu0 %1215
        %1217 = vrot.lane.b32.xlu0 %v989, 16
        %v1218 = vpop.permute.xlu0 %1217
        %1219 = vrot.lane.b32.xlu0 %v990, 16
        %v1220 = vpop.permute.xlu0 %1219
        %1221 = vrot.lane.b32.xlu0 %v991, 16
        %v1222 = vpop.permute.xlu0 %1221
        %1223 = vrot.lane.b32.xlu0 %v992, 16
        %v1224 = vpop.permute.xlu0 %1223
        %1289 = vrot.lane.b32.xlu0 %v868, 24
        %v1290 = vpop.permute.xlu0 %1289
        %1291 = vrot.lane.b32.xlu0 %v869, 24
        %v1292 = vpop.permute.xlu0 %1291
        %1293 = vrot.lane.b32.xlu0 %v870, 24
        %v1294 = vpop.permute.xlu0 %1293
        %1295 = vrot.lane.b32.xlu0 %v871, 24
        %v1296 = vpop.permute.xlu0 %1295
        %1297 = vrot.lane.b32.xlu0 %v872, 24
        %v1298 = vpop.permute.xlu0 %1297
        %1299 = vrot.lane.b32.xlu0 %v873, 24
        %v1300 = vpop.permute.xlu0 %1299
        %1301 = vrot.lane.b32.xlu0 %v874, 24
        %v1302 = vpop.permute.xlu0 %1301
        %1303 = vrot.lane.b32.xlu0 %v875, 24
        %v1304 = vpop.permute.xlu0 %1303
        %1305 = vrot.lane.b32.xlu0 %v876, 24
        %v1306 = vpop.permute.xlu0 %1305
        %1307 = vrot.lane.b32.xlu0 %v877, 24
        %v1308 = vpop.permute.xlu0 %1307
        %1309 = vrot.lane.b32.xlu0 %v878, 24
        %v1310 = vpop.permute.xlu0 %1309
        %1311 = vrot.lane.b32.xlu0 %v879, 24
        %v1312 = vpop.permute.xlu0 %1311
        %1313 = vrot.lane.b32.xlu0 %v880, 24
        %v1314 = vpop.permute.xlu0 %1313
        %1315 = vrot.lane.b32.xlu0 %v881, 24
        %v1316 = vpop.permute.xlu0 %1315
        %1317 = vrot.lane.b32.xlu0 %v882, 24
        %v1318 = vpop.permute.xlu0 %1317
        %1319 = vrot.lane.b32.xlu0 %v883, 24
        %v1320 = vpop.permute.xlu0 %1319
        %1321 = vrot.lane.b32.xlu0 %v884, 24
        %v1322 = vpop.permute.xlu0 %1321
        %1323 = vrot.lane.b32.xlu0 %v885, 24
        %v1324 = vpop.permute.xlu0 %1323
        %1325 = vrot.lane.b32.xlu0 %v886, 24
        %v1326 = vpop.permute.xlu0 %1325
        %1327 = vrot.lane.b32.xlu0 %v887, 24
        %v1328 = vpop.permute.xlu0 %1327
        %1329 = vrot.lane.b32.xlu0 %v888, 24
        %v1330 = vpop.permute.xlu0 %1329
        %1331 = vrot.lane.b32.xlu0 %v889, 24
        %v1332 = vpop.permute.xlu0 %1331
        %1333 = vrot.lane.b32.xlu0 %v890, 24
        %v1334 = vpop.permute.xlu0 %1333
        %1335 = vrot.lane.b32.xlu0 %v891, 24
        %v1336 = vpop.permute.xlu0 %1335
        %1337 = vrot.lane.b32.xlu0 %v892, 24
        %v1338 = vpop.permute.xlu0 %1337
        %1339 = vrot.lane.b32.xlu0 %v893, 24
        %v1340 = vpop.permute.xlu0 %1339
        %1341 = vrot.lane.b32.xlu0 %v894, 24
        %v1342 = vpop.permute.xlu0 %1341
        %1343 = vrot.lane.b32.xlu0 %v895, 24
        %v1344 = vpop.permute.xlu0 %1343
        %1345 = vrot.lane.b32.xlu0 %v896, 24
        %v1346 = vpop.permute.xlu0 %1345
        %1347 = vrot.lane.b32.xlu0 %v897, 24
        %v1348 = vpop.permute.xlu0 %1347
        %1349 = vrot.lane.b32.xlu0 %v997, 24
        %v1350 = vpop.permute.xlu0 %1349
        %1351 = vrot.lane.b32.xlu0 %v998, 24
        %v1352 = vpop.permute.xlu0 %1351
        %1387 = vrot.lane.b32.xlu0 %v768, 32
        %v1388 = vpop.permute.xlu0 %1387
        %1389 = vrot.lane.b32.xlu0 %v769, 32
        %v1390 = vpop.permute.xlu0 %1389
        %1391 = vrot.lane.b32.xlu0 %v770, 32
        %v1392 = vpop.permute.xlu0 %1391
        %1393 = vrot.lane.b32.xlu0 %v771, 32
        %v1394 = vpop.permute.xlu0 %1393
        %1395 = vrot.lane.b32.xlu0 %v772, 32
        %v1396 = vpop.permute.xlu0 %1395
        %1397 = vrot.lane.b32.xlu0 %v773, 32
        %v1398 = vpop.permute.xlu0 %1397
        %1399 = vrot.lane.b32.xlu0 %v774, 32
        %v1400 = vpop.permute.xlu0 %1399
        %1401 = vrot.lane.b32.xlu0 %v775, 32
        %v1402 = vpop.permute.xlu0 %1401
        %1403 = vrot.lane.b32.xlu0 %v776, 32
        %v1404 = vpop.permute.xlu0 %1403
        %1405 = vrot.lane.b32.xlu0 %v777, 32
        %v1406 = vpop.permute.xlu0 %1405
        %1407 = vrot.lane.b32.xlu0 %v778, 32
        %v1408 = vpop.permute.xlu0 %1407
        %1409 = vrot.lane.b32.xlu0 %v779, 32
        %v1410 = vpop.permute.xlu0 %1409
        %1411 = vrot.lane.b32.xlu0 %v780, 32
        %v1412 = vpop.permute.xlu0 %1411
        %1413 = vrot.lane.b32.xlu0 %v781, 32
        %v1414 = vpop.permute.xlu0 %1413
        %1415 = vrot.lane.b32.xlu0 %v782, 32
        %v1416 = vpop.permute.xlu0 %1415
        %1417 = vrot.lane.b32.xlu0 %v783, 32
        %v1418 = vpop.permute.xlu0 %1417
        %1419 = vrot.lane.b32.xlu0 %v784, 32
        %v1420 = vpop.permute.xlu0 %1419
        %1421 = vrot.lane.b32.xlu0 %v785, 32
        %v1422 = vpop.permute.xlu0 %1421
        %1423 = vrot.lane.b32.xlu0 %v786, 32
        %v1424 = vpop.permute.xlu0 %1423
        %1425 = vrot.lane.b32.xlu0 %v787, 32
        %v1426 = vpop.permute.xlu0 %1425
        %1427 = vrot.lane.b32.xlu0 %v788, 32
        %v1428 = vpop.permute.xlu0 %1427
        %1429 = vrot.lane.b32.xlu0 %v789, 32
        %v1430 = vpop.permute.xlu0 %1429
        %1431 = vrot.lane.b32.xlu0 %v790, 32
        %v1432 = vpop.permute.xlu0 %1431
        %1433 = vrot.lane.b32.xlu0 %v791, 32
        %v1434 = vpop.permute.xlu0 %1433
        %1435 = vrot.lane.b32.xlu0 %v792, 32
        %v1436 = vpop.permute.xlu0 %1435
        %1437 = vrot.lane.b32.xlu0 %v793, 32
        %v1438 = vpop.permute.xlu0 %1437
        %1439 = vrot.lane.b32.xlu0 %v794, 32
        %v1440 = vpop.permute.xlu0 %1439
        %1441 = vrot.lane.b32.xlu0 %v795, 32
        %v1442 = vpop.permute.xlu0 %1441
        %1443 = vrot.lane.b32.xlu0 %v796, 32
        %v1444 = vpop.permute.xlu0 %1443
        %1445 = vrot.lane.b32.xlu0 %v797, 32
        %v1446 = vpop.permute.xlu0 %1445
        %1447 = vrot.lane.b32.xlu0 %v798, 32
        %v1448 = vpop.permute.xlu0 %1447
        %1449 = vrot.lane.b32.xlu0 %v799, 32
        %v1450 = vpop.permute.xlu0 %1449
        %1485 = vrot.lane.b32.xlu0 %v963, 40
        %v1486 = vpop.permute.xlu0 %1485
        %1487 = vrot.lane.b32.xlu0 %v964, 40
        %v1488 = vpop.permute.xlu0 %1487
        %1489 = vrot.lane.b32.xlu0 %v965, 40
        %v1490 = vpop.permute.xlu0 %1489
        %1491 = vrot.lane.b32.xlu0 %v966, 40
        %v1492 = vpop.permute.xlu0 %1491
        %1493 = vrot.lane.b32.xlu0 %v967, 40
        %v1494 = vpop.permute.xlu0 %1493
        %1495 = vrot.lane.b32.xlu0 %v968, 40
        %v1496 = vpop.permute.xlu0 %1495
        %1497 = vrot.lane.b32.xlu0 %v969, 40
        %v1498 = vpop.permute.xlu0 %1497
        %1499 = vrot.lane.b32.xlu0 %v970, 40
        %v1500 = vpop.permute.xlu0 %1499
        %1501 = vrot.lane.b32.xlu0 %v971, 40
        %v1502 = vpop.permute.xlu0 %1501
        %1503 = vrot.lane.b32.xlu0 %v972, 40
        %v1504 = vpop.permute.xlu0 %1503
        %1505 = vrot.lane.b32.xlu0 %v973, 40
        %v1506 = vpop.permute.xlu0 %1505
        %1507 = vrot.lane.b32.xlu0 %v974, 40
        %v1508 = vpop.permute.xlu0 %1507
        %1509 = vrot.lane.b32.xlu0 %v975, 40
        %v1510 = vpop.permute.xlu0 %1509
        %1511 = vrot.lane.b32.xlu0 %v976, 40
        %v1512 = vpop.permute.xlu0 %1511
        %1513 = vrot.lane.b32.xlu0 %v977, 40
        %v1514 = vpop.permute.xlu0 %1513
        %1515 = vrot.lane.b32.xlu0 %v978, 40
        %v1516 = vpop.permute.xlu0 %1515
        %1517 = vrot.lane.b32.xlu0 %v979, 40
        %v1518 = vpop.permute.xlu0 %1517
        %1519 = vrot.lane.b32.xlu0 %v980, 40
        %v1520 = vpop.permute.xlu0 %1519
        %1521 = vrot.lane.b32.xlu0 %v981, 40
        %v1522 = vpop.permute.xlu0 %1521
        %1523 = vrot.lane.b32.xlu0 %v982, 40
        %v1524 = vpop.permute.xlu0 %1523
        %1525 = vrot.lane.b32.xlu0 %v983, 40
        %v1526 = vpop.permute.xlu0 %1525
        %1527 = vrot.lane.b32.xlu0 %v984, 40
        %v1528 = vpop.permute.xlu0 %1527
        %1529 = vrot.lane.b32.xlu0 %v985, 40
        %v1530 = vpop.permute.xlu0 %1529
        %1531 = vrot.lane.b32.xlu0 %v986, 40
        %v1532 = vpop.permute.xlu0 %1531
        %1533 = vrot.lane.b32.xlu0 %v987, 40
        %v1534 = vpop.permute.xlu0 %1533
        %1535 = vrot.lane.b32.xlu0 %v988, 40
        %v1536 = vpop.permute.xlu0 %1535
        %1537 = vrot.lane.b32.xlu0 %v989, 40
        %v1538 = vpop.permute.xlu0 %1537
        %1539 = vrot.lane.b32.xlu0 %v990, 40
        %v1540 = vpop.permute.xlu0 %1539
        %1541 = vrot.lane.b32.xlu0 %v991, 40
        %v1542 = vpop.permute.xlu0 %1541
        %1543 = vrot.lane.b32.xlu0 %v992, 40
        %v1544 = vpop.permute.xlu0 %1543
        %1545 = vrot.lane.b32.xlu0 %v1003, 40
        %v1546 = vpop.permute.xlu0 %1545
        %1547 = vrot.lane.b32.xlu0 %v1004, 40
        %v1548 = vpop.permute.xlu0 %1547
        %1583 = vrot.lane.b32.xlu0 %v870, 48
        %v1584 = vpop.permute.xlu0 %1583
        %1585 = vrot.lane.b32.xlu0 %v871, 48
        %v1586 = vpop.permute.xlu0 %1585
        %1587 = vrot.lane.b32.xlu0 %v872, 48
        %v1588 = vpop.permute.xlu0 %1587
        %1589 = vrot.lane.b32.xlu0 %v873, 48
        %v1590 = vpop.permute.xlu0 %1589
        %1591 = vrot.lane.b32.xlu0 %v874, 48
        %v1592 = vpop.permute.xlu0 %1591
        %1593 = vrot.lane.b32.xlu0 %v875, 48
        %v1594 = vpop.permute.xlu0 %1593
        %1595 = vrot.lane.b32.xlu0 %v876, 48
        %v1596 = vpop.permute.xlu0 %1595
        %1597 = vrot.lane.b32.xlu0 %v877, 48
        %v1598 = vpop.permute.xlu0 %1597
        %1599 = vrot.lane.b32.xlu0 %v878, 48
        %v1600 = vpop.permute.xlu0 %1599
        %1601 = vrot.lane.b32.xlu0 %v879, 48
        %v1602 = vpop.permute.xlu0 %1601
        %1603 = vrot.lane.b32.xlu0 %v880, 48
        %v1604 = vpop.permute.xlu0 %1603
        %1605 = vrot.lane.b32.xlu0 %v881, 48
        %v1606 = vpop.permute.xlu0 %1605
        %1607 = vrot.lane.b32.xlu0 %v882, 48
        %v1608 = vpop.permute.xlu0 %1607
        %1609 = vrot.lane.b32.xlu0 %v883, 48
        %v1610 = vpop.permute.xlu0 %1609
        %1611 = vrot.lane.b32.xlu0 %v884, 48
        %v1612 = vpop.permute.xlu0 %1611
        %1613 = vrot.lane.b32.xlu0 %v885, 48
        %v1614 = vpop.permute.xlu0 %1613
        %1615 = vrot.lane.b32.xlu0 %v886, 48
        %v1616 = vpop.permute.xlu0 %1615
        %1617 = vrot.lane.b32.xlu0 %v887, 48
        %v1618 = vpop.permute.xlu0 %1617
        %1619 = vrot.lane.b32.xlu0 %v888, 48
        %v1620 = vpop.permute.xlu0 %1619
        %1621 = vrot.lane.b32.xlu0 %v889, 48
        %v1622 = vpop.permute.xlu0 %1621
        %1623 = vrot.lane.b32.xlu0 %v890, 48
        %v1624 = vpop.permute.xlu0 %1623
        %1625 = vrot.lane.b32.xlu0 %v891, 48
        %v1626 = vpop.permute.xlu0 %1625
        %1627 = vrot.lane.b32.xlu0 %v892, 48
        %v1628 = vpop.permute.xlu0 %1627
        %1629 = vrot.lane.b32.xlu0 %v893, 48
        %v1630 = vpop.permute.xlu0 %1629
        %1631 = vrot.lane.b32.xlu0 %v894, 48
        %v1632 = vpop.permute.xlu0 %1631
        %1633 = vrot.lane.b32.xlu0 %v895, 48
        %v1634 = vpop.permute.xlu0 %1633
        %1635 = vrot.lane.b32.xlu0 %v896, 48
        %v1636 = vpop.permute.xlu0 %1635
        %1637 = vrot.lane.b32.xlu0 %v897, 48
        %v1638 = vpop.permute.xlu0 %1637
        %1639 = vrot.lane.b32.xlu0 %v997, 48
        %v1640 = vpop.permute.xlu0 %1639
        %1641 = vrot.lane.b32.xlu0 %v998, 48
        %v1642 = vpop.permute.xlu0 %1641
        %1643 = vrot.lane.b32.xlu0 %v866, 48
        %v1644 = vpop.permute.xlu0 %1643
        %1645 = vrot.lane.b32.xlu0 %v867, 48
        %v1646 = vpop.permute.xlu0 %1645
        %1679 = vrot.lane.b32.xlu0 %v770, 56
        %v1680 = vpop.permute.xlu0 %1679
        %1681 = vrot.lane.b32.xlu0 %v771, 56
        %v1682 = vpop.permute.xlu0 %1681
        %1683 = vrot.lane.b32.xlu0 %v772, 56
        %v1684 = vpop.permute.xlu0 %1683
        %1685 = vrot.lane.b32.xlu0 %v773, 56
        %v1686 = vpop.permute.xlu0 %1685
        %1687 = vrot.lane.b32.xlu0 %v774, 56
        %v1688 = vpop.permute.xlu0 %1687
        %1689 = vrot.lane.b32.xlu0 %v775, 56
        %v1690 = vpop.permute.xlu0 %1689
        %1691 = vrot.lane.b32.xlu0 %v776, 56
        %v1692 = vpop.permute.xlu0 %1691
        %1693 = vrot.lane.b32.xlu0 %v777, 56
        %v1694 = vpop.permute.xlu0 %1693
        %1695 = vrot.lane.b32.xlu0 %v778, 56
        %v1696 = vpop.permute.xlu0 %1695
        %1697 = vrot.lane.b32.xlu0 %v779, 56
        %v1698 = vpop.permute.xlu0 %1697
        %1699 = vrot.lane.b32.xlu0 %v780, 56
        %v1700 = vpop.permute.xlu0 %1699
        %1701 = vrot.lane.b32.xlu0 %v781, 56
        %v1702 = vpop.permute.xlu0 %1701
        %1703 = vrot.lane.b32.xlu0 %v782, 56
        %v1704 = vpop.permute.xlu0 %1703
        %1705 = vrot.lane.b32.xlu0 %v783, 56
        %v1706 = vpop.permute.xlu0 %1705
        %1707 = vrot.lane.b32.xlu0 %v784, 56
        %v1708 = vpop.permute.xlu0 %1707
        %1709 = vrot.lane.b32.xlu0 %v785, 56
        %v1710 = vpop.permute.xlu0 %1709
        %1711 = vrot.lane.b32.xlu0 %v786, 56
        %v1712 = vpop.permute.xlu0 %1711
        %1713 = vrot.lane.b32.xlu0 %v787, 56
        %v1714 = vpop.permute.xlu0 %1713
        %1715 = vrot.lane.b32.xlu0 %v788, 56
        %v1716 = vpop.permute.xlu0 %1715
        %1717 = vrot.lane.b32.xlu0 %v789, 56
        %v1718 = vpop.permute.xlu0 %1717
        %1719 = vrot.lane.b32.xlu0 %v790, 56
        %v1720 = vpop.permute.xlu0 %1719
        %1721 = vrot.lane.b32.xlu0 %v791, 56
        %v1722 = vpop.permute.xlu0 %1721
        %1723 = vrot.lane.b32.xlu0 %v792, 56
        %v1724 = vpop.permute.xlu0 %1723
        %1725 = vrot.lane.b32.xlu0 %v793, 56
        %v1726 = vpop.permute.xlu0 %1725
        %1727 = vrot.lane.b32.xlu0 %v794, 56
        %v1728 = vpop.permute.xlu0 %1727
        %1729 = vrot.lane.b32.xlu0 %v795, 56
        %v1730 = vpop.permute.xlu0 %1729
        %1731 = vrot.lane.b32.xlu0 %v796, 56
        %v1732 = vpop.permute.xlu0 %1731
        %1733 = vrot.lane.b32.xlu0 %v797, 56
        %v1734 = vpop.permute.xlu0 %1733
        %1735 = vrot.lane.b32.xlu0 %v798, 56
        %v1736 = vpop.permute.xlu0 %1735
        %1737 = vrot.lane.b32.xlu0 %v799, 56
        %v1738 = vpop.permute.xlu0 %1737
        %1739 = vrot.lane.b32.xlu0 0.0, 56
        %v1740 = vpop.permute.xlu0 %1739
        %1772 = vrot.lane.b32.xlu0 %v965, 64
        %v1773 = vpop.permute.xlu0 %1772
        %1774 = vrot.lane.b32.xlu0 %v966, 64
        %v1775 = vpop.permute.xlu0 %1774
        %1776 = vrot.lane.b32.xlu0 %v967, 64
        %v1777 = vpop.permute.xlu0 %1776
        %1778 = vrot.lane.b32.xlu0 %v968, 64
        %v1779 = vpop.permute.xlu0 %1778
        %1780 = vrot.lane.b32.xlu0 %v969, 64
        %v1781 = vpop.permute.xlu0 %1780
        %1782 = vrot.lane.b32.xlu0 %v970, 64
        %v1783 = vpop.permute.xlu0 %1782
        %1784 = vrot.lane.b32.xlu0 %v971, 64
        %v1785 = vpop.permute.xlu0 %1784
        %1786 = vrot.lane.b32.xlu0 %v972, 64
        %v1787 = vpop.permute.xlu0 %1786
        %1788 = vrot.lane.b32.xlu0 %v973, 64
        %v1789 = vpop.permute.xlu0 %1788
        %1790 = vrot.lane.b32.xlu0 %v974, 64
        %v1791 = vpop.permute.xlu0 %1790
        %1792 = vrot.lane.b32.xlu0 %v975, 64
        %v1793 = vpop.permute.xlu0 %1792
        %1794 = vrot.lane.b32.xlu0 %v976, 64
        %v1795 = vpop.permute.xlu0 %1794
        %1796 = vrot.lane.b32.xlu0 %v977, 64
        %v1797 = vpop.permute.xlu0 %1796
        %1798 = vrot.lane.b32.xlu0 %v978, 64
        %v1799 = vpop.permute.xlu0 %1798
        %1800 = vrot.lane.b32.xlu0 %v979, 64
        %v1801 = vpop.permute.xlu0 %1800
        %1802 = vrot.lane.b32.xlu0 %v980, 64
        %v1803 = vpop.permute.xlu0 %1802
        %1804 = vrot.lane.b32.xlu0 %v981, 64
        %v1805 = vpop.permute.xlu0 %1804
        %1806 = vrot.lane.b32.xlu0 %v982, 64
        %v1807 = vpop.permute.xlu0 %1806
        %1808 = vrot.lane.b32.xlu0 %v983, 64
        %v1809 = vpop.permute.xlu0 %1808
        %1810 = vrot.lane.b32.xlu0 %v984, 64
        %v1811 = vpop.permute.xlu0 %1810
        %1812 = vrot.lane.b32.xlu0 %v985, 64
        %v1813 = vpop.permute.xlu0 %1812
        %1814 = vrot.lane.b32.xlu0 %v986, 64
        %v1815 = vpop.permute.xlu0 %1814
        %1816 = vrot.lane.b32.xlu0 %v987, 64
        %v1817 = vpop.permute.xlu0 %1816
        %1818 = vrot.lane.b32.xlu0 %v988, 64
        %v1819 = vpop.permute.xlu0 %1818
        %1820 = vrot.lane.b32.xlu0 %v989, 64
        %v1821 = vpop.permute.xlu0 %1820
        %1822 = vrot.lane.b32.xlu0 %v990, 64
        %v1823 = vpop.permute.xlu0 %1822
        %1824 = vrot.lane.b32.xlu0 %v991, 64
        %v1825 = vpop.permute.xlu0 %1824
        %1826 = vrot.lane.b32.xlu0 %v992, 64
        %v1827 = vpop.permute.xlu0 %1826
        %1828 = vrot.lane.b32.xlu0 %v1003, 64
        %v1829 = vpop.permute.xlu0 %1828
        %1830 = vrot.lane.b32.xlu0 %v1004, 64
        %v1831 = vpop.permute.xlu0 %1830
        %1832 = vrot.lane.b32.xlu0 %v961, 64
        %v1833 = vpop.permute.xlu0 %1832
        %1834 = vrot.lane.b32.xlu0 %v962, 64
        %v1835 = vpop.permute.xlu0 %1834
        %vm1868 = vcmask 64512
        %v1869 = vsel %vm1868, %v866, %v1037
        %v1870 = vsel %vm1868, %v867, %v1037
        %v1871 = vsel %vm1868, %v868, %v1039
        %v1872 = vsel %vm1868, %v869, %v1041
        %v1873 = vsel %vm1868, %v870, %v1043
        %v1874 = vsel %vm1868, %v871, %v1045
        %v1875 = vsel %vm1868, %v872, %v1047
        %v1876 = vsel %vm1868, %v873, %v1049
        %v1877 = vsel %vm1868, %v874, %v1051
        %v1878 = vsel %vm1868, %v875, %v1053
        %v1879 = vsel %vm1868, %v876, %v1055
        %v1880 = vsel %vm1868, %v877, %v1057
        %v1881 = vsel %vm1868, %v878, %v1059
        %v1882 = vsel %vm1868, %v879, %v1061
        %v1883 = vsel %vm1868, %v880, %v1063
        %v1884 = vsel %vm1868, %v881, %v1065
        %v1885 = vsel %vm1868, %v882, %v1067
        %v1886 = vsel %vm1868, %v883, %v1069
        %v1887 = vsel %vm1868, %v884, %v1071
        %v1888 = vsel %vm1868, %v885, %v1073
        %v1889 = vsel %vm1868, %v886, %v1075
        %v1890 = vsel %vm1868, %v887, %v1077
        %v1891 = vsel %vm1868, %v888, %v1079
        %v1892 = vsel %vm1868, %v889, %v1081
        %v1893 = vsel %vm1868, %v890, %v1083
        %v1894 = vsel %vm1868, %v891, %v1085
        %v1895 = vsel %vm1868, %v892, %v1087
        %v1896 = vsel %vm1868, %v893, %v1089
        %v1897 = vsel %vm1868, %v894, %v1091
        %v1898 = vsel %vm1868, %v895, %v1093
        %v1899 = vsel %vm1868, %v896, %v1095
        %v1900 = vsel %vm1868, %v897, %v1097
        %v1901 = vsel %vm446, %v1869, %v1162
        %v1902 = vsel %vm446, %v1870, %v1164
        %v1903 = vsel %vm446, %v1871, %v1166
        %v1904 = vsel %vm446, %v1872, %v1168
        %v1905 = vsel %vm446, %v1873, %v1170
        %v1906 = vsel %vm446, %v1874, %v1172
        %v1907 = vsel %vm446, %v1875, %v1174
        %v1908 = vsel %vm446, %v1876, %v1176
        %v1909 = vsel %vm446, %v1877, %v1178
        %v1910 = vsel %vm446, %v1878, %v1180
        %v1911 = vsel %vm446, %v1879, %v1182
        %v1912 = vsel %vm446, %v1880, %v1184
        %v1913 = vsel %vm446, %v1881, %v1186
        %v1914 = vsel %vm446, %v1882, %v1188
        %v1915 = vsel %vm446, %v1883, %v1190
        %v1916 = vsel %vm446, %v1884, %v1192
        %v1917 = vsel %vm446, %v1885, %v1194
        %v1918 = vsel %vm446, %v1886, %v1196
        %v1919 = vsel %vm446, %v1887, %v1198
        %v1920 = vsel %vm446, %v1888, %v1200
        %v1921 = vsel %vm446, %v1889, %v1202
        %v1922 = vsel %vm446, %v1890, %v1204
        %v1923 = vsel %vm446, %v1891, %v1206
        %v1924 = vsel %vm446, %v1892, %v1208
        %v1925 = vsel %vm446, %v1893, %v1210
        %v1926 = vsel %vm446, %v1894, %v1212
        %v1927 = vsel %vm446, %v1895, %v1214
        %v1928 = vsel %vm446, %v1896, %v1216
        %v1929 = vsel %vm446, %v1897, %v1218
        %v1930 = vsel %vm446, %v1898, %v1220
        %v1931 = vsel %vm446, %v1899, %v1222
        %v1932 = vsel %vm446, %v1900, %v1224
        %vm1933 = vcmask 195584
        %v1934 = vsel %vm1933, %v1901, %v1290
        %v1935 = vsel %vm1933, %v1902, %v1292
        %v1936 = vsel %vm1933, %v1903, %v1294
        %v1937 = vsel %vm1933, %v1904, %v1296
        %v1938 = vsel %vm1933, %v1905, %v1298
        %v1939 = vsel %vm1933, %v1906, %v1300
        %v1940 = vsel %vm1933, %v1907, %v1302
        %v1941 = vsel %vm1933, %v1908, %v1304
        %v1942 = vsel %vm1933, %v1909, %v1306
        %v1943 = vsel %vm1933, %v1910, %v1308
        %v1944 = vsel %vm1933, %v1911, %v1310
        %v1945 = vsel %vm1933, %v1912, %v1312
        %v1946 = vsel %vm1933, %v1913, %v1314
        %v1947 = vsel %vm1933, %v1914, %v1316
        %v1948 = vsel %vm1933, %v1915, %v1318
        %v1949 = vsel %vm1933, %v1916, %v1320
        %v1950 = vsel %vm1933, %v1917, %v1322
        %v1951 = vsel %vm1933, %v1918, %v1324
        %v1952 = vsel %vm1933, %v1919, %v1326
        %v1953 = vsel %vm1933, %v1920, %v1328
        %v1954 = vsel %vm1933, %v1921, %v1330
        %v1955 = vsel %vm1933, %v1922, %v1332
        %v1956 = vsel %vm1933, %v1923, %v1334
        %v1957 = vsel %vm1933, %v1924, %v1336
        %v1958 = vsel %vm1933, %v1925, %v1338
        %v1959 = vsel %vm1933, %v1926, %v1340
        %v1960 = vsel %vm1933, %v1927, %v1342
        %v1961 = vsel %vm1933, %v1928, %v1344
        %v1962 = vsel %vm1933, %v1929, %v1346
        %v1963 = vsel %vm1933, %v1930, %v1348
        %v1964 = vsel %vm1933, %v1931, %v1350
        %v1965 = vsel %vm1933, %v1932, %v1352
        %vm1966 = vcmask 261120
        %v1967 = vsel %vm1966, %v1934, %v1388
        %v1968 = vsel %vm1966, %v1935, %v1390
        %v1969 = vsel %vm1966, %v1936, %v1392
        %v1970 = vsel %vm1966, %v1937, %v1394
        %v1971 = vsel %vm1966, %v1938, %v1396
        %v1972 = vsel %vm1966, %v1939, %v1398
        %v1973 = vsel %vm1966, %v1940, %v1400
        %v1974 = vsel %vm1966, %v1941, %v1402
        %v1975 = vsel %vm1966, %v1942, %v1404
        %v1976 = vsel %vm1966, %v1943, %v1406
        %v1977 = vsel %vm1966, %v1944, %v1408
        %v1978 = vsel %vm1966, %v1945, %v1410
        %v1979 = vsel %vm1966, %v1946, %v1412
        %v1980 = vsel %vm1966, %v1947, %v1414
        %v1981 = vsel %vm1966, %v1948, %v1416
        %v1982 = vsel %vm1966, %v1949, %v1418
        %v1983 = vsel %vm1966, %v1950, %v1420
        %v1984 = vsel %vm1966, %v1951, %v1422
        %v1985 = vsel %vm1966, %v1952, %v1424
        %v1986 = vsel %vm1966, %v1953, %v1426
        %v1987 = vsel %vm1966, %v1954, %v1428
        %v1988 = vsel %vm1966, %v1955, %v1430
        %v1989 = vsel %vm1966, %v1956, %v1432
        %v1990 = vsel %vm1966, %v1957, %v1434
        %v1991 = vsel %vm1966, %v1958, %v1436
        %v1992 = vsel %vm1966, %v1959, %v1438
        %v1993 = vsel %vm1966, %v1960, %v1440
        %v1994 = vsel %vm1966, %v1961, %v1442
        %v1995 = vsel %vm1966, %v1962, %v1444
        %v1996 = vsel %vm1966, %v1963, %v1446
        %v1997 = vsel %vm1966, %v1964, %v1448
        %v1998 = vsel %vm1966, %v1965, %v1450
        %vm1999 = vcmask 326656
        %v2000 = vsel %vm1999, %v1967, %v1486
        %v2001 = vsel %vm1999, %v1968, %v1488
        %v2002 = vsel %vm1999, %v1969, %v1490
        %v2003 = vsel %vm1999, %v1970, %v1492
        %v2004 = vsel %vm1999, %v1971, %v1494
        %v2005 = vsel %vm1999, %v1972, %v1496
        %v2006 = vsel %vm1999, %v1973, %v1498
        %v2007 = vsel %vm1999, %v1974, %v1500
        %v2008 = vsel %vm1999, %v1975, %v1502
        %v2009 = vsel %vm1999, %v1976, %v1504
        %v2010 = vsel %vm1999, %v1977, %v1506
        %v2011 = vsel %vm1999, %v1978, %v1508
        %v2012 = vsel %vm1999, %v1979, %v1510
        %v2013 = vsel %vm1999, %v1980, %v1512
        %v2014 = vsel %vm1999, %v1981, %v1514
        %v2015 = vsel %vm1999, %v1982, %v1516
        %v2016 = vsel %vm1999, %v1983, %v1518
        %v2017 = vsel %vm1999, %v1984, %v1520
        %v2018 = vsel %vm1999, %v1985, %v1522
        %v2019 = vsel %vm1999, %v1986, %v1524
        %v2020 = vsel %vm1999, %v1987, %v1526
        %v2021 = vsel %vm1999, %v1988, %v1528
        %v2022 = vsel %vm1999, %v1989, %v1530
        %v2023 = vsel %vm1999, %v1990, %v1532
        %v2024 = vsel %vm1999, %v1991, %v1534
        %v2025 = vsel %vm1999, %v1992, %v1536
        %v2026 = vsel %vm1999, %v1993, %v1538
        %v2027 = vsel %vm1999, %v1994, %v1540
        %v2028 = vsel %vm1999, %v1995, %v1542
        %v2029 = vsel %vm1999, %v1996, %v1544
        %v2030 = vsel %vm1999, %v1997, %v1546
        %v2031 = vsel %vm1999, %v1998, %v1548
        %vm2032 = vcmask 392192
        %v2033 = vsel %vm2032, %v2000, %v1584
        %v2034 = vsel %vm2032, %v2001, %v1586
        %v2035 = vsel %vm2032, %v2002, %v1588
        %v2036 = vsel %vm2032, %v2003, %v1590
        %v2037 = vsel %vm2032, %v2004, %v1592
        %v2038 = vsel %vm2032, %v2005, %v1594
        %v2039 = vsel %vm2032, %v2006, %v1596
        %v2040 = vsel %vm2032, %v2007, %v1598
        %v2041 = vsel %vm2032, %v2008, %v1600
        %v2042 = vsel %vm2032, %v2009, %v1602
        %v2043 = vsel %vm2032, %v2010, %v1604
        %v2044 = vsel %vm2032, %v2011, %v1606
        %v2045 = vsel %vm2032, %v2012, %v1608
        %v2046 = vsel %vm2032, %v2013, %v1610
        %v2047 = vsel %vm2032, %v2014, %v1612
        %v2048 = vsel %vm2032, %v2015, %v1614
        %v2049 = vsel %vm2032, %v2016, %v1616
        %v2050 = vsel %vm2032, %v2017, %v1618
        %v2051 = vsel %vm2032, %v2018, %v1620
        %v2052 = vsel %vm2032, %v2019, %v1622
        %v2053 = vsel %vm2032, %v2020, %v1624
        %v2054 = vsel %vm2032, %v2021, %v1626
        %v2055 = vsel %vm2032, %v2022, %v1628
        %v2056 = vsel %vm2032, %v2023, %v1630
        %v2057 = vsel %vm2032, %v2024, %v1632
        %v2058 = vsel %vm2032, %v2025, %v1634
        %v2059 = vsel %vm2032, %v2026, %v1636
        %v2060 = vsel %vm2032, %v2027, %v1638
        %v2061 = vsel %vm2032, %v2028, %v1640
        %v2062 = vsel %vm2032, %v2029, %v1642
        %v2063 = vsel %vm2032, %v2030, %v1644
        %v2064 = vsel %vm2032, %v2031, %v1646
        %vm2065 = vcmask 457728
        %v2066 = vsel %vm2065, %v2033, %v1680
        %v2067 = vsel %vm2065, %v2034, %v1682
        %v2068 = vsel %vm2065, %v2035, %v1684
        %v2069 = vsel %vm2065, %v2036, %v1686
        %v2070 = vsel %vm2065, %v2037, %v1688
        %v2071 = vsel %vm2065, %v2038, %v1690
        %v2072 = vsel %vm2065, %v2039, %v1692
        %v2073 = vsel %vm2065, %v2040, %v1694
        %v2074 = vsel %vm2065, %v2041, %v1696
        %v2075 = vsel %vm2065, %v2042, %v1698
        %v2076 = vsel %vm2065, %v2043, %v1700
        %v2077 = vsel %vm2065, %v2044, %v1702
        %v2078 = vsel %vm2065, %v2045, %v1704
        %v2079 = vsel %vm2065, %v2046, %v1706
        %v2080 = vsel %vm2065, %v2047, %v1708
        %v2081 = vsel %vm2065, %v2048, %v1710
        %v2082 = vsel %vm2065, %v2049, %v1712
        %v2083 = vsel %vm2065, %v2050, %v1714
        %v2084 = vsel %vm2065, %v2051, %v1716
        %v2085 = vsel %vm2065, %v2052, %v1718
        %v2086 = vsel %vm2065, %v2053, %v1720
        %v2087 = vsel %vm2065, %v2054, %v1722
        %v2088 = vsel %vm2065, %v2055, %v1724
        %v2089 = vsel %vm2065, %v2056, %v1726
        %v2090 = vsel %vm2065, %v2057, %v1728
        %v2091 = vsel %vm2065, %v2058, %v1730
        %v2092 = vsel %vm2065, %v2059, %v1732
        %v2093 = vsel %vm2065, %v2060, %v1734
        %v2094 = vsel %vm2065, %v2061, %v1736
        %v2095 = vsel %vm2065, %v2062, %v1738
        %v2096 = vsel %vm2065, %v2063, %v1740
        %v2097 = vsel %vm2065, %v2064, %v1740
        %vm2098 = vcmask 523264
        %v2099 = vsel %vm2098, %v2066, %v1773
        %v2100 = vsel %vm2098, %v2067, %v1775
        %v2101 = vsel %vm2098, %v2068, %v1777
        %v2102 = vsel %vm2098, %v2069, %v1779
        %v2103 = vsel %vm2098, %v2070, %v1781
        %v2104 = vsel %vm2098, %v2071, %v1783
        %v2105 = vsel %vm2098, %v2072, %v1785
        %v2106 = vsel %vm2098, %v2073, %v1787
        %v2107 = vsel %vm2098, %v2074, %v1789
        %v2108 = vsel %vm2098, %v2075, %v1791
        %v2109 = vsel %vm2098, %v2076, %v1793
        %v2110 = vsel %vm2098, %v2077, %v1795
        %v2111 = vsel %vm2098, %v2078, %v1797
        %v2112 = vsel %vm2098, %v2079, %v1799
        %v2113 = vsel %vm2098, %v2080, %v1801
        %v2114 = vsel %vm2098, %v2081, %v1803
        %v2115 = vsel %vm2098, %v2082, %v1805
        %v2116 = vsel %vm2098, %v2083, %v1807
        %v2117 = vsel %vm2098, %v2084, %v1809
        %v2118 = vsel %vm2098, %v2085, %v1811
        %v2119 = vsel %vm2098, %v2086, %v1813
        %v2120 = vsel %vm2098, %v2087, %v1815
        %v2121 = vsel %vm2098, %v2088, %v1817
        %v2122 = vsel %vm2098, %v2089, %v1819
        %v2123 = vsel %vm2098, %v2090, %v1821
        %v2124 = vsel %vm2098, %v2091, %v1823
        %v2125 = vsel %vm2098, %v2092, %v1825
        %v2126 = vsel %vm2098, %v2093, %v1827
        %v2127 = vsel %vm2098, %v2094, %v1829
        %v2128 = vsel %vm2098, %v2095, %v1831
        %v2129 = vsel %vm2098, %v2096, %v1833
        %v2130 = vsel %vm2098, %v2097, %v1835
        %v2131 = vld [vmem:[%s3] sm:$0xff]
        %v2132 = vld [vmem:[%s3 + $0x8] sm:$0xff]
        %v2133 = vld [vmem:[%s3 + $0x10] sm:$0xff]
        %v2134 = vld [vmem:[%s3 + $0x18] sm:$0xff]
        %v2135 = vld [vmem:[%s3 + $0x20] sm:$0xff]
        %v2136 = vld [vmem:[%s3 + $0x28] sm:$0xff]
        %v2137 = vld [vmem:[%s3 + $0x30] sm:$0xff]
        %v2138 = vld [vmem:[%s3 + $0x38] sm:$0xff]
        %v2139 = vld [vmem:[%s3 + $0x40] sm:$0xff]
        %v2140 = vld [vmem:[%s4] sm:$0x1]
        %v2142 = vlaneseq
        %v2143 = vshrl.u32 %v2142, 7
        %v2144 = vsub.s32 0, %v2143
        %v2145 = vrot.slane %v2140, %v2144
        %vm2147 = vcmask 588800
        %v2149 = vsel %vm2147, %v2099, 0
        %v2152 = vsel %vm2147, %v2100, 0
        %v2155 = vsel %vm2147, %v2101, 0
        %v2158 = vsel %vm2147, %v2102, 0
        %v2161 = vsel %vm2147, %v2103, 0
        %v2164 = vsel %vm2147, %v2104, 0
        %v2167 = vsel %vm2147, %v2105, 0
        %v2170 = vsel %vm2147, %v2106, 0
        %v2173 = vsel %vm2147, %v2107, 0
        %v2176 = vsel %vm2147, %v2108, 0
        %v2179 = vsel %vm2147, %v2109, 0
        %v2182 = vsel %vm2147, %v2110, 0
        %v2185 = vsel %vm2147, %v2111, 0
        %v2188 = vsel %vm2147, %v2112, 0
        %v2191 = vsel %vm2147, %v2113, 0
        %v2194 = vsel %vm2147, %v2114, 0
        %v2197 = vsel %vm2147, %v2115, 0
        %v2200 = vsel %vm2147, %v2116, 0
        %v2203 = vsel %vm2147, %v2117, 0
        %v2206 = vsel %vm2147, %v2118, 0
        %v2209 = vsel %vm2147, %v2119, 0
        %v2212 = vsel %vm2147, %v2120, 0
        %v2215 = vsel %vm2147, %v2121, 0
        %v2218 = vsel %vm2147, %v2122, 0
        %v2221 = vsel %vm2147, %v2123, 0
        %v2224 = vsel %vm2147, %v2124, 0
        %v2227 = vsel %vm2147, %v2125, 0
        %v2230 = vsel %vm2147, %v2126, 0
        %v2233 = vsel %vm2147, %v2127, 0
        %v2236 = vsel %vm2147, %v2128, 0
        %v2239 = vsel %vm2147, %v2129, 0
        %v2242 = vsel %vm2147, %v2130, 0
        %2244 = vmatprep.subr.mxu0 0.0
        %2245 = vmatpush1.msra.mxu0 %v2131
        %2246 = vmatprep.subr.mxu0 0.0
        %2247 = vmatpush1.msra.mxu0 %v2132
        %2248 = vmatprep.subr.mxu0 0.0
        %2249 = vmatpush1.msra.mxu0 %v2133
        %2250 = vmatprep.subr.mxu0 0.0
        %2251 = vmatpush1.msra.mxu0 %v2134
        %2252 = vmatprep.subr.mxu0 0.0
        %2253 = vmatpush1.msra.mxu0 %v2135
        %2254 = vmatprep.subr.mxu0 0.0
        %2255 = vmatpush1.msra.mxu0 %v2136
        %2256 = vmatprep.subr.mxu0 0.0
        %2257 = vmatpush1.msra.mxu0 %v2137
        %2258 = vmatprep.subr.mxu0 0.0
        %2259 = vmatpush1.msra.mxu0 %v2138
        %2260 = vmatprep.subr.mxu0 0.0
        %2261 = vmatpush1.msra.mxu0 %v2139
        %2262 = vmatprep.subr.mxu0 0.0
        %2263 = vmatpush1.msra.mxu0 0.0
        %2264 = vmatprep.subr.mxu0 0.0
        %2265 = vmatpush1.msra.mxu0 0.0
        %2266 = vmatprep.subr.mxu0 0.0
        %2267 = vmatpush1.msra.mxu0 0.0
        %2268 = vmatprep.subr.mxu0 0.0
        %2269 = vmatpush1.msra.mxu0 0.0
        %2270 = vmatprep.subr.mxu0 0.0
        %2271 = vmatpush1.msra.mxu0 0.0
        %2272 = vmatprep.subr.mxu0 0.0
        %2273 = vmatpush1.msra.mxu0 0.0
        %2274 = vmatprep.subr.mxu0 0.0
        %2275 = vmatpush1.msra.mxu0 0.0
        %2276 = vmatprep.subr.mxu0 0.0
        %2277 = vmatpush1.msra.mxu0 0.0
        %2278 = vmatprep.subr.mxu0 0.0
        %2279 = vmatpush1.msra.mxu0 0.0
        %2280 = vmatprep.subr.mxu0 0.0
        %2281 = vmatpush1.msra.mxu0 0.0
        %2282 = vmatprep.subr.mxu0 0.0
        %2283 = vmatpush1.msra.mxu0 0.0
        %2284 = vmatprep.subr.mxu0 0.0
        %2285 = vmatpush1.msra.mxu0 0.0
        %2286 = vmatprep.subr.mxu0 0.0
        %2287 = vmatpush1.msra.mxu0 0.0
        %2288 = vmatprep.subr.mxu0 0.0
        %2289 = vmatpush1.msra.mxu0 0.0
        %2290 = vmatprep.subr.mxu0 0.0
        %2291 = vmatpush1.msra.mxu0 0.0
        %2292 = vmatprep.subr.mxu0 0.0
        %2293 = vmatpush1.msra.mxu0 0.0
        %2294 = vmatprep.subr.mxu0 0.0
        %2295 = vmatpush1.msra.mxu0 0.0
        %2296 = vmatprep.subr.mxu0 0.0
        %2297 = vmatpush1.msra.mxu0 0.0
        %2298 = vmatprep.subr.mxu0 0.0
        %2299 = vmatpush1.msra.mxu0 0.0
        %2300 = vmatprep.subr.mxu0 0.0
        %2301 = vmatpush1.msra.mxu0 0.0
        %2302 = vmatprep.subr.mxu0 0.0
        %2303 = vmatpush1.msra.mxu0 0.0
        %2304 = vmatprep.subr.mxu0 0.0
        %2305 = vmatpush1.msra.mxu0 0.0
        %2306 = vmatprep.subr.mxu0 0.0
        %2307 = vmatpush1.msra.mxu0 0.0
        %2308 = vmatprep.mubr.f32.mxu0 0.0
        %2309 = vmatmul.mubr.f32.gmra.mrb[0].mxu0 %v2149
        %v2310 = vpop.f32.mrb[0].mxu0
        %v2311 = vadd.f32 %v2145, %v2310
        %v2312 = vpop.f32.mrb[0].mxu0
        %2313 = vmatprep.mubr.f32.mxu0 0.0
        %2314 = vmatmul.mubr.f32.gmra.mrb[0].mxu0 %v2152
        %v2315 = vpop.f32.mrb[0].mxu0
        %v2316 = vadd.f32 %v2145, %v2315
        %v2317 = vpop.f32.mrb[0].mxu0
        %2318 = vmatprep.mubr.f32.mxu0 0.0
        %2319 = vmatmul.mubr.f32.gmra.mrb[0].mxu0 %v2155
        %v2320 = vpop.f32.mrb[0].mxu0
        %v2321 = vadd.f32 %v2145, %v2320
        %v2322 = vpop.f32.mrb[0].mxu0
        %2323 = vmatprep.mubr.f32.mxu0 0.0
        %2324 = vmatmul.mubr.f32.gmra.mrb[0].mxu0 %v2158
        %v2325 = vpop.f32.mrb[0].mxu0
        %v2326 = vadd.f32 %v2145, %v2325
        %v2327 = vpop.f32.mrb[0].mxu0
        %2328 = vmatprep.mubr.f32.mxu0 0.0
        %2329 = vmatmul.mubr.f32.gmra.mrb[0].mxu0 %v2161
        %v2330 = vpop.f32.mrb[0].mxu0
        %v2331 = vadd.f32 %v2145, %v2330
        %v2332 = vpop.f32.mrb[0].mxu0
        %2333 = vmatprep.mubr.f32.mxu0 0.0
        %2334 = vmatmul.mubr.f32.gmra.mrb[0].mxu0 %v2164
        %v2335 = vpop.f32.mrb[0].mxu0
        %v2336 = vadd.f32 %v2145, %v2335
        %v2337 = vpop.f32.mrb[0].mxu0
        %2338 = vmatprep.mubr.f32.mxu0 0.0
        %2339 = vmatmul.mubr.f32.gmra.mrb[0].mxu0 %v2167
        %v2340 = vpop.f32.mrb[0].mxu0
        %v2341 = vadd.f32 %v2145, %v2340
        %v2342 = vpop.f32.mrb[0].mxu0
        %2343 = vmatprep.mubr.f32.mxu0 0.0
        %2344 = vmatmul.mubr.f32.gmra.mrb[0].mxu0 %v2170
        %v2345 = vpop.f32.mrb[0].mxu0
        %v2346 = vadd.f32 %v2145, %v2345
        %v2347 = vpop.f32.mrb[0].mxu0
        %2348 = vmatprep.mubr.f32.mxu0 0.0
        %2349 = vmatmul.mubr.f32.gmra.mrb[0].mxu0 %v2173
        %v2350 = vpop.f32.mrb[0].mxu0
        %v2351 = vadd.f32 %v2145, %v2350
        %v2352 = vpop.f32.mrb[0].mxu0
        %2353 = vmatprep.mubr.f32.mxu0 0.0
        %2354 = vmatmul.mubr.f32.gmra.mrb[0].mxu0 %v2176
        %v2355 = vpop.f32.mrb[0].mxu0
        %v2356 = vadd.f32 %v2145, %v2355
        %v2357 = vpop.f32.mrb[0].mxu0
        %2358 = vmatprep.mubr.f32.mxu0 0.0
        %2359 = vmatmul.mubr.f32.gmra.mrb[0].mxu0 %v2179
        %v2360 = vpop.f32.mrb[0].mxu0
        %v2361 = vadd.f32 %v2145, %v2360
        %v2362 = vpop.f32.mrb[0].mxu0
        %2363 = vmatprep.mubr.f32.mxu0 0.0
        %2364 = vmatmul.mubr.f32.gmra.mrb[0].mxu0 %v2182
        %v2365 = vpop.f32.mrb[0].mxu0
        %v2366 = vadd.f32 %v2145, %v2365
        %v2367 = vpop.f32.mrb[0].mxu0
        %2368 = vmatprep.mubr.f32.mxu0 0.0
        %2369 = vmatmul.mubr.f32.gmra.mrb[0].mxu0 %v2185
        %v2370 = vpop.f32.mrb[0].mxu0
        %v2371 = vadd.f32 %v2145, %v2370
        %v2372 = vpop.f32.mrb[0].mxu0
        %2373 = vmatprep.mubr.f32.mxu0 0.0
        %2374 = vmatmul.mubr.f32.gmra.mrb[0].mxu0 %v2188
        %v2375 = vpop.f32.mrb[0].mxu0
        %v2376 = vadd.f32 %v2145, %v2375
        %v2377 = vpop.f32.mrb[0].mxu0
        %2378 = vmatprep.mubr.f32.mxu0 0.0
        %2379 = vmatmul.mubr.f32.gmra.mrb[0].mxu0 %v2191
        %v2380 = vpop.f32.mrb[0].mxu0
        %v2381 = vadd.f32 %v2145, %v2380
        %v2382 = vpop.f32.mrb[0].mxu0
        %2383 = vmatprep.mubr.f32.mxu0 0.0
        %2384 = vmatmul.mubr.f32.gmra.mrb[0].mxu0 %v2194
        %v2385 = vpop.f32.mrb[0].mxu0
        %v2386 = vadd.f32 %v2145, %v2385
        %v2387 = vpop.f32.mrb[0].mxu0
        %2388 = vmatprep.mubr.f32.mxu0 0.0
        %2389 = vmatmul.mubr.f32.gmra.mrb[0].mxu0 %v2197
        %v2390 = vpop.f32.mrb[0].mxu0
        %v2391 = vadd.f32 %v2145, %v2390
        %v2392 = vpop.f32.mrb[0].mxu0
        %2393 = vmatprep.mubr.f32.mxu0 0.0
        %2394 = vmatmul.mubr.f32.gmra.mrb[0].mxu0 %v2200
        %v2395 = vpop.f32.mrb[0].mxu0
        %v2396 = vadd.f32 %v2145, %v2395
        %v2397 = vpop.f32.mrb[0].mxu0
        %2398 = vmatprep.mubr.f32.mxu0 0.0
        %2399 = vmatmul.mubr.f32.gmra.mrb[0].mxu0 %v2203
        %v2400 = vpop.f32.mrb[0].mxu0
        %v2401 = vadd.f32 %v2145, %v2400
        %v2402 = vpop.f32.mrb[0].mxu0
        %2403 = vmatprep.mubr.f32.mxu0 0.0
        %2404 = vmatmul.mubr.f32.gmra.mrb[0].mxu0 %v2206
        %v2405 = vpop.f32.mrb[0].mxu0
        %v2406 = vadd.f32 %v2145, %v2405
        %v2407 = vpop.f32.mrb[0].mxu0
        %2408 = vmatprep.mubr.f32.mxu0 0.0
        %2409 = vmatmul.mubr.f32.gmra.mrb[0].mxu0 %v2209
        %v2410 = vpop.f32.mrb[0].mxu0
        %v2411 = vadd.f32 %v2145, %v2410
        %v2412 = vpop.f32.mrb[0].mxu0
        %2413 = vmatprep.mubr.f32.mxu0 0.0
        %2414 = vmatmul.mubr.f32.gmra.mrb[0].mxu0 %v2212
        %v2415 = vpop.f32.mrb[0].mxu0
        %v2416 = vadd.f32 %v2145, %v2415
        %v2417 = vpop.f32.mrb[0].mxu0
        %2418 = vmatprep.mubr.f32.mxu0 0.0
        %2419 = vmatmul.mubr.f32.gmra.mrb[0].mxu0 %v2215
        %v2420 = vpop.f32.mrb[0].mxu0
        %v2421 = vadd.f32 %v2145, %v2420
        %v2422 = vpop.f32.mrb[0].mxu0
        %2423 = vmatprep.mubr.f32.mxu0 0.0
        %2424 = vmatmul.mubr.f32.gmra.mrb[0].mxu0 %v2218
        %v2425 = vpop.f32.mrb[0].mxu0
        %v2426 = vadd.f32 %v2145, %v2425
        %v2427 = vpop.f32.mrb[0].mxu0
        %2428 = vmatprep.mubr.f32.mxu0 0.0
        %2429 = vmatmul.mubr.f32.gmra.mrb[0].mxu0 %v2221
        %v2430 = vpop.f32.mrb[0].mxu0
        %v2431 = vadd.f32 %v2145, %v2430
        %v2432 = vpop.f32.mrb[0].mxu0
        %2433 = vmatprep.mubr.f32.mxu0 0.0
        %2434 = vmatmul.mubr.f32.gmra.mrb[0].mxu0 %v2224
        %v2435 = vpop.f32.mrb[0].mxu0
        %v2436 = vadd.f32 %v2145, %v2435
        %v2437 = vpop.f32.mrb[0].mxu0
        %2438 = vmatprep.mubr.f32.mxu0 0.0
        %2439 = vmatmul.mubr.f32.gmra.mrb[0].mxu0 %v2227
        %v2440 = vpop.f32.mrb[0].mxu0
        %v2441 = vadd.f32 %v2145, %v2440
        %v2442 = vpop.f32.mrb[0].mxu0
        %2443 = vmatprep.mubr.f32.mxu0 0.0
        %2444 = vmatmul.mubr.f32.gmra.mrb[0].mxu0 %v2230
        %v2445 = vpop.f32.mrb[0].mxu0
        %v2446 = vadd.f32 %v2145, %v2445
        %v2447 = vpop.f32.mrb[0].mxu0
        %2448 = vmatprep.mubr.f32.mxu0 0.0
        %2449 = vmatmul.mubr.f32.gmra.mrb[0].mxu0 %v2233
        %v2450 = vpop.f32.mrb[0].mxu0
        %v2451 = vadd.f32 %v2145, %v2450
        %v2452 = vpop.f32.mrb[0].mxu0
        %2453 = vmatprep.mubr.f32.mxu0 0.0
        %2454 = vmatmul.mubr.f32.gmra.mrb[0].mxu0 %v2236
        %v2455 = vpop.f32.mrb[0].mxu0
        %v2456 = vadd.f32 %v2145, %v2455
        %v2457 = vpop.f32.mrb[0].mxu0
        %2458 = vmatprep.mubr.f32.mxu0 0.0
        %2459 = vmatmul.mubr.f32.gmra.mrb[0].mxu0 %v2239
        %v2460 = vpop.f32.mrb[0].mxu0
        %v2461 = vadd.f32 %v2145, %v2460
        %v2462 = vpop.f32.mrb[0].mxu0
        %2463 = vmatprep.mubr.f32.mxu0 0.0
        %2464 = vmatmul.mubr.f32.gmra.mrb[0].mxu0 %v2242
        %v2465 = vpop.f32.mrb[0].mxu0
        %v2466 = vadd.f32 %v2145, %v2465
        %v2467 = vpop.f32.mrb[0].mxu0
        %2468 = vdwg.mxu0
        %v2469 = vmax.f32 %v2311, 0.0
        %v2470 = vmax.f32 %v2316, 0.0
        %v2471 = vmax.f32 %v2321, 0.0
        %v2472 = vmax.f32 %v2326, 0.0
        %v2473 = vmax.f32 %v2331, 0.0
        %v2474 = vmax.f32 %v2336, 0.0
        %v2475 = vmax.f32 %v2341, 0.0
        %v2476 = vmax.f32 %v2346, 0.0
        %v2477 = vmax.f32 %v2351, 0.0
        %v2478 = vmax.f32 %v2356, 0.0
        %v2479 = vmax.f32 %v2361, 0.0
        %v2480 = vmax.f32 %v2366, 0.0
        %v2481 = vmax.f32 %v2371, 0.0
        %v2482 = vmax.f32 %v2376, 0.0
        %v2483 = vmax.f32 %v2381, 0.0
        %v2484 = vmax.f32 %v2386, 0.0
        %v2485 = vmax.f32 %v2391, 0.0
        %v2486 = vmax.f32 %v2396, 0.0
        %v2487 = vmax.f32 %v2401, 0.0
        %v2488 = vmax.f32 %v2406, 0.0
        %v2489 = vmax.f32 %v2411, 0.0
        %v2490 = vmax.f32 %v2416, 0.0
        %v2491 = vmax.f32 %v2421, 0.0
        %v2492 = vmax.f32 %v2426, 0.0
        %v2493 = vmax.f32 %v2431, 0.0
        %v2494 = vmax.f32 %v2436, 0.0
        %v2495 = vmax.f32 %v2441, 0.0
        %v2496 = vmax.f32 %v2446, 0.0
        %v2497 = vmax.f32 %v2451, 0.0
        %v2498 = vmax.f32 %v2456, 0.0
        %v2499 = vmax.f32 %v2461, 0.0
        %v2500 = vmax.f32 %v2466, 0.0
        %v2501 = vld [vmem:[%s5] sm:$0xff]
        %v2502 = vld [vmem:[%s6] sm:$0x1]
        %v2504 = vlaneseq
        %v2505 = vshrl.u32 %v2504, 7
        %v2506 = vsub.s32 0, %v2505
        %v2507 = vrot.slane %v2502, %v2506
        %v2510 = vsel %vm1868, %v2469, 0
        %v2513 = vsel %vm1868, %v2470, 0
        %v2516 = vsel %vm1868, %v2471, 0
        %v2519 = vsel %vm1868, %v2472, 0
        %v2522 = vsel %vm1868, %v2473, 0
        %v2525 = vsel %vm1868, %v2474, 0
        %v2528 = vsel %vm1868, %v2475, 0
        %v2531 = vsel %vm1868, %v2476, 0
        %v2534 = vsel %vm1868, %v2477, 0
        %v2537 = vsel %vm1868, %v2478, 0
        %v2540 = vsel %vm1868, %v2479, 0
        %v2543 = vsel %vm1868, %v2480, 0
        %v2546 = vsel %vm1868, %v2481, 0
        %v2549 = vsel %vm1868, %v2482, 0
        %v2552 = vsel %vm1868, %v2483, 0
        %v2555 = vsel %vm1868, %v2484, 0
        %v2558 = vsel %vm1868, %v2485, 0
        %v2561 = vsel %vm1868, %v2486, 0
        %v2564 = vsel %vm1868, %v2487, 0
        %v2567 = vsel %vm1868, %v2488, 0
        %v2570 = vsel %vm1868, %v2489, 0
        %v2573 = vsel %vm1868, %v2490, 0
        %v2576 = vsel %vm1868, %v2491, 0
        %v2579 = vsel %vm1868, %v2492, 0
        %v2582 = vsel %vm1868, %v2493, 0
        %v2585 = vsel %vm1868, %v2494, 0
        %v2588 = vsel %vm1868, %v2495, 0
        %v2591 = vsel %vm1868, %v2496, 0
        %v2594 = vsel %vm1868, %v2497, 0
        %v2597 = vsel %vm1868, %v2498, 0
        %v2600 = vsel %vm1868, %v2499, 0
        %v2603 = vsel %vm1868, %v2500, 0
        %2605 = vmatprep.subr.mxu0 0.0
        %2606 = vmatpush1.msra.mxu0 %v2501
        %2607 = vmatprep.subr.mxu0 0.0
        %2608 = vmatpush1.msra.mxu0 0.0
        %2609 = vmatprep.subr.mxu0 0.0
        %2610 = vmatpush1.msra.mxu0 0.0
        %2611 = vmatprep.subr.mxu0 0.0
        %2612 = vmatpush1.msra.mxu0 0.0
        %2613 = vmatprep.subr.mxu0 0.0
        %2614 = vmatpush1.msra.mxu0 0.0
        %2615 = vmatprep.subr.mxu0 0.0
        %2616 = vmatpush1.msra.mxu0 0.0
        %2617 = vmatprep.subr.mxu0 0.0
        %2618 = vmatpush1.msra.mxu0 0.0
        %2619 = vmatprep.subr.mxu0 0.0
        %2620 = vmatpush1.msra.mxu0 0.0
        %2621 = vmatprep.subr.mxu0 0.0
        %2622 = vmatpush1.msra.mxu0 0.0
        %2623 = vmatprep.subr.mxu0 0.0
        %2624 = vmatpush1.msra.mxu0 0.0
        %2625 = vmatprep.subr.mxu0 0.0
        %2626 = vmatpush1.msra.mxu0 0.0
        %2627 = vmatprep.subr.mxu0 0.0
        %2628 = vmatpush1.msra.mxu0 0.0
        %2629 = vmatprep.subr.mxu0 0.0
        %2630 = vmatpush1.msra.mxu0 0.0
        %2631 = vmatprep.subr.mxu0 0.0
        %2632 = vmatpush1.msra.mxu0 0.0
        %2633 = vmatprep.subr.mxu0 0.0
        %2634 = vmatpush1.msra.mxu0 0.0
        %2635 = vmatprep.subr.mxu0 0.0
        %2636 = vmatpush1.msra.mxu0 0.0
        %2637 = vmatprep.subr.mxu0 0.0
        %2638 = vmatpush1.msra.mxu0 0.0
        %2639 = vmatprep.subr.mxu0 0.0
        %2640 = vmatpush1.msra.mxu0 0.0
        %2641 = vmatprep.subr.mxu0 0.0
        %2642 = vmatpush1.msra.mxu0 0.0
        %2643 = vmatprep.subr.mxu0 0.0
        %2644 = vmatpush1.msra.mxu0 0.0
        %2645 = vmatprep.subr.mxu0 0.0
        %2646 = vmatpush1.msra.mxu0 0.0
        %2647 = vmatprep.subr.mxu0 0.0
        %2648 = vmatpush1.msra.mxu0 0.0
        %2649 = vmatprep.subr.mxu0 0.0
        %2650 = vmatpush1.msra.mxu0 0.0
        %2651 = vmatprep.subr.mxu0 0.0
        %2652 = vmatpush1.msra.mxu0 0.0
        %2653 = vmatprep.subr.mxu0 0.0
        %2654 = vmatpush1.msra.mxu0 0.0
        %2655 = vmatprep.subr.mxu0 0.0
        %2656 = vmatpush1.msra.mxu0 0.0
        %2657 = vmatprep.subr.mxu0 0.0
        %2658 = vmatpush1.msra.mxu0 0.0
        %2659 = vmatprep.subr.mxu0 0.0
        %2660 = vmatpush1.msra.mxu0 0.0
        %2661 = vmatprep.subr.mxu0 0.0
        %2662 = vmatpush1.msra.mxu0 0.0
        %2663 = vmatprep.subr.mxu0 0.0
        %2664 = vmatpush1.msra.mxu0 0.0
        %2665 = vmatprep.subr.mxu0 0.0
        %2666 = vmatpush1.msra.mxu0 0.0
        %2667 = vmatprep.subr.mxu0 0.0
        %2668 = vmatpush1.msra.mxu0 0.0
        %2669 = vmatprep.mubr.f32.mxu0 0.0
        %2670 = vmatmul.mubr.f32.gmra.mrb[0].mxu0 %v2510
        %v2671 = vpop.f32.mrb[0].mxu0
        %v2672 = vadd.f32 %v2507, %v2671
        %v2673 = vpop.f32.mrb[0].mxu0
        %2674 = vmatprep.mubr.f32.mxu0 0.0
        %2675 = vmatmul.mubr.f32.gmra.mrb[0].mxu0 %v2513
        %v2676 = vpop.f32.mrb[0].mxu0
        %v2677 = vadd.f32 %v2507, %v2676
        %v2678 = vpop.f32.mrb[0].mxu0
        %2679 = vmatprep.mubr.f32.mxu0 0.0
        %2680 = vmatmul.mubr.f32.gmra.mrb[0].mxu0 %v2516
        %v2681 = vpop.f32.mrb[0].mxu0
        %v2682 = vadd.f32 %v2507, %v2681
        %v2683 = vpop.f32.mrb[0].mxu0
        %2684 = vmatprep.mubr.f32.mxu0 0.0
        %2685 = vmatmul.mubr.f32.gmra.mrb[0].mxu0 %v2519
        %v2686 = vpop.f32.mrb[0].mxu0
        %v2687 = vadd.f32 %v2507, %v2686
        %v2688 = vpop.f32.mrb[0].mxu0
        %2689 = vmatprep.mubr.f32.mxu0 0.0
        %2690 = vmatmul.mubr.f32.gmra.mrb[0].mxu0 %v2522
        %v2691 = vpop.f32.mrb[0].mxu0
        %v2692 = vadd.f32 %v2507, %v2691
        %v2693 = vpop.f32.mrb[0].mxu0
        %2694 = vmatprep.mubr.f32.mxu0 0.0
        %2695 = vmatmul.mubr.f32.gmra.mrb[0].mxu0 %v2525
        %v2696 = vpop.f32.mrb[0].mxu0
        %v2697 = vadd.f32 %v2507, %v2696
        %v2698 = vpop.f32.mrb[0].mxu0
        %2699 = vmatprep.mubr.f32.mxu0 0.0
        %2700 = vmatmul.mubr.f32.gmra.mrb[0].mxu0 %v2528
        %v2701 = vpop.f32.mrb[0].mxu0
        %v2702 = vadd.f32 %v2507, %v2701
        %v2703 = vpop.f32.mrb[0].mxu0
        %2704 = vmatprep.mubr.f32.mxu0 0.0
        %2705 = vmatmul.mubr.f32.gmra.mrb[0].mxu0 %v2531
        %v2706 = vpop.f32.mrb[0].mxu0
        %v2707 = vadd.f32 %v2507, %v2706
        %v2708 = vpop.f32.mrb[0].mxu0
        %2709 = vmatprep.mubr.f32.mxu0 0.0
        %2710 = vmatmul.mubr.f32.gmra.mrb[0].mxu0 %v2534
        %v2711 = vpop.f32.mrb[0].mxu0
        %v2712 = vadd.f32 %v2507, %v2711
        %v2713 = vpop.f32.mrb[0].mxu0
        %2714 = vmatprep.mubr.f32.mxu0 0.0
        %2715 = vmatmul.mubr.f32.gmra.mrb[0].mxu0 %v2537
        %v2716 = vpop.f32.mrb[0].mxu0
        %v2717 = vadd.f32 %v2507, %v2716
        %v2718 = vpop.f32.mrb[0].mxu0
        %2719 = vmatprep.mubr.f32.mxu0 0.0
        %2720 = vmatmul.mubr.f32.gmra.mrb[0].mxu0 %v2540
        %v2721 = vpop.f32.mrb[0].mxu0
        %v2722 = vadd.f32 %v2507, %v2721
        %v2723 = vpop.f32.mrb[0].mxu0
        %2724 = vmatprep.mubr.f32.mxu0 0.0
        %2725 = vmatmul.mubr.f32.gmra.mrb[0].mxu0 %v2543
        %v2726 = vpop.f32.mrb[0].mxu0
        %v2727 = vadd.f32 %v2507, %v2726
        %v2728 = vpop.f32.mrb[0].mxu0
        %2729 = vmatprep.mubr.f32.mxu0 0.0
        %2730 = vmatmul.mubr.f32.gmra.mrb[0].mxu0 %v2546
        %v2731 = vpop.f32.mrb[0].mxu0
        %v2732 = vadd.f32 %v2507, %v2731
        %v2733 = vpop.f32.mrb[0].mxu0
        %2734 = vmatprep.mubr.f32.mxu0 0.0
        %2735 = vmatmul.mubr.f32.gmra.mrb[0].mxu0 %v2549
        %v2736 = vpop.f32.mrb[0].mxu0
        %v2737 = vadd.f32 %v2507, %v2736
        %v2738 = vpop.f32.mrb[0].mxu0
        %2739 = vmatprep.mubr.f32.mxu0 0.0
        %2740 = vmatmul.mubr.f32.gmra.mrb[0].mxu0 %v2552
        %v2741 = vpop.f32.mrb[0].mxu0
        %v2742 = vadd.f32 %v2507, %v2741
        %v2743 = vpop.f32.mrb[0].mxu0
        %2744 = vmatprep.mubr.f32.mxu0 0.0
        %2745 = vmatmul.mubr.f32.gmra.mrb[0].mxu0 %v2555
        %v2746 = vpop.f32.mrb[0].mxu0
        %v2747 = vadd.f32 %v2507, %v2746
        %v2748 = vpop.f32.mrb[0].mxu0
        %2749 = vmatprep.mubr.f32.mxu0 0.0
        %2750 = vmatmul.mubr.f32.gmra.mrb[0].mxu0 %v2558
        %v2751 = vpop.f32.mrb[0].mxu0
        %v2752 = vadd.f32 %v2507, %v2751
        %v2753 = vpop.f32.mrb[0].mxu0
        %2754 = vmatprep.mubr.f32.mxu0 0.0
        %2755 = vmatmul.mubr.f32.gmra.mrb[0].mxu0 %v2561
        %v2756 = vpop.f32.mrb[0].mxu0
        %v2757 = vadd.f32 %v2507, %v2756
        %v2758 = vpop.f32.mrb[0].mxu0
        %2759 = vmatprep.mubr.f32.mxu0 0.0
        %2760 = vmatmul.mubr.f32.gmra.mrb[0].mxu0 %v2564
        %v2761 = vpop.f32.mrb[0].mxu0
        %v2762 = vadd.f32 %v2507, %v2761
        %v2763 = vpop.f32.mrb[0].mxu0
        %2764 = vmatprep.mubr.f32.mxu0 0.0
        %2765 = vmatmul.mubr.f32.gmra.mrb[0].mxu0 %v2567
        %v2766 = vpop.f32.mrb[0].mxu0
        %v2767 = vadd.f32 %v2507, %v2766
        %v2768 = vpop.f32.mrb[0].mxu0
        %2769 = vmatprep.mubr.f32.mxu0 0.0
        %2770 = vmatmul.mubr.f32.gmra.mrb[0].mxu0 %v2570
        %v2771 = vpop.f32.mrb[0].mxu0
        %v2772 = vadd.f32 %v2507, %v2771
        %v2773 = vpop.f32.mrb[0].mxu0
        %2774 = vmatprep.mubr.f32.mxu0 0.0
        %2775 = vmatmul.mubr.f32.gmra.mrb[0].mxu0 %v2573
        %v2776 = vpop.f32.mrb[0].mxu0
        %v2777 = vadd.f32 %v2507, %v2776
        %v2778 = vpop.f32.mrb[0].mxu0
        %2779 = vmatprep.mubr.f32.mxu0 0.0
        %2780 = vmatmul.mubr.f32.gmra.mrb[0].mxu0 %v2576
        %v2781 = vpop.f32.mrb[0].mxu0
        %v2782 = vadd.f32 %v2507, %v2781
        %v2783 = vpop.f32.mrb[0].mxu0
        %2784 = vmatprep.mubr.f32.mxu0 0.0
        %2785 = vmatmul.mubr.f32.gmra.mrb[0].mxu0 %v2579
        %v2786 = vpop.f32.mrb[0].mxu0
        %v2787 = vadd.f32 %v2507, %v2786
        %v2788 = vpop.f32.mrb[0].mxu0
        %2789 = vmatprep.mubr.f32.mxu0 0.0
        %2790 = vmatmul.mubr.f32.gmra.mrb[0].mxu0 %v2582
        %v2791 = vpop.f32.mrb[0].mxu0
        %v2792 = vadd.f32 %v2507, %v2791
        %v2793 = vpop.f32.mrb[0].mxu0
        %2794 = vmatprep.mubr.f32.mxu0 0.0
        %2795 = vmatmul.mubr.f32.gmra.mrb[0].mxu0 %v2585
        %v2796 = vpop.f32.mrb[0].mxu0
        %v2797 = vadd.f32 %v2507, %v2796
        %v2798 = vpop.f32.mrb[0].mxu0
        %2799 = vmatprep.mubr.f32.mxu0 0.0
        %2800 = vmatmul.mubr.f32.gmra.mrb[0].mxu0 %v2588
        %v2801 = vpop.f32.mrb[0].mxu0
        %v2802 = vadd.f32 %v2507, %v2801
        %v2803 = vpop.f32.mrb[0].mxu0
        %2804 = vmatprep.mubr.f32.mxu0 0.0
        %2805 = vmatmul.mubr.f32.gmra.mrb[0].mxu0 %v2591
        %v2806 = vpop.f32.mrb[0].mxu0
        %v2807 = vadd.f32 %v2507, %v2806
        %v2808 = vpop.f32.mrb[0].mxu0
        %2809 = vmatprep.mubr.f32.mxu0 0.0
        %2810 = vmatmul.mubr.f32.gmra.mrb[0].mxu0 %v2594
        %v2811 = vpop.f32.mrb[0].mxu0
        %v2812 = vadd.f32 %v2507, %v2811
        %v2813 = vpop.f32.mrb[0].mxu0
        %2814 = vmatprep.mubr.f32.mxu0 0.0
        %2815 = vmatmul.mubr.f32.gmra.mrb[0].mxu0 %v2597
        %v2816 = vpop.f32.mrb[0].mxu0
        %v2817 = vadd.f32 %v2507, %v2816
        %v2818 = vpop.f32.mrb[0].mxu0
        %2819 = vmatprep.mubr.f32.mxu0 0.0
        %2820 = vmatmul.mubr.f32.gmra.mrb[0].mxu0 %v2600
        %v2821 = vpop.f32.mrb[0].mxu0
        %v2822 = vadd.f32 %v2507, %v2821
        %v2823 = vpop.f32.mrb[0].mxu0
        %2824 = vmatprep.mubr.f32.mxu0 0.0
        %2825 = vmatmul.mubr.f32.gmra.mrb[0].mxu0 %v2603
        %v2826 = vpop.f32.mrb[0].mxu0
        %v2827 = vadd.f32 %v2507, %v2826
        %v2828 = vpop.f32.mrb[0].mxu0
        %2829 = vdwg.mxu0
        %v2830 = vsel %vm1966, %v2672, 0.0
        %v2831 = vsel %vm1966, %v2677, 0.0
        %v2832 = vadd.f32 %v2830, %v2831
        %v2833 = vsel %vm1966, %v2682, 0.0
        %v2834 = vadd.f32 %v2832, %v2833
        %v2835 = vsel %vm1966, %v2687, 0.0
        %v2836 = vadd.f32 %v2834, %v2835
        %v2837 = vsel %vm1966, %v2692, 0.0
        %v2838 = vadd.f32 %v2836, %v2837
        %v2839 = vsel %vm1966, %v2697, 0.0
        %v2840 = vadd.f32 %v2838, %v2839
        %v2841 = vsel %vm1966, %v2702, 0.0
        %v2842 = vadd.f32 %v2840, %v2841
        %v2843 = vsel %vm1966, %v2707, 0.0
        %v2844 = vadd.f32 %v2842, %v2843
        %v2845 = vsel %vm1966, %v2712, 0.0
        %v2846 = vadd.f32 %v2844, %v2845
        %v2847 = vsel %vm1966, %v2717, 0.0
        %v2848 = vadd.f32 %v2846, %v2847
        %v2849 = vsel %vm1966, %v2722, 0.0
        %v2850 = vadd.f32 %v2848, %v2849
        %v2851 = vsel %vm1966, %v2727, 0.0
        %v2852 = vadd.f32 %v2850, %v2851
        %v2853 = vsel %vm1966, %v2732, 0.0
        %v2854 = vadd.f32 %v2852, %v2853
        %v2855 = vsel %vm1966, %v2737, 0.0
        %v2856 = vadd.f32 %v2854, %v2855
        %v2857 = vsel %vm1966, %v2742, 0.0
        %v2858 = vadd.f32 %v2856, %v2857
        %v2859 = vsel %vm1966, %v2747, 0.0
        %v2860 = vadd.f32 %v2858, %v2859
        %v2861 = vsel %vm1966, %v2752, 0.0
        %v2862 = vadd.f32 %v2860, %v2861
        %v2863 = vsel %vm1966, %v2757, 0.0
        %v2864 = vadd.f32 %v2862, %v2863
        %v2865 = vsel %vm1966, %v2762, 0.0
        %v2866 = vadd.f32 %v2864, %v2865
        %v2867 = vsel %vm1966, %v2767, 0.0
        %v2868 = vadd.f32 %v2866, %v2867
        %v2869 = vsel %vm1966, %v2772, 0.0
        %v2870 = vadd.f32 %v2868, %v2869
        %v2871 = vsel %vm1966, %v2777, 0.0
        %v2872 = vadd.f32 %v2870, %v2871
        %v2873 = vsel %vm1966, %v2782, 0.0
        %v2874 = vadd.f32 %v2872, %v2873
        %v2875 = vsel %vm1966, %v2787, 0.0
        %v2876 = vadd.f32 %v2874, %v2875
        %v2877 = vsel %vm1966, %v2792, 0.0
        %v2878 = vadd.f32 %v2876, %v2877
        %v2879 = vsel %vm1966, %v2797, 0.0
        %v2880 = vadd.f32 %v2878, %v2879
        %v2881 = vsel %vm1966, %v2802, 0.0
        %v2882 = vadd.f32 %v2880, %v2881
        %v2883 = vsel %vm1966, %v2807, 0.0
        %v2884 = vadd.f32 %v2882, %v2883
        %v2885 = vsel %vm1966, %v2812, 0.0
        %v2886 = vadd.f32 %v2884, %v2885
        %v2887 = vsel %vm1966, %v2817, 0.0
        %v2888 = vadd.f32 %v2886, %v2887
        %v2889 = vsel %vm1966, %v2822, 0.0
        %v2890 = vadd.f32 %v2888, %v2889
        %v2891 = vsel %vm1966, %v2827, 0.0
        %v2892 = vadd.f32 %v2890, %v2891
        %v2893 = vrot.slane %v2892, 4
        %v2894 = vadd.f32 %v2892, %v2893
        %v2895 = vrot.slane %v2894, 2
        %v2896 = vadd.f32 %v2894, %v2895
        %v2897 = vrot.slane %v2896, 1
        %v2898 = vadd.f32 %v2896, %v2897
        %v2899 = vrcp.pop 256.0
        %v2900 = vmul.f32 %v2898, %v2899
        %v2901 = vld [vmem:[%s7] sm:$0xff]
        %v2902 = vld [vmem:[%s7 + $0x8] sm:$0xff]
        %v2903 = vld [vmem:[%s7 + $0x10] sm:$0xff]
        %v2904 = vld [vmem:[%s7 + $0x18] sm:$0xff]
        %v2906 = vsel %vm1966, %v2900, 0
        %2908 = vmatprep.subr.mxu0 0.0
        %2909 = vmatpush1.msra.mxu0 %v2901
        %2910 = vmatprep.subr.mxu0 0.0
        %2911 = vmatpush1.msra.mxu0 %v2902
        %2912 = vmatprep.subr.mxu0 0.0
        %2913 = vmatpush1.msra.mxu0 %v2903
        %2914 = vmatprep.subr.mxu0 0.0
        %2915 = vmatpush1.msra.mxu0 %v2904
        %2916 = vmatprep.subr.mxu0 0.0
        %2917 = vmatpush1.msra.mxu0 0.0
        %2918 = vmatprep.subr.mxu0 0.0
        %2919 = vmatpush1.msra.mxu0 0.0
        %2920 = vmatprep.subr.mxu0 0.0
        %2921 = vmatpush1.msra.mxu0 0.0
        %2922 = vmatprep.subr.mxu0 0.0
        %2923 = vmatpush1.msra.mxu0 0.0
        %2924 = vmatprep.subr.mxu0 0.0
        %2925 = vmatpush1.msra.mxu0 0.0
        %2926 = vmatprep.subr.mxu0 0.0
        %2927 = vmatpush1.msra.mxu0 0.0
        %2928 = vmatprep.subr.mxu0 0.0
        %2929 = vmatpush1.msra.mxu0 0.0
        %2930 = vmatprep.subr.mxu0 0.0
        %2931 = vmatpush1.msra.mxu0 0.0
        %2932 = vmatprep.subr.mxu0 0.0
        %2933 = vmatpush1.msra.mxu0 0.0
        %2934 = vmatprep.subr.mxu0 0.0
        %2935 = vmatpush1.msra.mxu0 0.0
        %2936 = vmatprep.subr.mxu0 0.0
        %2937 = vmatpush1.msra.mxu0 0.0
        %2938 = vmatprep.subr.mxu0 0.0
        %2939 = vmatpush1.msra.mxu0 0.0
        %2940 = vmatprep.subr.mxu0 0.0
        %2941 = vmatpush1.msra.mxu0 0.0
        %2942 = vmatprep.subr.mxu0 0.0
        %2943 = vmatpush1.msra.mxu0 0.0
        %2944 = vmatprep.subr.mxu0 0.0
        %2945 = vmatpush1.msra.mxu0 0.0
        %2946 = vmatprep.subr.mxu0 0.0
        %2947 = vmatpush1.msra.mxu0 0.0
        %2948 = vmatprep.subr.mxu0 0.0
        %2949 = vmatpush1.msra.mxu0 0.0
        %2950 = vmatprep.subr.mxu0 0.0
        %2951 = vmatpush1.msra.mxu0 0.0
        %2952 = vmatprep.subr.mxu0 0.0
        %2953 = vmatpush1.msra.mxu0 0.0
        %2954 = vmatprep.subr.mxu0 0.0
        %2955 = vmatpush1.msra.mxu0 0.0
        %2956 = vmatprep.subr.mxu0 0.0
        %2957 = vmatpush1.msra.mxu0 0.0
        %2958 = vmatprep.subr.mxu0 0.0
        %2959 = vmatpush1.msra.mxu0 0.0
        %2960 = vmatprep.subr.mxu0 0.0
        %2961 = vmatpush1.msra.mxu0 0.0
        %2962 = vmatprep.subr.mxu0 0.0
        %2963 = vmatpush1.msra.mxu0 0.0
        %2964 = vmatprep.subr.mxu0 0.0
        %2965 = vmatpush1.msra.mxu0 0.0
        %2966 = vmatprep.subr.mxu0 0.0
        %2967 = vmatpush1.msra.mxu0 0.0
        %2968 = vmatprep.subr.mxu0 0.0
        %2969 = vmatpush1.msra.mxu0 0.0
        %2970 = vmatprep.subr.mxu0 0.0
        %2971 = vmatpush1.msra.mxu0 0.0
        %2972 = vmatprep.mubr.f32.mxu0 0.0
        %2973 = vmatmul.mubr.f32.gmra.mrb[0].mxu0 %v2906
        %v2974 = vpop.f32.mrb[0].mxu0
        %v2975 = vadd.f32 0.0, %v2974
        %v2976 = vpop.f32.mrb[0].mxu0
        %2977 = vdwg.mxu0
        %v2978 = vmax.f32 %v2975, 0.0
        %v2979 = vld [vmem:[%s8] sm:$0x3]
        %vm2980 = vcmask 15360
        %v2982 = vsel %vm2980, %v2978, 0
        %vm2984 = vcmask 1041408
        %v2986 = vsel %vm2984, %v2979, 0
        %2988 = vmatprep.subr.mxu0 0.0
        %2989 = vmatpush1.msra.mxu0 %v2986
        %2990 = vmatprep.subr.mxu0 0.0
        %2991 = vmatpush1.msra.mxu0 0.0
        %2992 = vmatprep.subr.mxu0 0.0
        %2993 = vmatpush1.msra.mxu0 0.0
        %2994 = vmatprep.subr.mxu0 0.0
        %2995 = vmatpush1.msra.mxu0 0.0
        %2996 = vmatprep.subr.mxu0 0.0
        %2997 = vmatpush1.msra.mxu0 0.0
        %2998 = vmatprep.subr.mxu0 0.0
        %2999 = vmatpush1.msra.mxu0 0.0
        %3000 = vmatprep.subr.mxu0 0.0
        %3001 = vmatpush1.msra.mxu0 0.0
        %3002 = vmatprep.subr.mxu0 0.0
        %3003 = vmatpush1.msra.mxu0 0.0
        %3004 = vmatprep.subr.mxu0 0.0
        %3005 = vmatpush1.msra.mxu0 0.0
        %3006 = vmatprep.subr.mxu0 0.0
        %3007 = vmatpush1.msra.mxu0 0.0
        %3008 = vmatprep.subr.mxu0 0.0
        %3009 = vmatpush1.msra.mxu0 0.0
        %3010 = vmatprep.subr.mxu0 0.0
        %3011 = vmatpush1.msra.mxu0 0.0
        %3012 = vmatprep.subr.mxu0 0.0
        %3013 = vmatpush1.msra.mxu0 0.0
        %3014 = vmatprep.subr.mxu0 0.0
        %3015 = vmatpush1.msra.mxu0 0.0
        %3016 = vmatprep.subr.mxu0 0.0
        %3017 = vmatpush1.msra.mxu0 0.0
        %3018 = vmatprep.subr.mxu0 0.0
        %3019 = vmatpush1.msra.mxu0 0.0
        %3020 = vmatprep.subr.mxu0 0.0
        %3021 = vmatpush1.msra.mxu0 0.0
        %3022 = vmatprep.subr.mxu0 0.0
        %3023 = vmatpush1.msra.mxu0 0.0
        %3024 = vmatprep.subr.mxu0 0.0
        %3025 = vmatpush1.msra.mxu0 0.0
        %3026 = vmatprep.subr.mxu0 0.0
        %3027 = vmatpush1.msra.mxu0 0.0
        %3028 = vmatprep.subr.mxu0 0.0
        %3029 = vmatpush1.msra.mxu0 0.0
        %3030 = vmatprep.subr.mxu0 0.0
        %3031 = vmatpush1.msra.mxu0 0.0
        %3032 = vmatprep.subr.mxu0 0.0
        %3033 = vmatpush1.msra.mxu0 0.0
        %3034 = vmatprep.subr.mxu0 0.0
        %3035 = vmatpush1.msra.mxu0 0.0
        %3036 = vmatprep.subr.mxu0 0.0
        %3037 = vmatpush1.msra.mxu0 0.0
        %3038 = vmatprep.subr.mxu0 0.0
        %3039 = vmatpush1.msra.mxu0 0.0
        %3040 = vmatprep.subr.mxu0 0.0
        %3041 = vmatpush1.msra.mxu0 0.0
        %3042 = vmatprep.subr.mxu0 0.0
        %3043 = vmatpush1.msra.mxu0 0.0
        %3044 = vmatprep.subr.mxu0 0.0
        %3045 = vmatpush1.msra.mxu0 0.0
        %3046 = vmatprep.subr.mxu0 0.0
        %3047 = vmatpush1.msra.mxu0 0.0
        %3048 = vmatprep.subr.mxu0 0.0
        %3049 = vmatpush1.msra.mxu0 0.0
        %3050 = vmatprep.subr.mxu0 0.0
        %3051 = vmatpush1.msra.mxu0 0.0
        %3052 = vmatprep.mubr.f32.mxu0 0.0
        %3053 = vmatmul.mubr.f32.gmra.mrb[0].mxu0 %v2982
        %v3054 = vpop.f32.mrb[0].mxu0
        %v3055 = vadd.f32 0.0, %v3054
        %v3056 = vpop.f32.mrb[0].mxu0
        %3057 = vdwg.mxu0
        %v3058 = vxor.u32 %v3055, 2147483648
        %v3059 = vmul.f32 %v3058, 1.442695
        %v3060 = vpow.pop %v3059
        %v3061 = vadd.f32 %v3060, 1.0
        %v3062 = vrcp.pop %v3061
        %v3063 = vmul.f32 1.0, %v3062
        %v3064 = vlaneseq
        %v3065 = vshrl.u32 %v3064, 7
        %v3066 = vsub.s32 0, %v3065
        %v3067 = vrot.slane %v3063, %v3066
        %v3068 = vmul.f32 %v2672, %v3067
        %v3069 = vmul.f32 %v2677, %v3067
        %v3070 = vmul.f32 %v2682, %v3067
        %v3071 = vmul.f32 %v2687, %v3067
        %v3072 = vmul.f32 %v2692, %v3067
        %v3073 = vmul.f32 %v2697, %v3067
        %v3074 = vmul.f32 %v2702, %v3067
        %v3075 = vmul.f32 %v2707, %v3067
        %v3076 = vmul.f32 %v2712, %v3067
        %v3077 = vmul.f32 %v2717, %v3067
        %v3078 = vmul.f32 %v2722, %v3067
        %v3079 = vmul.f32 %v2727, %v3067
        %v3080 = vmul.f32 %v2732, %v3067
        %v3081 = vmul.f32 %v2737, %v3067
        %v3082 = vmul.f32 %v2742, %v3067
        %v3083 = vmul.f32 %v2747, %v3067
        %v3084 = vmul.f32 %v2752, %v3067
        %v3085 = vmul.f32 %v2757, %v3067
        %v3086 = vmul.f32 %v2762, %v3067
        %v3087 = vmul.f32 %v2767, %v3067
        %v3088 = vmul.f32 %v2772, %v3067
        %v3089 = vmul.f32 %v2777, %v3067
        %v3090 = vmul.f32 %v2782, %v3067
        %v3091 = vmul.f32 %v2787, %v3067
        %v3092 = vmul.f32 %v2792, %v3067
        %v3093 = vmul.f32 %v2797, %v3067
        %v3094 = vmul.f32 %v2802, %v3067
        %v3095 = vmul.f32 %v2807, %v3067
        %v3096 = vmul.f32 %v2812, %v3067
        %v3097 = vmul.f32 %v2817, %v3067
        %v3098 = vmul.f32 %v2822, %v3067
        %v3099 = vmul.f32 %v2827, %v3067
        %v3100 = vld [vmem:[%s9] sm:$0xff]
        %v3101 = vld [vmem:[%s9 + $0x8] sm:$0xff]
        %v3102 = vld [vmem:[%s10] sm:$0x1]
        %v3104 = vlaneseq
        %v3105 = vshrl.u32 %v3104, 7
        %v3106 = vsub.s32 0, %v3105
        %v3107 = vrot.slane %v3102, %v3106
        %3109 = vmatprep.subr.mxu0 0.0
        %3110 = vmatpush1.msra.mxu0 %v3100
        %3111 = vmatprep.subr.mxu0 0.0
        %3112 = vmatpush1.msra.mxu0 %v3101
        %3113 = vmatprep.subr.mxu0 0.0
        %3114 = vmatpush1.msra.mxu0 0.0
        %3115 = vmatprep.subr.mxu0 0.0
        %3116 = vmatpush1.msra.mxu0 0.0
        %3117 = vmatprep.subr.mxu0 0.0
        %3118 = vmatpush1.msra.mxu0 0.0
        %3119 = vmatprep.subr.mxu0 0.0
        %3120 = vmatpush1.msra.mxu0 0.0
        %3121 = vmatprep.subr.mxu0 0.0
        %3122 = vmatpush1.msra.mxu0 0.0
        %3123 = vmatprep.subr.mxu0 0.0
        %3124 = vmatpush1.msra.mxu0 0.0
        %3125 = vmatprep.subr.mxu0 0.0
        %3126 = vmatpush1.msra.mxu0 0.0
        %3127 = vmatprep.subr.mxu0 0.0
        %3128 = vmatpush1.msra.mxu0 0.0
        %3129 = vmatprep.subr.mxu0 0.0
        %3130 = vmatpush1.msra.mxu0 0.0
        %3131 = vmatprep.subr.mxu0 0.0
        %3132 = vmatpush1.msra.mxu0 0.0
        %3133 = vmatprep.subr.mxu0 0.0
        %3134 = vmatpush1.msra.mxu0 0.0
        %3135 = vmatprep.subr.mxu0 0.0
        %3136 = vmatpush1.msra.mxu0 0.0
        %3137 = vmatprep.subr.mxu0 0.0
        %3138 = vmatpush1.msra.mxu0 0.0
        %3139 = vmatprep.subr.mxu0 0.0
        %3140 = vmatpush1.msra.mxu0 0.0
        %3141 = vmatprep.subr.mxu0 0.0
        %3142 = vmatpush1.msra.mxu0 0.0
        %3143 = vmatprep.subr.mxu0 0.0
        %3144 = vmatpush1.msra.mxu0 0.0
        %3145 = vmatprep.subr.mxu0 0.0
        %3146 = vmatpush1.msra.mxu0 0.0
        %3147 = vmatprep.subr.mxu0 0.0
        %3148 = vmatpush1.msra.mxu0 0.0
        %3149 = vmatprep.subr.mxu0 0.0
        %3150 = vmatpush1.msra.mxu0 0.0
        %3151 = vmatprep.subr.mxu0 0.0
        %3152 = vmatpush1.msra.mxu0 0.0
        %3153 = vmatprep.subr.mxu0 0.0
        %3154 = vmatpush1.msra.mxu0 0.0
        %3155 = vmatprep.subr.mxu0 0.0
        %3156 = vmatpush1.msra.mxu0 0.0
        %3157 = vmatprep.subr.mxu0 0.0
        %3158 = vmatpush1.msra.mxu0 0.0
        %3159 = vmatprep.subr.mxu0 0.0
        %3160 = vmatpush1.msra.mxu0 0.0
        %3161 = vmatprep.subr.mxu0 0.0
        %3162 = vmatpush1.msra.mxu0 0.0
        %3163 = vmatprep.subr.mxu0 0.0
        %3164 = vmatpush1.msra.mxu0 0.0
        %3165 = vmatprep.subr.mxu0 0.0
        %3166 = vmatpush1.msra.mxu0 0.0
        %3167 = vmatprep.subr.mxu0 0.0
        %3168 = vmatpush1.msra.mxu0 0.0
        %3169 = vmatprep.subr.mxu0 0.0
        %3170 = vmatpush1.msra.mxu0 0.0
        %3171 = vmatprep.subr.mxu0 0.0
        %3172 = vmatpush1.msra.mxu0 0.0
        %3173 = vmatprep.mubr.f32.mxu0 0.0
        %3174 = vmatmul.mubr.f32.gmra.mrb[0].mxu0 %v448
        %v3175 = vpop.f32.mrb[0].mxu0
        %v3176 = vadd.f32 %v3107, %v3175
        %v3177 = vpop.f32.mrb[0].mxu0
        %3178 = vmatprep.mubr.f32.mxu0 0.0
        %3179 = vmatmul.mubr.f32.gmra.mrb[0].mxu0 %v451
        %v3180 = vpop.f32.mrb[0].mxu0
        %v3181 = vadd.f32 %v3107, %v3180
        %v3182 = vpop.f32.mrb[0].mxu0
        %3183 = vmatprep.mubr.f32.mxu0 0.0
        %3184 = vmatmul.mubr.f32.gmra.mrb[0].mxu0 %v454
        %v3185 = vpop.f32.mrb[0].mxu0
        %v3186 = vadd.f32 %v3107, %v3185
        %v3187 = vpop.f32.mrb[0].mxu0
        %3188 = vmatprep.mubr.f32.mxu0 0.0
        %3189 = vmatmul.mubr.f32.gmra.mrb[0].mxu0 %v457
        %v3190 = vpop.f32.mrb[0].mxu0
        %v3191 = vadd.f32 %v3107, %v3190
        %v3192 = vpop.f32.mrb[0].mxu0
        %3193 = vmatprep.mubr.f32.mxu0 0.0
        %3194 = vmatmul.mubr.f32.gmra.mrb[0].mxu0 %v460
        %v3195 = vpop.f32.mrb[0].mxu0
        %v3196 = vadd.f32 %v3107, %v3195
        %v3197 = vpop.f32.mrb[0].mxu0
        %3198 = vmatprep.mubr.f32.mxu0 0.0
        %3199 = vmatmul.mubr.f32.gmra.mrb[0].mxu0 %v463
        %v3200 = vpop.f32.mrb[0].mxu0
        %v3201 = vadd.f32 %v3107, %v3200
        %v3202 = vpop.f32.mrb[0].mxu0
        %3203 = vmatprep.mubr.f32.mxu0 0.0
        %3204 = vmatmul.mubr.f32.gmra.mrb[0].mxu0 %v466
        %v3205 = vpop.f32.mrb[0].mxu0
        %v3206 = vadd.f32 %v3107, %v3205
        %v3207 = vpop.f32.mrb[0].mxu0
        %3208 = vmatprep.mubr.f32.mxu0 0.0
        %3209 = vmatmul.mubr.f32.gmra.mrb[0].mxu0 %v469
        %v3210 = vpop.f32.mrb[0].mxu0
        %v3211 = vadd.f32 %v3107, %v3210
        %v3212 = vpop.f32.mrb[0].mxu0
        %3213 = vmatprep.mubr.f32.mxu0 0.0
        %3214 = vmatmul.mubr.f32.gmra.mrb[0].mxu0 %v472
        %v3215 = vpop.f32.mrb[0].mxu0
        %v3216 = vadd.f32 %v3107, %v3215
        %v3217 = vpop.f32.mrb[0].mxu0
        %3218 = vmatprep.mubr.f32.mxu0 0.0
        %3219 = vmatmul.mubr.f32.gmra.mrb[0].mxu0 %v475
        %v3220 = vpop.f32.mrb[0].mxu0
        %v3221 = vadd.f32 %v3107, %v3220
        %v3222 = vpop.f32.mrb[0].mxu0
        %3223 = vmatprep.mubr.f32.mxu0 0.0
        %3224 = vmatmul.mubr.f32.gmra.mrb[0].mxu0 %v478
        %v3225 = vpop.f32.mrb[0].mxu0
        %v3226 = vadd.f32 %v3107, %v3225
        %v3227 = vpop.f32.mrb[0].mxu0
        %3228 = vmatprep.mubr.f32.mxu0 0.0
        %3229 = vmatmul.mubr.f32.gmra.mrb[0].mxu0 %v481
        %v3230 = vpop.f32.mrb[0].mxu0
        %v3231 = vadd.f32 %v3107, %v3230
        %v3232 = vpop.f32.mrb[0].mxu0
        %3233 = vmatprep.mubr.f32.mxu0 0.0
        %3234 = vmatmul.mubr.f32.gmra.mrb[0].mxu0 %v484
        %v3235 = vpop.f32.mrb[0].mxu0
        %v3236 = vadd.f32 %v3107, %v3235
        %v3237 = vpop.f32.mrb[0].mxu0
        %3238 = vmatprep.mubr.f32.mxu0 0.0
        %3239 = vmatmul.mubr.f32.gmra.mrb[0].mxu0 %v487
        %v3240 = vpop.f32.mrb[0].mxu0
        %v3241 = vadd.f32 %v3107, %v3240
        %v3242 = vpop.f32.mrb[0].mxu0
        %3243 = vmatprep.mubr.f32.mxu0 0.0
        %3244 = vmatmul.mubr.f32.gmra.mrb[0].mxu0 %v490
        %v3245 = vpop.f32.mrb[0].mxu0
        %v3246 = vadd.f32 %v3107, %v3245
        %v3247 = vpop.f32.mrb[0].mxu0
        %3248 = vmatprep.mubr.f32.mxu0 0.0
        %3249 = vmatmul.mubr.f32.gmra.mrb[0].mxu0 %v493
        %v3250 = vpop.f32.mrb[0].mxu0
        %v3251 = vadd.f32 %v3107, %v3250
        %v3252 = vpop.f32.mrb[0].mxu0
        %3253 = vmatprep.mubr.f32.mxu0 0.0
        %3254 = vmatmul.mubr.f32.gmra.mrb[0].mxu0 %v496
        %v3255 = vpop.f32.mrb[0].mxu0
        %v3256 = vadd.f32 %v3107, %v3255
        %v3257 = vpop.f32.mrb[0].mxu0
        %3258 = vmatprep.mubr.f32.mxu0 0.0
        %3259 = vmatmul.mubr.f32.gmra.mrb[0].mxu0 %v499
        %v3260 = vpop.f32.mrb[0].mxu0
        %v3261 = vadd.f32 %v3107, %v3260
        %v3262 = vpop.f32.mrb[0].mxu0
        %3263 = vmatprep.mubr.f32.mxu0 0.0
        %3264 = vmatmul.mubr.f32.gmra.mrb[0].mxu0 %v502
        %v3265 = vpop.f32.mrb[0].mxu0
        %v3266 = vadd.f32 %v3107, %v3265
        %v3267 = vpop.f32.mrb[0].mxu0
        %3268 = vmatprep.mubr.f32.mxu0 0.0
        %3269 = vmatmul.mubr.f32.gmra.mrb[0].mxu0 %v505
        %v3270 = vpop.f32.mrb[0].mxu0
        %v3271 = vadd.f32 %v3107, %v3270
        %v3272 = vpop.f32.mrb[0].mxu0
        %3273 = vmatprep.mubr.f32.mxu0 0.0
        %3274 = vmatmul.mubr.f32.gmra.mrb[0].mxu0 %v508
        %v3275 = vpop.f32.mrb[0].mxu0
        %v3276 = vadd.f32 %v3107, %v3275
        %v3277 = vpop.f32.mrb[0].mxu0
        %3278 = vmatprep.mubr.f32.mxu0 0.0
        %3279 = vmatmul.mubr.f32.gmra.mrb[0].mxu0 %v511
        %v3280 = vpop.f32.mrb[0].mxu0
        %v3281 = vadd.f32 %v3107, %v3280
        %v3282 = vpop.f32.mrb[0].mxu0
        %3283 = vmatprep.mubr.f32.mxu0 0.0
        %3284 = vmatmul.mubr.f32.gmra.mrb[0].mxu0 %v514
        %v3285 = vpop.f32.mrb[0].mxu0
        %v3286 = vadd.f32 %v3107, %v3285
        %v3287 = vpop.f32.mrb[0].mxu0
        %3288 = vmatprep.mubr.f32.mxu0 0.0
        %3289 = vmatmul.mubr.f32.gmra.mrb[0].mxu0 %v517
        %v3290 = vpop.f32.mrb[0].mxu0
        %v3291 = vadd.f32 %v3107, %v3290
        %v3292 = vpop.f32.mrb[0].mxu0
        %3293 = vmatprep.mubr.f32.mxu0 0.0
        %3294 = vmatmul.mubr.f32.gmra.mrb[0].mxu0 %v520
        %v3295 = vpop.f32.mrb[0].mxu0
        %v3296 = vadd.f32 %v3107, %v3295
        %v3297 = vpop.f32.mrb[0].mxu0
        %3298 = vmatprep.mubr.f32.mxu0 0.0
        %3299 = vmatmul.mubr.f32.gmra.mrb[0].mxu0 %v523
        %v3300 = vpop.f32.mrb[0].mxu0
        %v3301 = vadd.f32 %v3107, %v3300
        %v3302 = vpop.f32.mrb[0].mxu0
        %3303 = vmatprep.mubr.f32.mxu0 0.0
        %3304 = vmatmul.mubr.f32.gmra.mrb[0].mxu0 %v526
        %v3305 = vpop.f32.mrb[0].mxu0
        %v3306 = vadd.f32 %v3107, %v3305
        %v3307 = vpop.f32.mrb[0].mxu0
        %3308 = vmatprep.mubr.f32.mxu0 0.0
        %3309 = vmatmul.mubr.f32.gmra.mrb[0].mxu0 %v529
        %v3310 = vpop.f32.mrb[0].mxu0
        %v3311 = vadd.f32 %v3107, %v3310
        %v3312 = vpop.f32.mrb[0].mxu0
        %3313 = vmatprep.mubr.f32.mxu0 0.0
        %3314 = vmatmul.mubr.f32.gmra.mrb[0].mxu0 %v532
        %v3315 = vpop.f32.mrb[0].mxu0
        %v3316 = vadd.f32 %v3107, %v3315
        %v3317 = vpop.f32.mrb[0].mxu0
        %3318 = vmatprep.mubr.f32.mxu0 0.0
        %3319 = vmatmul.mubr.f32.gmra.mrb[0].mxu0 %v535
        %v3320 = vpop.f32.mrb[0].mxu0
        %v3321 = vadd.f32 %v3107, %v3320
        %v3322 = vpop.f32.mrb[0].mxu0
        %3323 = vmatprep.mubr.f32.mxu0 0.0
        %3324 = vmatmul.mubr.f32.gmra.mrb[0].mxu0 %v538
        %v3325 = vpop.f32.mrb[0].mxu0
        %v3326 = vadd.f32 %v3107, %v3325
        %v3327 = vpop.f32.mrb[0].mxu0
        %3328 = vmatprep.mubr.f32.mxu0 0.0
        %3329 = vmatmul.mubr.f32.gmra.mrb[0].mxu0 %v541
        %v3330 = vpop.f32.mrb[0].mxu0
        %v3331 = vadd.f32 %v3107, %v3330
        %v3332 = vpop.f32.mrb[0].mxu0
        %3333 = vdwg.mxu0
        %v3334 = vadd.f32 %v3068, %v3176
        %v3335 = vadd.f32 %v3069, %v3181
        %v3336 = vadd.f32 %v3070, %v3186
        %v3337 = vadd.f32 %v3071, %v3191
        %v3338 = vadd.f32 %v3072, %v3196
        %v3339 = vadd.f32 %v3073, %v3201
        %v3340 = vadd.f32 %v3074, %v3206
        %v3341 = vadd.f32 %v3075, %v3211
        %v3342 = vadd.f32 %v3076, %v3216
        %v3343 = vadd.f32 %v3077, %v3221
        %v3344 = vadd.f32 %v3078, %v3226
        %v3345 = vadd.f32 %v3079, %v3231
        %v3346 = vadd.f32 %v3080, %v3236
        %v3347 = vadd.f32 %v3081, %v3241
        %v3348 = vadd.f32 %v3082, %v3246
        %v3349 = vadd.f32 %v3083, %v3251
        %v3350 = vadd.f32 %v3084, %v3256
        %v3351 = vadd.f32 %v3085, %v3261
        %v3352 = vadd.f32 %v3086, %v3266
        %v3353 = vadd.f32 %v3087, %v3271
        %v3354 = vadd.f32 %v3088, %v3276
        %v3355 = vadd.f32 %v3089, %v3281
        %v3356 = vadd.f32 %v3090, %v3286
        %v3357 = vadd.f32 %v3091, %v3291
        %v3358 = vadd.f32 %v3092, %v3296
        %v3359 = vadd.f32 %v3093, %v3301
        %v3360 = vadd.f32 %v3094, %v3306
        %v3361 = vadd.f32 %v3095, %v3311
        %v3362 = vadd.f32 %v3096, %v3316
        %v3363 = vadd.f32 %v3097, %v3321
        %v3364 = vadd.f32 %v3098, %v3326
        %v3365 = vadd.f32 %v3099, %v3331
        %v3366 = vmax.f32 %v3334, 0.0
        %v3367 = vmax.f32 %v3335, 0.0
        %v3368 = vmax.f32 %v3336, 0.0
        %v3369 = vmax.f32 %v3337, 0.0
        %v3370 = vmax.f32 %v3338, 0.0
        %v3371 = vmax.f32 %v3339, 0.0
        %v3372 = vmax.f32 %v3340, 0.0
        %v3373 = vmax.f32 %v3341, 0.0
        %v3374 = vmax.f32 %v3342, 0.0
        %v3375 = vmax.f32 %v3343, 0.0
        %v3376 = vmax.f32 %v3344, 0.0
        %v3377 = vmax.f32 %v3345, 0.0
        %v3378 = vmax.f32 %v3346, 0.0
        %v3379 = vmax.f32 %v3347, 0.0
        %v3380 = vmax.f32 %v3348, 0.0
        %v3381 = vmax.f32 %v3349, 0.0
        %v3382 = vmax.f32 %v3350, 0.0
        %v3383 = vmax.f32 %v3351, 0.0
        %v3384 = vmax.f32 %v3352, 0.0
        %v3385 = vmax.f32 %v3353, 0.0
        %v3386 = vmax.f32 %v3354, 0.0
        %v3387 = vmax.f32 %v3355, 0.0
        %v3388 = vmax.f32 %v3356, 0.0
        %v3389 = vmax.f32 %v3357, 0.0
        %v3390 = vmax.f32 %v3358, 0.0
        %v3391 = vmax.f32 %v3359, 0.0
        %v3392 = vmax.f32 %v3360, 0.0
        %v3393 = vmax.f32 %v3361, 0.0
        %v3394 = vmax.f32 %v3362, 0.0
        %v3395 = vmax.f32 %v3363, 0.0
        %v3396 = vmax.f32 %v3364, 0.0
        %v3397 = vmax.f32 %v3365, 0.0
        %3398 = vst.msk [vmem:[%s404] sm:$0xff] %vm1966, %v3366
        %3399 = vst.msk [vmem:[%s404 + $0x8] sm:$0xff] %vm1966, %v3367
        %3400 = vst.msk [vmem:[%s404 + $0x10] sm:$0xff] %vm1966, %v3368
        %3401 = vst.msk [vmem:[%s404 + $0x18] sm:$0xff] %vm1966, %v3369
        %3402 = vst.msk [vmem:[%s404 + $0x20] sm:$0xff] %vm1966, %v3370
        %3403 = vst.msk [vmem:[%s404 + $0x28] sm:$0xff] %vm1966, %v3371
        %3404 = vst.msk [vmem:[%s404 + $0x30] sm:$0xff] %vm1966, %v3372
        %3405 = vst.msk [vmem:[%s404 + $0x38] sm:$0xff] %vm1966, %v3373
        %3406 = vst.msk [vmem:[%s404 + $0x40] sm:$0xff] %vm1966, %v3374
        %3407 = vst.msk [vmem:[%s404 + $0x48] sm:$0xff] %vm1966, %v3375
        %3408 = vst.msk [vmem:[%s404 + $0x50] sm:$0xff] %vm1966, %v3376
        %3409 = vst.msk [vmem:[%s404 + $0x58] sm:$0xff] %vm1966, %v3377
        %3410 = vst.msk [vmem:[%s404 + $0x60] sm:$0xff] %vm1966, %v3378
        %3411 = vst.msk [vmem:[%s404 + $0x68] sm:$0xff] %vm1966, %v3379
        %3412 = vst.msk [vmem:[%s404 + $0x70] sm:$0xff] %vm1966, %v3380
        %3413 = vst.msk [vmem:[%s404 + $0x78] sm:$0xff] %vm1966, %v3381
        %3414 = vst.msk [vmem:[%s404 + $0x80] sm:$0xff] %vm1966, %v3382
        %3415 = vst.msk [vmem:[%s404 + $0x88] sm:$0xff] %vm1966, %v3383
        %3416 = vst.msk [vmem:[%s404 + $0x90] sm:$0xff] %vm1966, %v3384
        %3417 = vst.msk [vmem:[%s404 + $0x98] sm:$0xff] %vm1966, %v3385
        %3418 = vst.msk [vmem:[%s404 + $0xa0] sm:$0xff] %vm1966, %v3386
        %3419 = vst.msk [vmem:[%s404 + $0xa8] sm:$0xff] %vm1966, %v3387
        %3420 = vst.msk [vmem:[%s404 + $0xb0] sm:$0xff] %vm1966, %v3388
        %3421 = vst.msk [vmem:[%s404 + $0xb8] sm:$0xff] %vm1966, %v3389
        %3422 = vst.msk [vmem:[%s404 + $0xc0] sm:$0xff] %vm1966, %v3390
        %3423 = vst.msk [vmem:[%s404 + $0xc8] sm:$0xff] %vm1966, %v3391
        %3424 = vst.msk [vmem:[%s404 + $0xd0] sm:$0xff] %vm1966, %v3392
        %3425 = vst.msk [vmem:[%s404 + $0xd8] sm:$0xff] %vm1966, %v3393
        %3426 = vst.msk [vmem:[%s404 + $0xe0] sm:$0xff] %vm1966, %v3394
        %3427 = vst.msk [vmem:[%s404 + $0xe8] sm:$0xff] %vm1966, %v3395
        %3428 = vst.msk [vmem:[%s404 + $0xf0] sm:$0xff] %vm1966, %v3396
        %3429 = vst.msk [vmem:[%s404 + $0xf8] sm:$0xff] %vm1966, %v3397
        %s3430 = sand.u32 %s272, 1
        %s3431 = scalar_lea.sflag [#allocation4], %s3430
        %s3432 = sand.u32 %s272, 1
        %s3433 = smul.addr %s3432, 256
        %s3434 = scalar_lea.vmem [#allocation5], %s3433
        // Predicated region
        $region69: #{tpu_custom_call.1} parent=63 // pred_check
          %p3435 = pneg %p282
        $region70: #{tpu_custom_call.1} parent=63 // pred_check_branch
          %3437 = sbr.rel (%p3435) target = $region72
        $region71: #{tpu_custom_call.1} parent=63 // pred_region
          %s3439 = ssub.s32 4096, 4096
          %3440 = vsyncadd %s3431, %s3439
          %s3441 = smul.addr %s28, 32
          %s3442 = smul.addr %s3441, 128
          %s3443 = scalar_lea.hbm %s11, %s3442
          %s3444 = sshll.u32 %s3434, 4
          %s3445 = int_to_ptr.vmem [resolvable:$true] %s3444
          %3450 = dma.vmem_to_hbm [thread:$0]  %s3445, 4096, %s3443, %s3431, 128, 128, 8
        $region72: #{tpu_custom_call.1} parent=63 // pred_fallthru
          _
      $region64: #{tpu_custom_call.1} parent=5 // pred_fallthru
        _
      %p3451 = scmp.le.s32.totalorder 2, %s23
      // Predicated region
      $region73: #{tpu_custom_call.1} parent=5 // pred_check
        %p3452 = pneg %p3451
      $region74: #{tpu_custom_call.1} parent=5 // pred_check_branch
        %3454 = sbr.rel (%p3452) target = $region76
      $region75: #{tpu_custom_call.1} parent=5 // pred_region
        %s3455 = ssub.s32 %s23, 2
        // Predicated region
        $region77: #{tpu_custom_call.1} parent=75 // pred_check
          %p3456 = pneg %p288
        $region78: #{tpu_custom_call.1} parent=75 // pred_check_branch
          %3458 = sbr.rel (%p3456) target = $region80
        $region79: #{tpu_custom_call.1} parent=75 // pred_region
          %s3459 = sand.u32 %s273, 1
          %s3460 = scalar_lea.sflag [#allocation4], %s3459
          %s3461 = sand.u32 %s273, 1
          %s3462 = smul.addr %s3461, 256
          %s3463 = scalar_lea.vmem [#allocation5], %s3462
          %3464 = dma.done %s3460, 4096
        $region80: #{tpu_custom_call.1} parent=75 // pred_fallthru
          _
      $region76: #{tpu_custom_call.1} parent=5 // pred_fallthru
        _
    $region6: #{tpu_custom_call.1} parent=1 // loop_footer
      %s27 = sadd.s32 1, %s23
    $region7: #{tpu_custom_call.1} parent=1 // loop_footer_branch
      %22 = sbr.rel target = $region3
    $region8: #{tpu_custom_call.1} parent=1 // loop_exit
      _
    %3465 = vsyncpa [#allocation3], 1
    %s3466 = scalar_lea.sflag [#allocation3], 1
    %3467 = vsyncpa %s3466, 1
    %3468 = vsyncpa [#allocation4], 1
    %s3469 = scalar_lea.sflag [#allocation4], 1
    %3470 = vsyncpa %s3469, 1

</llo_original>
